<compile_context>
chip_gen: v7x
topology: tpu7x:2x2x1
jax: 0.10.0
libtpu: 0.0.40
codegen_flags: <defaults>
</compile_context>

<pallas_src>
import functools

import jax
import jax.numpy as jnp
from jax.experimental import pallas as pl
from jax.experimental.pallas import tpu as pltpu

MXU_DTYPE = jnp.bfloat16            # MXU operand dtype (f32 accumulation)
VMEM_LIMIT = 48 * 1024 * 1024       # conservative for v7x (64 MiB), fine v5e/v6e


# ----------------------------------------------------------------------------
# helpers
# ----------------------------------------------------------------------------
def _act(y, act):
    if act == "relu":
        return jnp.maximum(y, 0.0)
    if act == "tanh":
        return jnp.tanh(y)
    if act == "sigmoid":
        return jax.nn.sigmoid(y)
    return y


def _ceil_to(x, m):
    return ((x + m - 1) // m) * m


def _row_tile(n, pref=512):
    """Row tile dividing n: full dim if small, else largest pow-2 divisor.
    (Row-gridded light kernels fall back to a single full block for ragged n;
    the heavy matmuls use padding instead.)"""
    if n <= pref:
        return n
    t = pref
    while t >= 8:
        if n % t == 0:
            return t
        t //= 2
    return n


# ----------------------------------------------------------------------------
# tiled matmul + bias + activation (projections, adj propagation, lrpe layer-1)
# ----------------------------------------------------------------------------
def _mm_kernel(x_ref, w_ref, b_ref, o_ref, acc_ref, *, act):
    kk = pl.program_id(2)

    @pl.when(kk == 0)
    def _():
        acc_ref[...] = jnp.zeros_like(acc_ref)

    acc_ref[...] += jnp.dot(x_ref[...], w_ref[...],
                            preferred_element_type=jnp.float32)

    @pl.when(kk == pl.num_programs(2) - 1)
    def _():
        o_ref[...] = _act(acc_ref[...] + b_ref[...], act).astype(o_ref.dtype)


def matmul_bias_act(x, w, b=None, act="none", out_dtype=MXU_DTYPE,
                    *, tm=256, tn=256, tk=512):
    """act(x @ w + b). x:(M,K), w:(K,N) (both pre-cast bf16), b:(1,N) f32.
    Ragged M/N/K are zero-padded to tile multiples (result sliced back)."""
    M, K = x.shape
    N = w.shape[1]
    if b is None:
        b = jnp.zeros((1, N), jnp.float32)
    tm_ = M if M <= tm else tm
    tn_ = N if N <= tn else tn
    tk_ = K if K <= tk else tk
    Mp, Np, Kp = _ceil_to(M, tm_), _ceil_to(N, tn_), _ceil_to(K, tk_)
    if (Mp, Kp) != (M, K):
        x = jnp.pad(x, ((0, Mp - M), (0, Kp - K)))
    if (Kp, Np) != (K, N):
        w = jnp.pad(w, ((0, Kp - K), (0, Np - N)))
    if Np != N:
        b = jnp.pad(b, ((0, 0), (0, Np - N)))

    out = pl.pallas_call(
        functools.partial(_mm_kernel, act=act),
        out_shape=jax.ShapeDtypeStruct((Mp, Np), out_dtype),
        grid=(Mp // tm_, Np // tn_, Kp // tk_),
        in_specs=[
            pl.BlockSpec((tm_, tk_), lambda i, j, kk: (i, kk)),
            pl.BlockSpec((tk_, tn_), lambda i, j, kk: (kk, j)),
            pl.BlockSpec((1, tn_), lambda i, j, kk: (0, j)),
        ],
        out_specs=pl.BlockSpec((tm_, tn_), lambda i, j, kk: (i, j)),
        scratch_shapes=[pltpu.VMEM((tm_, tn_), jnp.float32)],
        compiler_params=pltpu.CompilerParams(
            dimension_semantics=("parallel", "parallel", "arbitrary"),
            vmem_limit_bytes=VMEM_LIMIT),
    )(x, w, b)
    if (Mp, Np) != (M, N):
        out = out[:M, :N]
    return out


# ----------------------------------------------------------------------------
# AvgReadout + sigmoid over the first n_rows of h_both (no slicing / copy)
# ----------------------------------------------------------------------------
def _readout_kernel(h_ref, o_ref, *, inv_n):
    i = pl.program_id(0)

    @pl.when(i == 0)
    def _():
        o_ref[...] = jnp.zeros_like(o_ref)

    o_ref[...] += jnp.sum(h_ref[...].astype(jnp.float32),
                          axis=0, keepdims=True) * inv_n

    @pl.when(i == pl.num_programs(0) - 1)
    def _():
        o_ref[...] = jax.nn.sigmoid(o_ref[...])


def readout_sigmoid(h_both, n_rows, *, tm=512):
    H = h_both.shape[1]
    tm = _row_tile(n_rows, tm)
    return pl.pallas_call(
        functools.partial(_readout_kernel, inv_n=1.0 / n_rows),
        out_shape=jax.ShapeDtypeStruct((1, H), jnp.float32),
        grid=(n_rows // tm,),
        in_specs=[pl.BlockSpec((tm, H), lambda i: (i, 0))],
        out_specs=pl.BlockSpec((1, H), lambda i: (0, 0)),
        compiler_params=pltpu.CompilerParams(
            dimension_semantics=("arbitrary",)),
    )(h_both)


# ----------------------------------------------------------------------------
# lrpe tail: fused 2-layer MLP (relu, linear) — intermediate stays in VMEM
# ----------------------------------------------------------------------------
def _mlp_tail2_kernel(x_ref, w2, b2, w3, b3, o_ref):
    h = jnp.maximum(
        jnp.dot(x_ref[...], w2[...], preferred_element_type=jnp.float32)
        + b2[...], 0.0)
    y = jnp.dot(h.astype(MXU_DTYPE), w3[...],
                preferred_element_type=jnp.float32) + b3[...]
    o_ref[...] = y.astype(o_ref.dtype)


def mlp_tail2(x, w2, b2, w3, b3, *, tm=512):
    M, H = x.shape
    O = w3.shape[1]
    tm = _row_tile(M, tm)
    c2 = lambda i: (0, 0)
    return pl.pallas_call(
        _mlp_tail2_kernel,
        out_shape=jax.ShapeDtypeStruct((M, O), MXU_DTYPE),
        grid=(M // tm,),
        in_specs=[pl.BlockSpec((tm, H), lambda i: (i, 0)),
                  pl.BlockSpec((H, H), c2), pl.BlockSpec((1, H), c2),
                  pl.BlockSpec((H, O), c2), pl.BlockSpec((1, O), c2)],
        out_specs=pl.BlockSpec((tm, O), lambda i: (i, 0)),
        compiler_params=pltpu.CompilerParams(
            dimension_semantics=("parallel",),
            vmem_limit_bytes=VMEM_LIMIT),
    )(x, w2, b2, w3, b3)


# ----------------------------------------------------------------------------
# bilinear discriminator: wc = c @ W.T hoisted, lane-dense (1, 2N) scores
# ----------------------------------------------------------------------------
def _disc_kernel(wc_ref, h_ref, b_ref, o_ref):
    s = jax.lax.dot_general(
        wc_ref[...], h_ref[...], (((1,), (1,)), ((), ())),
        preferred_element_type=jnp.float32)                 # (1, tm) lane-dense
    o_ref[...] = (s + b_ref[0, 0]).astype(o_ref.dtype)


def discriminate(wc, h_both, b, *, tm=512):
    M, H = h_both.shape
    tm = _row_tile(M, tm)
    return pl.pallas_call(
        _disc_kernel,
        out_shape=jax.ShapeDtypeStruct((1, M), jnp.float32),
        grid=(M // tm,),
        in_specs=[
            pl.BlockSpec((1, H), lambda i: (0, 0)),
            pl.BlockSpec((tm, H), lambda i: (i, 0)),
            pl.BlockSpec(memory_space=pltpu.MemorySpace.SMEM),   # (1,1) bias
        ],
        out_specs=pl.BlockSpec((1, tm), lambda i: (0, i)),
        compiler_params=pltpu.CompilerParams(
            dimension_semantics=("parallel",)),
    )(wc, h_both, b)


# ----------------------------------------------------------------------------
# k-neighbor dot products, vectorized over k, lane-dense (k, N) output
# ----------------------------------------------------------------------------
def _neighbor_dot_kernel(x_ref, g_ref, o_ref):
    x = x_ref[...].astype(jnp.float32)                      # (tm, D)
    g = g_ref[...].astype(jnp.float32)                      # (k, tm, D)
    o_ref[...] = jnp.sum(g * x[None], axis=-1).astype(o_ref.dtype)   # (k, tm)


def neighbor_dot(x, gathered_kfirst, *, tm=256):
    """out[j, i] = dot(x[i], x[idx[i, j]]); gathered_kfirst:(k,N,D) = x[idx.T]."""
    k, N, D = gathered_kfirst.shape
    tm = _row_tile(N, tm)
    return pl.pallas_call(
        _neighbor_dot_kernel,
        out_shape=jax.ShapeDtypeStruct((k, N), jnp.float32),
        grid=(N // tm,),
        in_specs=[
            pl.BlockSpec((tm, D), lambda i: (i, 0)),
            pl.BlockSpec((k, tm, D), lambda i: (0, i, 0)),
        ],
        out_specs=pl.BlockSpec((k, tm), lambda i: (0, i)),
        compiler_params=pltpu.CompilerParams(
            dimension_semantics=("parallel",)),
    )(x, gathered_kfirst)


# ----------------------------------------------------------------------------
# fused decoder-MSE kernels
# ----------------------------------------------------------------------------
def _mlp3_apply(x, w1, b1, w2, b2, w3, b3):
    h = jnp.maximum(jnp.dot(x, w1, preferred_element_type=jnp.float32) + b1, 0.0)
    h = jnp.maximum(
        jnp.dot(h.astype(MXU_DTYPE), w2, preferred_element_type=jnp.float32)
        + b2, 0.0)
    return jnp.dot(h.astype(MXU_DTYPE), w3,
                   preferred_element_type=jnp.float32) + b3


def _dual_dec_kernel(h_ref, t1_ref, t2_ref,
                     fw1, fb1, fw2, fb2, fw3, fb3,
                     lw1, lb1, lw2, lb2, lw3, lb3,
                     o_ref, *, inv1, inv2):
    i = pl.program_id(0)

    @pl.when(i == 0)
    def _():
        o_ref[0, 0] = jnp.float32(0.0)
        o_ref[0, 1] = jnp.float32(0.0)

    x = h_ref[...]
    d1 = _mlp3_apply(x, fw1[...], fb1[...], fw2[...], fb2[...],
                     fw3[...], fb3[...]) - t1_ref[...]
    o_ref[0, 0] += jnp.sum(d1 * d1) * inv1
    d2 = _mlp3_apply(x, lw1[...], lb1[...], lw2[...], lb2[...],
                     lw3[...], lb3[...]) - t2_ref[...]
    o_ref[0, 1] += jnp.sum(d2 * d2) * inv2


def dual_decoder_mse(h_both, t_fd, t_lsim, p, n_rows, *, tm=512):
    """feature_loss (fd decoder vs t_fd) and feature_loss3 (lsim decoder vs
    t_lsim), both over h_1_l1 = first n_rows of h_both, sharing one read."""
    H = h_both.shape[1]
    O1, O2 = t_fd.shape[1], t_lsim.shape[1]
    tm = _row_tile(n_rows, tm)
    c2 = lambda i: (0, 0)
    fd_w = [p["fd_w1"], p["fd_b1"], p["fd_w2"], p["fd_b2"], p["fd_w3"], p["fd_b3"]]
    ls_w = [p["lsim_w1"], p["lsim_b1"], p["lsim_w2"], p["lsim_b2"],
            p["lsim_w3"], p["lsim_b3"]]
    out = pl.pallas_call(
        functools.partial(_dual_dec_kernel,
                          inv1=1.0 / float(n_rows * O1),
                          inv2=1.0 / float(n_rows * O2)),
        out_shape=jax.ShapeDtypeStruct((1, 2), jnp.float32),
        grid=(n_rows // tm,),
        in_specs=[pl.BlockSpec((tm, H), lambda i: (i, 0)),
                  pl.BlockSpec((tm, O1), lambda i: (i, 0)),
                  pl.BlockSpec((tm, O2), lambda i: (i, 0)),
                  pl.BlockSpec((H, H), c2), pl.BlockSpec((1, H), c2),
                  pl.BlockSpec((H, H), c2), pl.BlockSpec((1, H), c2),
                  pl.BlockSpec((H, O1), c2), pl.BlockSpec((1, O1), c2),
                  pl.BlockSpec((H, H), c2), pl.BlockSpec((1, H), c2),
                  pl.BlockSpec((H, H), c2), pl.BlockSpec((1, H), c2),
                  pl.BlockSpec((H, O2), c2), pl.BlockSpec((1, O2), c2)],
        out_specs=pl.BlockSpec(memory_space=pltpu.MemorySpace.SMEM),
        compiler_params=pltpu.CompilerParams(
            dimension_semantics=("arbitrary",),
            vmem_limit_bytes=VMEM_LIMIT),
    )(h_both, t_fd, t_lsim, *fd_w, *ls_w)
    return out[0, 0], out[0, 1]


def _agg_fd2_kernel(h_ref, s_ref, pt_ref, t_ref,
                    aw1h, aw1s, aw1p, ab1, aw2, ab2, aw3, ab3,
                    dw1, db1, dw2, db2, dw3, db3,
                    o_ref, *, inv_denom):
    i = pl.program_id(0)

    @pl.when(i == 0)
    def _():
        o_ref[0, 0] = jnp.float32(0.0)

    # fea_agg layer 1 with split weights (== concat([h, seq, pattern]) @ W1)
    z = (jnp.dot(h_ref[...], aw1h[...], preferred_element_type=jnp.float32)
         + jnp.dot(s_ref[...], aw1s[...], preferred_element_type=jnp.float32)
         + jnp.dot(pt_ref[...], aw1p[...], preferred_element_type=jnp.float32)
         + ab1[...])
    z = jnp.maximum(z, 0.0)
    z = jnp.maximum(
        jnp.dot(z.astype(MXU_DTYPE), aw2[...],
                preferred_element_type=jnp.float32) + ab2[...], 0.0)
    fea = jnp.dot(z.astype(MXU_DTYPE), aw3[...],
                  preferred_element_type=jnp.float32) + ab3[...]
    # fd2 decoder + MSE on the in-register `fea` (never written to HBM)
    d = _mlp3_apply(fea.astype(MXU_DTYPE), dw1[...], db1[...], dw2[...],
                    db2[...], dw3[...], db3[...]) - t_ref[...]
    o_ref[0, 0] += jnp.sum(d * d) * inv_denom


def agg_fd2_mse(h_both, sfeat, pattern, target, p, n_rows, *, tm=512):
    H = h_both.shape[1]
    Din = sfeat.shape[1]
    O = target.shape[1]
    tm = _row_tile(n_rows, tm)
    c2 = lambda i: (0, 0)
    wargs = [p["agg_w1h"], p["agg_w1s"], p["agg_w1p"], p["agg_b1"],
             p["agg_w2"], p["agg_b2"], p["agg_w3"], p["agg_b3"],
             p["fd2_w1"], p["fd2_b1"], p["fd2_w2"], p["fd2_b2"],
             p["fd2_w3"], p["fd2_b3"]]
    out = pl.pallas_call(
        functools.partial(_agg_fd2_kernel, inv_denom=1.0 / float(n_rows * O)),
        out_shape=jax.ShapeDtypeStruct((1, 1), jnp.float32),
        grid=(n_rows // tm,),
        in_specs=[pl.BlockSpec((tm, H), lambda i: (i, 0)),
                  pl.BlockSpec((tm, Din), lambda i: (i, 0)),
                  pl.BlockSpec((tm, H), lambda i: (i, 0)),
                  pl.BlockSpec((tm, O), lambda i: (i, 0)),
                  pl.BlockSpec((H, H), c2), pl.BlockSpec((Din, H), c2),
                  pl.BlockSpec((H, H), c2), pl.BlockSpec((1, H), c2),
                  pl.BlockSpec((H, H), c2), pl.BlockSpec((1, H), c2),
                  pl.BlockSpec((H, H), c2), pl.BlockSpec((1, H), c2),
                  pl.BlockSpec((H, H), c2), pl.BlockSpec((1, H), c2),
                  pl.BlockSpec((H, H), c2), pl.BlockSpec((1, H), c2),
                  pl.BlockSpec((H, O), c2), pl.BlockSpec((1, O), c2)],
        out_specs=pl.BlockSpec(memory_space=pltpu.MemorySpace.SMEM),
        compiler_params=pltpu.CompilerParams(
            dimension_semantics=("arbitrary",),
            vmem_limit_bytes=VMEM_LIMIT),
    )(h_both, sfeat, pattern, target, *wargs)
    return out[0, 0]


# ----------------------------------------------------------------------------
# parameter init (deterministic, synthetic): weights bf16, biases f32
# ----------------------------------------------------------------------------
def init_params(key, n_in, n_h, k_sub, walk_length):
    keys = iter(jax.random.split(key, 40))

    def w(shape, scale=0.1):
        return (scale * jax.random.normal(next(keys), shape)).astype(MXU_DTYPE)

    def b(dim):
        return jnp.zeros((1, dim), jnp.float32)

    p = {}
    # simplified LSTMContext head (gather-mean -> linear -> tanh)
    p["lstm_w1"], p["lstm_b1"] = w((n_in, n_h)), b(n_h)
    # two GCN layers (n_in -> n_in)
    p["gcn_w"], p["gcn_b"] = w((n_in, n_in)), b(n_in)
    p["gcn2_w"], p["gcn2_b"] = w((n_in, n_in)), b(n_in)
    # simplified LRPE: (k_sub * n_in) -> n_h MLP (layer-1 tiled, tail fused)
    p["lrpe_w1"], p["lrpe_b1"] = w((k_sub * n_in, n_h)), b(n_h)
    p["lrpe_w2"], p["lrpe_b2"] = w((n_h, n_h)), b(n_h)
    p["lrpe_w3"], p["lrpe_b3"] = w((n_h, n_h)), b(n_h)
    # bilinear discriminator (kept f32; only used once in the tiny wc matvec)
    p["disc_w"] = (0.1 * jax.random.normal(next(keys), (n_h, n_h))).astype(jnp.float32)
    p["disc_b"] = jnp.zeros((1, 1), jnp.float32)
    # fea_agg = MLP(3, n_h*2 + n_in, n_h, n_h) with layer-1 split into 3 blocks
    p["agg_w1h"], p["agg_w1s"], p["agg_w1p"] = w((n_h, n_h)), w((n_in, n_h)), w((n_h, n_h))
    p["agg_b1"] = b(n_h)
    p["agg_w2"], p["agg_b2"] = w((n_h, n_h)), b(n_h)
    p["agg_w3"], p["agg_b3"] = w((n_h, n_h)), b(n_h)
    # FNN decoders that feed the RETURNED losses (feature_loss4 / sfd is dead)
    for name, out_dim in [("fd", n_in), ("fd2", n_in), ("lsim", walk_length)]:
        p[f"{name}_w1"], p[f"{name}_b1"] = w((n_h, n_h)), b(n_h)
        p[f"{name}_w2"], p[f"{name}_b2"] = w((n_h, n_h)), b(n_h)
        p[f"{name}_w3"], p[f"{name}_b3"] = w((n_h, out_dim)), b(out_dim)
    return p


# ----------------------------------------------------------------------------
# DGI.forward
# ----------------------------------------------------------------------------
def dgi_forward(p, seq1, subgraph_idx, neg_idx, tmp, adj,
                msk=None, samp_bias1=None, samp_bias2=None):
    del tmp, msk, samp_bias1, samp_bias2   # None / unused in simplified LRPE
    n_nodes, n_in = seq1.shape
    k_sub = subgraph_idx.shape[1]

    # one-time bf16 casts of the big streamed operands (halves matmul DMA bytes)
    seq1_b = seq1.astype(MXU_DTYPE)
    adj_b = adj.astype(MXU_DTYPE)

    # --- LSTMContext (simplified): gather-mean BEFORE the projection ---------
    # mean_k(seq1[idx]) @ W == mean_k(seq1[idx] @ W); pos & neg stacked.
    idx_both = jnp.concatenate([subgraph_idx, neg_idx], axis=0)          # (2N, k)
    # TODO(synk): gather+mean stays as XLA glue (fusable via scalar-prefetch DMA).
    mean_both = jnp.mean(seq1[idx_both], axis=1).astype(MXU_DTYPE)       # (2N, n_in)
    h_both = matmul_bias_act(mean_both, p["lstm_w1"], p["lstm_b1"],
                             act="tanh", out_dtype=MXU_DTYPE)            # (2N, n_h)
    c_out = readout_sigmoid(h_both, n_rows=n_nodes)                      # (1, n_h) f32
    # TODO(synk): h_1_l2 and the duplicate readout `c` are dead w.r.t. the
    # returned values and are omitted.

    # --- two GCN layers: relu(adj @ (x @ W) + b), tiled bf16 MXU --------------
    xw = matmul_bias_act(seq1_b, p["gcn_w"])
    fea_sub = matmul_bias_act(adj_b, xw, p["gcn_b"], act="relu")
    xw2 = matmul_bias_act(fea_sub, p["gcn2_w"])
    fea_sub = matmul_bias_act(adj_b, xw2, p["gcn2_b"], act="relu")       # (N, n_in) bf16

    # --- LRPE (simplified): K-tiled layer-1 + fused 2-layer tail --------------
    sub_feats = fea_sub[subgraph_idx].reshape(n_nodes, k_sub * n_in)     # bf16
    z1 = matmul_bias_act(sub_feats, p["lrpe_w1"], p["lrpe_b1"], act="relu")
    pattern = mlp_tail2(z1, p["lrpe_w2"], p["lrpe_b2"],
                        p["lrpe_w3"], p["lrpe_b3"])                      # (N, n_h) bf16

    # --- discriminator: wc hoisted once, lane-dense (1, 2N) output ------------
    wc = jnp.dot(c_out, p["disc_w"].T).astype(MXU_DTYPE)                 # (1, n_h)
    ret = discriminate(wc, h_both, p["disc_b"])                          # (1, 2N) f32

    # --- local similarity: only the k needed dot products, lane-dense ---------
    gathered_seq = seq1_b[subgraph_idx.T]                                # (k, N, n_in)
    nsim = neighbor_dot(seq1_b, gathered_seq).T                          # (N, k) f32

    # --- decoders: fd+lsim share the h_1_l1 read; agg+fd2 fully fused ---------
    l_fd, l_lsim = dual_decoder_mse(h_both, seq1, nsim, p, n_rows=n_nodes)
    sfeat = seq1_b[subgraph_idx[:, 0]]      # kept (cheap) in case idx[:,0]!=arange
    l_fd2 = agg_fd2_mse(h_both, sfeat, pattern, seq1, p, n_rows=n_nodes)
    # TODO(synk): feature_loss4 / subgraph_fea_decoder only feed a print in the
    # torch code; dropped as dead work (does not affect returned values).

    return ret, l_fd + l_fd2 + jnp.float32(1e-7) * l_lsim


# ----------------------------------------------------------------------------
if __name__ == "__main__":
    N_NODES = 16       # graph nodes
    N_IN = 16          # n_in
    N_H = 32           # n_h
    K_SUB = 4          # args.sugraph_node_number
    WALK_LEN = 4       # args.walk_length (== K_SUB so neighbor_sim matches lsim)

    key = jax.random.PRNGKey(0)
    k_p, k_seq, k_adj = jax.random.split(key, 3)

    params = init_params(k_p, N_IN, N_H, K_SUB, WALK_LEN)

    seq1 = jax.random.normal(k_seq, (N_NODES, N_IN), dtype=jnp.float32)

    # row-normalized adjacency with self loops
    adj_raw = (jax.random.uniform(k_adj, (N_NODES, N_NODES)) > 0.7)
    adj_raw = adj_raw.astype(jnp.float32) + jnp.eye(N_NODES, dtype=jnp.float32)
    adj = adj_raw / jnp.sum(adj_raw, axis=1, keepdims=True)

    # deterministic subgraphs: subgraph[i][0] == i (forward relies on this)
    base = jnp.arange(N_NODES, dtype=jnp.int32)[:, None]
    offs = jnp.arange(K_SUB, dtype=jnp.int32)[None, :]
    subgraph_idx = (base + offs) % N_NODES                   # (N, 4)
    neg_idx = (base + offs + 5) % N_NODES                    # "neg" subgraphs

    tmp = jnp.zeros((N_NODES, N_IN), dtype=jnp.float32)      # unused (LRPE tmp)

    fwd = jax.jit(dgi_forward)
    ret, loss = fwd(params, seq1, subgraph_idx, neg_idx, tmp, adj)
    jax.block_until_ready((ret, loss))

    assert ret.shape == (1, 2 * N_NODES)
    assert loss.shape == ()
    print("KERNEL_OK")
</pallas_src>

<mosaic_0001>
module attributes {stable_mosaic.version = 11 : i64} {
  func.func @_mm_kernel(%arg0: i32, %arg1: i32, %arg2: i32, %arg3: memref<32x16xbf16, #tpu.memory_space<vmem>>, %arg4: memref<16x32xbf16, #tpu.memory_space<vmem>>, %arg5: memref<1x32xf32, #tpu.memory_space<vmem>>, %arg6: memref<32x32xbf16, #tpu.memory_space<vmem>>, %arg7: memref<32x32xf32, #tpu.memory_space<vmem>>) attributes {dimension_semantics = [#tpu.dimension_semantics<parallel>, #tpu.dimension_semantics<parallel>, #tpu.dimension_semantics<arbitrary>], iteration_bounds = array<i64: 1, 1, 1>, scalar_prefetch = 0 : i64, scratch_operands = 1 : i64, tpu.core_type = #tpu.core_type<tc>, window_params = [{transform_indices = @transform_0, window_bounds = array<i64: 32, 16>}, {transform_indices = @transform_1, window_bounds = array<i64: 16, 32>}, {transform_indices = @transform_2, window_bounds = array<i64: 1, 32>}, {transform_indices = @transform_3, window_bounds = array<i64: 32, 32>}]} {
    %c0_i32 = arith.constant 0 : i32
    %0 = arith.cmpi eq, %arg2, %c0_i32 : i32
    %1 = arith.extui %0 : i1 to i32
    %c0_i32_0 = arith.constant 0 : i32
    %2 = arith.cmpi ne, %1, %c0_i32_0 : i32
    scf.if %2 {
      %cst_10 = arith.constant 0.000000e+00 : f32
      %12 = vector.broadcast %cst_10 : f32 to vector<32x32xf32>
      %c0_11 = arith.constant 0 : index
      %c0_12 = arith.constant 0 : index
      %13 = vector.load %arg7[%c0_11, %c0_12] : memref<32x32xf32, #tpu.memory_space<vmem>>, vector<32x32xf32>
      tpu.vector_store %arg7[%c0_11, %c0_12], %12 {strides = array<i32>} : memref<32x32xf32, #tpu.memory_space<vmem>>, vector<32x32xf32>,
    } else {
    }
    %c0 = arith.constant 0 : index
    %c0_1 = arith.constant 0 : index
    %3 = vector.load %arg7[%c0, %c0_1] : memref<32x32xf32, #tpu.memory_space<vmem>>, vector<32x32xf32>
    %c0_2 = arith.constant 0 : index
    %c0_3 = arith.constant 0 : index
    %4 = vector.load %arg3[%c0_2, %c0_3] : memref<32x16xbf16, #tpu.memory_space<vmem>>, vector<32x16xbf16>
    %c0_4 = arith.constant 0 : index
    %c0_5 = arith.constant 0 : index
    %5 = vector.load %arg4[%c0_4, %c0_5] : memref<16x32xbf16, #tpu.memory_space<vmem>>, vector<16x32xbf16>
    %cst = arith.constant dense<0.000000e+00> : vector<32x32xf32>
    %6 = tpu.matmul %4, %5, %cst {dimension_numbers = #tpu.dot_dimension_numbers<[1], [0], [0], [1], [0, 0, 1, 1], [], []>} : vector<32x16xbf16>, vector<16x32xbf16>, vector<32x32xf32> -> vector<32x32xf32>
    %7 = arith.addf %3, %6 : vector<32x32xf32>
    %c0_6 = arith.constant 0 : index
    %c0_7 = arith.constant 0 : index
    %8 = vector.load %arg7[%c0_6, %c0_7] : memref<32x32xf32, #tpu.memory_space<vmem>>, vector<32x32xf32>
    tpu.vector_store %arg7[%c0_6, %c0_7], %7 {strides = array<i32>} : memref<32x32xf32, #tpu.memory_space<vmem>>, vector<32x32xf32>,
    %c0_i32_8 = arith.constant 0 : i32
    %9 = arith.cmpi eq, %arg2, %c0_i32_8 : i32
    %10 = arith.extui %9 : i1 to i32
    %c0_i32_9 = arith.constant 0 : i32
    %11 = arith.cmpi ne, %10, %c0_i32_9 : i32
    scf.if %11 {
      %c0_10 = arith.constant 0 : index
      %c0_11 = arith.constant 0 : index
      %12 = vector.load %arg7[%c0_10, %c0_11] : memref<32x32xf32, #tpu.memory_space<vmem>>, vector<32x32xf32>
      %c0_12 = arith.constant 0 : index
      %c0_13 = arith.constant 0 : index
      %13 = vector.load %arg5[%c0_12, %c0_13] : memref<1x32xf32, #tpu.memory_space<vmem>>, vector<1x32xf32>
      %14 = vector.broadcast %13 : vector<1x32xf32> to vector<32x32xf32>
      %15 = arith.addf %12, %14 : vector<32x32xf32>
      %16 = math.tanh %15 : vector<32x32xf32>
      %17 = arith.truncf %16 : vector<32x32xf32> to vector<32x32xbf16>
      %c0_14 = arith.constant 0 : index
      %c0_15 = arith.constant 0 : index
      %18 = vector.load %arg6[%c0_14, %c0_15] : memref<32x32xbf16, #tpu.memory_space<vmem>>, vector<32x32xbf16>
      tpu.vector_store %arg6[%c0_14, %c0_15], %17 {strides = array<i32>} : memref<32x32xbf16, #tpu.memory_space<vmem>>, vector<32x32xbf16>,
    } else {
    }
    return
  }
  func.func @transform_0(%arg0: i32, %arg1: i32, %arg2: i32) -> (i32, i32) {
    %c0_i32 = arith.constant 0 : i32
    return %arg0, %arg2 : i32, i32
  }
  func.func @transform_1(%arg0: i32, %arg1: i32, %arg2: i32) -> (i32, i32) {
    %c0_i32 = arith.constant 0 : i32
    return %arg2, %arg1 : i32, i32
  }
  func.func @transform_2(%arg0: i32, %arg1: i32, %arg2: i32) -> (i32, i32) {
    %c0_i32 = arith.constant 0 : i32
    %c0_i32_0 = arith.constant 0 : i32
    return %c0_i32, %arg1 : i32, i32
  }
  func.func @transform_3(%arg0: i32, %arg1: i32, %arg2: i32) -> (i32, i32) {
    %c0_i32 = arith.constant 0 : i32
    return %arg0, %arg1 : i32, i32
  }
}

module attributes {stable_mosaic.version = 11 : i64} {
  func.func @_readout_kernel(%arg0: i32, %arg1: memref<16x32xbf16, #tpu.memory_space<vmem>>, %arg2: memref<1x32xf32, #tpu.memory_space<vmem>>) attributes {dimension_semantics = [#tpu.dimension_semantics<arbitrary>], iteration_bounds = array<i64: 1>, scalar_prefetch = 0 : i64, scratch_operands = 0 : i64, tpu.core_type = #tpu.core_type<tc>, window_params = [{transform_indices = @transform_0, window_bounds = array<i64: 16, 32>}, {pipeline_mode = #tpu.pipeline_mode<synchronous>, transform_indices = @transform_1, window_bounds = array<i64: 1, 32>}]} {
    %c0_i32 = arith.constant 0 : i32
    %0 = arith.cmpi eq, %arg0, %c0_i32 : i32
    %1 = arith.extui %0 : i1 to i32
    %c0_i32_0 = arith.constant 0 : i32
    %2 = arith.cmpi ne, %1, %c0_i32_0 : i32
    scf.if %2 {
      %cst_9 = arith.constant 0.000000e+00 : f32
      %15 = vector.broadcast %cst_9 : f32 to vector<1x32xf32>
      %c0_10 = arith.constant 0 : index
      %c0_11 = arith.constant 0 : index
      %16 = vector.load %arg2[%c0_10, %c0_11] : memref<1x32xf32, #tpu.memory_space<vmem>>, vector<1x32xf32>
      tpu.vector_store %arg2[%c0_10, %c0_11], %15 {strides = array<i32>} : memref<1x32xf32, #tpu.memory_space<vmem>>, vector<1x32xf32>,
    } else {
    }
    %c0 = arith.constant 0 : index
    %c0_1 = arith.constant 0 : index
    %3 = vector.load %arg2[%c0, %c0_1] : memref<1x32xf32, #tpu.memory_space<vmem>>, vector<1x32xf32>
    %c0_2 = arith.constant 0 : index
    %c0_3 = arith.constant 0 : index
    %4 = vector.load %arg1[%c0_2, %c0_3] : memref<16x32xbf16, #tpu.memory_space<vmem>>, vector<16x32xbf16>
    %5 = arith.extf %4 : vector<16x32xbf16> to vector<16x32xf32>
    %cst = arith.constant dense<0.000000e+00> : vector<32xf32>
    %6 = vector.multi_reduction <add>, %5, %cst [0] : vector<16x32xf32> to vector<32xf32>
    %7 = vector.shape_cast %6 : vector<32xf32> to vector<1x32xf32>
    %cst_4 = arith.constant 6.250000e-02 : f32
    %8 = vector.broadcast %cst_4 : f32 to vector<1x32xf32>
    %9 = arith.mulf %7, %8 : vector<1x32xf32>
    %10 = arith.addf %3, %9 : vector<1x32xf32>
    %c0_5 = arith.constant 0 : index
    %c0_6 = arith.constant 0 : index
    %11 = vector.load %arg2[%c0_5, %c0_6] : memref<1x32xf32, #tpu.memory_space<vmem>>, vector<1x32xf32>
    tpu.vector_store %arg2[%c0_5, %c0_6], %10 {strides = array<i32>} : memref<1x32xf32, #tpu.memory_space<vmem>>, vector<1x32xf32>,
    %c0_i32_7 = arith.constant 0 : i32
    %12 = arith.cmpi eq, %arg0, %c0_i32_7 : i32
    %13 = arith.extui %12 : i1 to i32
    %c0_i32_8 = arith.constant 0 : i32
    %14 = arith.cmpi ne, %13, %c0_i32_8 : i32
    scf.if %14 {
      %c0_9 = arith.constant 0 : index
      %c0_10 = arith.constant 0 : index
      %15 = vector.load %arg2[%c0_9, %c0_10] : memref<1x32xf32, #tpu.memory_space<vmem>>, vector<1x32xf32>
      %16 = arith.negf %15 : vector<1x32xf32>
      %17 = math.exp %16 : vector<1x32xf32>
      %cst_11 = arith.constant 1.000000e+00 : f32
      %18 = vector.broadcast %cst_11 : f32 to vector<1x32xf32>
      %19 = arith.addf %18, %17 : vector<1x32xf32>
      %20 = arith.divf %18, %19 : vector<1x32xf32>
      %c0_12 = arith.constant 0 : index
      %c0_13 = arith.constant 0 : index
      %21 = vector.load %arg2[%c0_12, %c0_13] : memref<1x32xf32, #tpu.memory_space<vmem>>, vector<1x32xf32>
      tpu.vector_store %arg2[%c0_12, %c0_13], %20 {strides = array<i32>} : memref<1x32xf32, #tpu.memory_space<vmem>>, vector<1x32xf32>,
    } else {
    }
    return
  }
  func.func @transform_0(%arg0: i32) -> (i32, i32) {
    %c0_i32 = arith.constant 0 : i32
    %c0_i32_0 = arith.constant 0 : i32
    return %arg0, %c0_i32 : i32, i32
  }
  func.func @transform_1(%arg0: i32) -> (i32, i32) {
    %c0_i32 = arith.constant 0 : i32
    %c0_i32_0 = arith.constant 0 : i32
    %c0_i32_1 = arith.constant 0 : i32
    return %c0_i32, %c0_i32_0 : i32, i32
  }
}

module attributes {stable_mosaic.version = 11 : i64} {
  func.func @_disc_kernel(%arg0: i32, %arg1: memref<1x32xbf16, #tpu.memory_space<vmem>>, %arg2: memref<32x32xbf16, #tpu.memory_space<vmem>>, %arg3: memref<1x1xf32, #tpu.memory_space<smem>>, %arg4: memref<1x32xf32, #tpu.memory_space<vmem>>) attributes {dimension_semantics = [#tpu.dimension_semantics<parallel>], iteration_bounds = array<i64: 1>, scalar_prefetch = 0 : i64, scratch_operands = 0 : i64, tpu.core_type = #tpu.core_type<tc>, window_params = [{pipeline_mode = #tpu.pipeline_mode<synchronous>, transform_indices = @transform_0, window_bounds = array<i64: 1, 32>}, {transform_indices = @transform_1, window_bounds = array<i64: 32, 32>}, {transform_indices = @transform_2, window_bounds = array<i64: 1, 1>}, {transform_indices = @transform_3, window_bounds = array<i64: 1, 32>}]} {
    %c0 = arith.constant 0 : index
    %c0_0 = arith.constant 0 : index
    %0 = vector.load %arg1[%c0, %c0_0] : memref<1x32xbf16, #tpu.memory_space<vmem>>, vector<1x32xbf16>
    %c0_1 = arith.constant 0 : index
    %c0_2 = arith.constant 0 : index
    %1 = vector.load %arg2[%c0_1, %c0_2] : memref<32x32xbf16, #tpu.memory_space<vmem>>, vector<32x32xbf16>
    %cst = arith.constant dense<0.000000e+00> : vector<1x32xf32>
    %2 = tpu.matmul %0, %1, %cst {dimension_numbers = #tpu.dot_dimension_numbers<[1], [1], [0], [0], [0, 0, 1, 0], [], []>} : vector<1x32xbf16>, vector<32x32xbf16>, vector<1x32xf32> -> vector<1x32xf32>
    %c0_3 = arith.constant 0 : index
    %c0_4 = arith.constant 0 : index
    %3 = memref.load %arg3[%c0_3, %c0_4] : memref<1x1xf32, #tpu.memory_space<smem>>
    %4 = vector.broadcast %3 : f32 to vector<1x32xf32>
    %5 = arith.addf %2, %4 : vector<1x32xf32>
    %c0_5 = arith.constant 0 : index
    %c0_6 = arith.constant 0 : index
    %6 = vector.load %arg4[%c0_5, %c0_6] : memref<1x32xf32, #tpu.memory_space<vmem>>, vector<1x32xf32>
    tpu.vector_store %arg4[%c0_5, %c0_6], %5 {strides = array<i32>} : memref<1x32xf32, #tpu.memory_space<vmem>>, vector<1x32xf32>,
    return
  }
  func.func @transform_0(%arg0: i32) -> (i32, i32) {
    %c0_i32 = arith.constant 0 : i32
    %c0_i32_0 = arith.constant 0 : i32
    %c0_i32_1 = arith.constant 0 : i32
    return %c0_i32, %c0_i32_0 : i32, i32
  }
  func.func @transform_1(%arg0: i32) -> (i32, i32) {
    %c0_i32 = arith.constant 0 : i32
    %c0_i32_0 = arith.constant 0 : i32
    return %arg0, %c0_i32 : i32, i32
  }
  func.func @transform_2(%arg0: i32) -> (i32, i32) {
    %c0_i32 = arith.constant 0 : i32
    %c0_i32_0 = arith.constant 0 : i32
    %c0_i32_1 = arith.constant 0 : i32
    return %c0_i32, %c0_i32_0 : i32, i32
  }
  func.func @transform_3(%arg0: i32) -> (i32, i32) {
    %c0_i32 = arith.constant 0 : i32
    %c0_i32_0 = arith.constant 0 : i32
    return %c0_i32, %arg0 : i32, i32
  }
}

module attributes {stable_mosaic.version = 11 : i64} {
  func.func @_neighbor_dot_kernel(%arg0: i32, %arg1: memref<16x16xbf16, #tpu.memory_space<vmem>>, %arg2: memref<4x16x16xbf16, #tpu.memory_space<vmem>>, %arg3: memref<4x16xf32, #tpu.memory_space<vmem>>) attributes {dimension_semantics = [#tpu.dimension_semantics<parallel>], iteration_bounds = array<i64: 1>, scalar_prefetch = 0 : i64, scratch_operands = 0 : i64, tpu.core_type = #tpu.core_type<tc>, window_params = [{transform_indices = @transform_0, window_bounds = array<i64: 16, 16>}, {transform_indices = @transform_1, window_bounds = array<i64: 4, 16, 16>}, {transform_indices = @transform_2, window_bounds = array<i64: 4, 16>}]} {
    %c0 = arith.constant 0 : index
    %c0_0 = arith.constant 0 : index
    %0 = vector.load %arg1[%c0, %c0_0] : memref<16x16xbf16, #tpu.memory_space<vmem>>, vector<16x16xbf16>
    %1 = arith.extf %0 : vector<16x16xbf16> to vector<16x16xf32>
    %c0_1 = arith.constant 0 : index
    %c0_2 = arith.constant 0 : index
    %c0_3 = arith.constant 0 : index
    %2 = vector.load %arg2[%c0_1, %c0_2, %c0_3] : memref<4x16x16xbf16, #tpu.memory_space<vmem>>, vector<4x16x16xbf16>
    %3 = arith.extf %2 : vector<4x16x16xbf16> to vector<4x16x16xf32>
    %4 = vector.shape_cast %1 : vector<16x16xf32> to vector<1x16x16xf32>
    %5 = vector.broadcast %4 : vector<1x16x16xf32> to vector<4x16x16xf32>
    %6 = arith.mulf %3, %5 : vector<4x16x16xf32>
    %cst = arith.constant dense<0.000000e+00> : vector<4x16xf32>
    %7 = vector.multi_reduction <add>, %6, %cst [2] : vector<4x16x16xf32> to vector<4x16xf32>
    %c0_4 = arith.constant 0 : index
    %c0_5 = arith.constant 0 : index
    %8 = vector.load %arg3[%c0_4, %c0_5] : memref<4x16xf32, #tpu.memory_space<vmem>>, vector<4x16xf32>
    tpu.vector_store %arg3[%c0_4, %c0_5], %7 {strides = array<i32>} : memref<4x16xf32, #tpu.memory_space<vmem>>, vector<4x16xf32>,
    return
  }
  func.func @transform_0(%arg0: i32) -> (i32, i32) {
    %c0_i32 = arith.constant 0 : i32
    %c0_i32_0 = arith.constant 0 : i32
    return %arg0, %c0_i32 : i32, i32
  }
  func.func @transform_1(%arg0: i32) -> (i32, i32, i32) {
    %c0_i32 = arith.constant 0 : i32
    %c0_i32_0 = arith.constant 0 : i32
    %c0_i32_1 = arith.constant 0 : i32
    return %c0_i32, %arg0, %c0_i32_0 : i32, i32, i32
  }
  func.func @transform_2(%arg0: i32) -> (i32, i32) {
    %c0_i32 = arith.constant 0 : i32
    %c0_i32_0 = arith.constant 0 : i32
    return %c0_i32, %arg0 : i32, i32
  }
}

module attributes {stable_mosaic.version = 11 : i64} {
  func.func @_dual_dec_kernel(%arg0: i32, %arg1: memref<16x32xbf16, #tpu.memory_space<vmem>>, %arg2: memref<16x16xf32, #tpu.memory_space<vmem>>, %arg3: memref<16x4xf32, #tpu.memory_space<vmem>>, %arg4: memref<32x32xbf16, #tpu.memory_space<vmem>>, %arg5: memref<1x32xf32, #tpu.memory_space<vmem>>, %arg6: memref<32x32xbf16, #tpu.memory_space<vmem>>, %arg7: memref<1x32xf32, #tpu.memory_space<vmem>>, %arg8: memref<32x16xbf16, #tpu.memory_space<vmem>>, %arg9: memref<1x16xf32, #tpu.memory_space<vmem>>, %arg10: memref<32x32xbf16, #tpu.memory_space<vmem>>, %arg11: memref<1x32xf32, #tpu.memory_space<vmem>>, %arg12: memref<32x32xbf16, #tpu.memory_space<vmem>>, %arg13: memref<1x32xf32, #tpu.memory_space<vmem>>, %arg14: memref<32x4xbf16, #tpu.memory_space<vmem>>, %arg15: memref<1x4xf32, #tpu.memory_space<vmem>>, %arg16: memref<1x2xf32, #tpu.memory_space<smem>>) attributes {dimension_semantics = [#tpu.dimension_semantics<arbitrary>], iteration_bounds = array<i64: 1>, scalar_prefetch = 0 : i64, scratch_operands = 0 : i64, tpu.core_type = #tpu.core_type<tc>, window_params = [{transform_indices = @transform_0, window_bounds = array<i64: 16, 32>}, {transform_indices = @transform_1, window_bounds = array<i64: 16, 16>}, {transform_indices = @transform_2, window_bounds = array<i64: 16, 4>}, {pipeline_mode = #tpu.pipeline_mode<synchronous>, transform_indices = @transform_3, window_bounds = array<i64: 32, 32>}, {pipeline_mode = #tpu.pipeline_mode<synchronous>, transform_indices = @transform_4, window_bounds = array<i64: 1, 32>}, {pipeline_mode = #tpu.pipeline_mode<synchronous>, transform_indices = @transform_5, window_bounds = array<i64: 32, 32>}, {pipeline_mode = #tpu.pipeline_mode<synchronous>, transform_indices = @transform_6, window_bounds = array<i64: 1, 32>}, {pipeline_mode = #tpu.pipeline_mode<synchronous>, transform_indices = @transform_7, window_bounds = array<i64: 32, 16>}, {pipeline_mode = #tpu.pipeline_mode<synchronous>, transform_indices = @transform_8, window_bounds = array<i64: 1, 16>}, {pipeline_mode = #tpu.pipeline_mode<synchronous>, transform_indices = @transform_9, window_bounds = array<i64: 32, 32>}, {pipeline_mode = #tpu.pipeline_mode<synchronous>, transform_indices = @transform_10, window_bounds = array<i64: 1, 32>}, {pipeline_mode = #tpu.pipeline_mode<synchronous>, transform_indices = @transform_11, window_bounds = array<i64: 32, 32>}, {pipeline_mode = #tpu.pipeline_mode<synchronous>, transform_indices = @transform_12, window_bounds = array<i64: 1, 32>}, {pipeline_mode = #tpu.pipeline_mode<synchronous>, transform_indices = @transform_13, window_bounds = array<i64: 32, 4>}, {pipeline_mode = #tpu.pipeline_mode<synchronous>, transform_indices = @transform_14, window_bounds = array<i64: 1, 4>}, {transform_indices = @transform_15, window_bounds = array<i64: 1, 2>}]} {
    %c0_i32 = arith.constant 0 : i32
    %0 = arith.cmpi eq, %arg0, %c0_i32 : i32
    %1 = arith.extui %0 : i1 to i32
    %c0_i32_0 = arith.constant 0 : i32
    %2 = arith.cmpi ne, %1, %c0_i32_0 : i32
    scf.if %2 {
      %cst_50 = arith.constant 0.000000e+00 : f32
      %c0_51 = arith.constant 0 : index
      %c0_52 = arith.constant 0 : index
      %68 = memref.load %arg16[%c0_51, %c0_52] : memref<1x2xf32, #tpu.memory_space<smem>>
      memref.store %cst_50, %arg16[%c0_51, %c0_52] : memref<1x2xf32, #tpu.memory_space<smem>>
      %cst_53 = arith.constant 0.000000e+00 : f32
      %c0_54 = arith.constant 0 : index
      %c1_55 = arith.constant 1 : index
      %69 = memref.load %arg16[%c0_54, %c1_55] : memref<1x2xf32, #tpu.memory_space<smem>>
      memref.store %cst_53, %arg16[%c0_54, %c1_55] : memref<1x2xf32, #tpu.memory_space<smem>>
    } else {
    }
    %c0 = arith.constant 0 : index
    %c0_1 = arith.constant 0 : index
    %3 = vector.load %arg1[%c0, %c0_1] : memref<16x32xbf16, #tpu.memory_space<vmem>>, vector<16x32xbf16>
    %c0_2 = arith.constant 0 : index
    %c0_3 = arith.constant 0 : index
    %4 = vector.load %arg4[%c0_2, %c0_3] : memref<32x32xbf16, #tpu.memory_space<vmem>>, vector<32x32xbf16>
    %c0_4 = arith.constant 0 : index
    %c0_5 = arith.constant 0 : index
    %5 = vector.load %arg5[%c0_4, %c0_5] : memref<1x32xf32, #tpu.memory_space<vmem>>, vector<1x32xf32>
    %c0_6 = arith.constant 0 : index
    %c0_7 = arith.constant 0 : index
    %6 = vector.load %arg6[%c0_6, %c0_7] : memref<32x32xbf16, #tpu.memory_space<vmem>>, vector<32x32xbf16>
    %c0_8 = arith.constant 0 : index
    %c0_9 = arith.constant 0 : index
    %7 = vector.load %arg7[%c0_8, %c0_9] : memref<1x32xf32, #tpu.memory_space<vmem>>, vector<1x32xf32>
    %c0_10 = arith.constant 0 : index
    %c0_11 = arith.constant 0 : index
    %8 = vector.load %arg8[%c0_10, %c0_11] : memref<32x16xbf16, #tpu.memory_space<vmem>>, vector<32x16xbf16>
    %c0_12 = arith.constant 0 : index
    %c0_13 = arith.constant 0 : index
    %9 = vector.load %arg9[%c0_12, %c0_13] : memref<1x16xf32, #tpu.memory_space<vmem>>, vector<1x16xf32>
    %cst = arith.constant dense<0.000000e+00> : vector<16x32xf32>
    %10 = tpu.matmul %3, %4, %cst {dimension_numbers = #tpu.dot_dimension_numbers<[1], [0], [0], [1], [0, 0, 1, 1], [], []>} : vector<16x32xbf16>, vector<32x32xbf16>, vector<16x32xf32> -> vector<16x32xf32>
    %11 = vector.broadcast %5 : vector<1x32xf32> to vector<16x32xf32>
    %12 = arith.addf %10, %11 : vector<16x32xf32>
    %cst_14 = arith.constant 0.000000e+00 : f32
    %13 = vector.broadcast %cst_14 : f32 to vector<16x32xf32>
    %14 = arith.maximumf %12, %13 : vector<16x32xf32>
    %15 = arith.truncf %14 : vector<16x32xf32> to vector<16x32xbf16>
    %cst_15 = arith.constant dense<0.000000e+00> : vector<16x32xf32>
    %16 = tpu.matmul %15, %6, %cst_15 {dimension_numbers = #tpu.dot_dimension_numbers<[1], [0], [0], [1], [0, 0, 1, 1], [], []>} : vector<16x32xbf16>, vector<32x32xbf16>, vector<16x32xf32> -> vector<16x32xf32>
    %17 = vector.broadcast %7 : vector<1x32xf32> to vector<16x32xf32>
    %18 = arith.addf %16, %17 : vector<16x32xf32>
    %cst_16 = arith.constant 0.000000e+00 : f32
    %19 = vector.broadcast %cst_16 : f32 to vector<16x32xf32>
    %20 = arith.maximumf %18, %19 : vector<16x32xf32>
    %21 = arith.truncf %20 : vector<16x32xf32> to vector<16x32xbf16>
    %cst_17 = arith.constant dense<0.000000e+00> : vector<16x16xf32>
    %22 = tpu.matmul %21, %8, %cst_17 {dimension_numbers = #tpu.dot_dimension_numbers<[1], [0], [0], [1], [0, 0, 1, 1], [], []>} : vector<16x32xbf16>, vector<32x16xbf16>, vector<16x16xf32> -> vector<16x16xf32>
    %23 = vector.broadcast %9 : vector<1x16xf32> to vector<16x16xf32>
    %24 = arith.addf %22, %23 : vector<16x16xf32>
    %c0_18 = arith.constant 0 : index
    %c0_19 = arith.constant 0 : index
    %25 = vector.load %arg2[%c0_18, %c0_19] : memref<16x16xf32, #tpu.memory_space<vmem>>, vector<16x16xf32>
    %26 = arith.subf %24, %25 : vector<16x16xf32>
    %c0_20 = arith.constant 0 : index
    %c0_21 = arith.constant 0 : index
    %27 = memref.load %arg16[%c0_20, %c0_21] : memref<1x2xf32, #tpu.memory_space<smem>>
    %28 = arith.mulf %26, %26 : vector<16x16xf32>
    %29 = vector.shape_cast %28 : vector<16x16xf32> to vector<1x16x16xf32>
    %cst_22 = arith.constant dense<0.000000e+00> : vector<1xf32>
    %30 = vector.multi_reduction <add>, %29, %cst_22 [1, 2] : vector<1x16x16xf32> to vector<1xf32>
    %31 = vector.shape_cast %30 : vector<1xf32> to vector<1x1x1xf32>
    %32 = vector.extract %31[0, 0, 0] : f32 from vector<1x1x1xf32>
    %cst_23 = arith.constant 3.906250e-03 : f32
    %33 = arith.mulf %32, %cst_23 : f32
    %34 = arith.addf %27, %33 : f32
    %c0_24 = arith.constant 0 : index
    %c0_25 = arith.constant 0 : index
    %35 = memref.load %arg16[%c0_24, %c0_25] : memref<1x2xf32, #tpu.memory_space<smem>>
    memref.store %34, %arg16[%c0_24, %c0_25] : memref<1x2xf32, #tpu.memory_space<smem>>
    %c0_26 = arith.constant 0 : index
    %c0_27 = arith.constant 0 : index
    %36 = vector.load %arg10[%c0_26, %c0_27] : memref<32x32xbf16, #tpu.memory_space<vmem>>, vector<32x32xbf16>
    %c0_28 = arith.constant 0 : index
    %c0_29 = arith.constant 0 : index
    %37 = vector.load %arg11[%c0_28, %c0_29] : memref<1x32xf32, #tpu.memory_space<vmem>>, vector<1x32xf32>
    %c0_30 = arith.constant 0 : index
    %c0_31 = arith.constant 0 : index
    %38 = vector.load %arg12[%c0_30, %c0_31] : memref<32x32xbf16, #tpu.memory_space<vmem>>, vector<32x32xbf16>
    %c0_32 = arith.constant 0 : index
    %c0_33 = arith.constant 0 : index
    %39 = vector.load %arg13[%c0_32, %c0_33] : memref<1x32xf32, #tpu.memory_space<vmem>>, vector<1x32xf32>
    %c0_34 = arith.constant 0 : index
    %c0_35 = arith.constant 0 : index
    %40 = vector.load %arg14[%c0_34, %c0_35] : memref<32x4xbf16, #tpu.memory_space<vmem>>, vector<32x4xbf16>
    %c0_36 = arith.constant 0 : index
    %c0_37 = arith.constant 0 : index
    %41 = vector.load %arg15[%c0_36, %c0_37] : memref<1x4xf32, #tpu.memory_space<vmem>>, vector<1x4xf32>
    %cst_38 = arith.constant dense<0.000000e+00> : vector<16x32xf32>
    %42 = tpu.matmul %3, %36, %cst_38 {dimension_numbers = #tpu.dot_dimension_numbers<[1], [0], [0], [1], [0, 0, 1, 1], [], []>} : vector<16x32xbf16>, vector<32x32xbf16>, vector<16x32xf32> -> vector<16x32xf32>
    %43 = vector.broadcast %37 : vector<1x32xf32> to vector<16x32xf32>
    %44 = arith.addf %42, %43 : vector<16x32xf32>
    %cst_39 = arith.constant 0.000000e+00 : f32
    %45 = vector.broadcast %cst_39 : f32 to vector<16x32xf32>
    %46 = arith.maximumf %44, %45 : vector<16x32xf32>
    %47 = arith.truncf %46 : vector<16x32xf32> to vector<16x32xbf16>
    %cst_40 = arith.constant dense<0.000000e+00> : vector<16x32xf32>
    %48 = tpu.matmul %47, %38, %cst_40 {dimension_numbers = #tpu.dot_dimension_numbers<[1], [0], [0], [1], [0, 0, 1, 1], [], []>} : vector<16x32xbf16>, vector<32x32xbf16>, vector<16x32xf32> -> vector<16x32xf32>
    %49 = vector.broadcast %39 : vector<1x32xf32> to vector<16x32xf32>
    %50 = arith.addf %48, %49 : vector<16x32xf32>
    %cst_41 = arith.constant 0.000000e+00 : f32
    %51 = vector.broadcast %cst_41 : f32 to vector<16x32xf32>
    %52 = arith.maximumf %50, %51 : vector<16x32xf32>
    %53 = arith.truncf %52 : vector<16x32xf32> to vector<16x32xbf16>
    %cst_42 = arith.constant dense<0.000000e+00> : vector<16x4xf32>
    %54 = tpu.matmul %53, %40, %cst_42 {dimension_numbers = #tpu.dot_dimension_numbers<[1], [0], [0], [1], [0, 0, 1, 1], [], []>} : vector<16x32xbf16>, vector<32x4xbf16>, vector<16x4xf32> -> vector<16x4xf32>
    %55 = vector.broadcast %41 : vector<1x4xf32> to vector<16x4xf32>
    %56 = arith.addf %54, %55 : vector<16x4xf32>
    %c0_43 = arith.constant 0 : index
    %c0_44 = arith.constant 0 : index
    %57 = vector.load %arg3[%c0_43, %c0_44] : memref<16x4xf32, #tpu.memory_space<vmem>>, vector<16x4xf32>
    %58 = arith.subf %56, %57 : vector<16x4xf32>
    %c0_45 = arith.constant 0 : index
    %c1 = arith.constant 1 : index
    %59 = memref.load %arg16[%c0_45, %c1] : memref<1x2xf32, #tpu.memory_space<smem>>
    %60 = arith.mulf %58, %58 : vector<16x4xf32>
    %61 = vector.shape_cast %60 : vector<16x4xf32> to vector<1x16x4xf32>
    %cst_46 = arith.constant dense<0.000000e+00> : vector<1xf32>
    %62 = vector.multi_reduction <add>, %61, %cst_46 [1, 2] : vector<1x16x4xf32> to vector<1xf32>
    %63 = vector.shape_cast %62 : vector<1xf32> to vector<1x1x1xf32>
    %64 = vector.extract %63[0, 0, 0] : f32 from vector<1x1x1xf32>
    %cst_47 = arith.constant 1.562500e-02 : f32
    %65 = arith.mulf %64, %cst_47 : f32
    %66 = arith.addf %59, %65 : f32
    %c0_48 = arith.constant 0 : index
    %c1_49 = arith.constant 1 : index
    %67 = memref.load %arg16[%c0_48, %c1_49] : memref<1x2xf32, #tpu.memory_space<smem>>
    memref.store %66, %arg16[%c0_48, %c1_49] : memref<1x2xf32, #tpu.memory_space<smem>>
    return
  }
  func.func @transform_0(%arg0: i32) -> (i32, i32) {
    %c0_i32 = arith.constant 0 : i32
    %c0_i32_0 = arith.constant 0 : i32
    return %arg0, %c0_i32 : i32, i32
  }
  func.func @transform_1(%arg0: i32) -> (i32, i32) {
    %c0_i32 = arith.constant 0 : i32
    %c0_i32_0 = arith.constant 0 : i32
    return %arg0, %c0_i32 : i32, i32
  }
  func.func @transform_2(%arg0: i32) -> (i32, i32) {
    %c0_i32 = arith.constant 0 : i32
    %c0_i32_0 = arith.constant 0 : i32
    return %arg0, %c0_i32 : i32, i32
  }
  func.func @transform_3(%arg0: i32) -> (i32, i32) {
    %c0_i32 = arith.constant 0 : i32
    %c0_i32_0 = arith.constant 0 : i32
    %c0_i32_1 = arith.constant 0 : i32
    return %c0_i32, %c0_i32_0 : i32, i32
  }
  func.func @transform_4(%arg0: i32) -> (i32, i32) {
    %c0_i32 = arith.constant 0 : i32
    %c0_i32_0 = arith.constant 0 : i32
    %c0_i32_1 = arith.constant 0 : i32
    return %c0_i32, %c0_i32_0 : i32, i32
  }
  func.func @transform_5(%arg0: i32) -> (i32, i32) {
    %c0_i32 = arith.constant 0 : i32
    %c0_i32_0 = arith.constant 0 : i32
    %c0_i32_1 = arith.constant 0 : i32
    return %c0_i32, %c0_i32_0 : i32, i32
  }
  func.func @transform_6(%arg0: i32) -> (i32, i32) {
    %c0_i32 = arith.constant 0 : i32
    %c0_i32_0 = arith.constant 0 : i32
    %c0_i32_1 = arith.constant 0 : i32
    return %c0_i32, %c0_i32_0 : i32, i32
  }
  func.func @transform_7(%arg0: i32) -> (i32, i32) {
    %c0_i32 = arith.constant 0 : i32
    %c0_i32_0 = arith.constant 0 : i32
    %c0_i32_1 = arith.constant 0 : i32
    return %c0_i32, %c0_i32_0 : i32, i32
  }
  func.func @transform_8(%arg0: i32) -> (i32, i32) {
    %c0_i32 = arith.constant 0 : i32
    %c0_i32_0 = arith.constant 0 : i32
    %c0_i32_1 = arith.constant 0 : i32
    return %c0_i32, %c0_i32_0 : i32, i32
  }
  func.func @transform_9(%arg0: i32) -> (i32, i32) {
    %c0_i32 = arith.constant 0 : i32
    %c0_i32_0 = arith.constant 0 : i32
    %c0_i32_1 = arith.constant 0 : i32
    return %c0_i32, %c0_i32_0 : i32, i32
  }
  func.func @transform_10(%arg0: i32) -> (i32, i32) {
    %c0_i32 = arith.constant 0 : i32
    %c0_i32_0 = arith.constant 0 : i32
    %c0_i32_1 = arith.constant 0 : i32
    return %c0_i32, %c0_i32_0 : i32, i32
  }
  func.func @transform_11(%arg0: i32) -> (i32, i32) {
    %c0_i32 = arith.constant 0 : i32
    %c0_i32_0 = arith.constant 0 : i32
    %c0_i32_1 = arith.constant 0 : i32
    return %c0_i32, %c0_i32_0 : i32, i32
  }
  func.func @transform_12(%arg0: i32) -> (i32, i32) {
    %c0_i32 = arith.constant 0 : i32
    %c0_i32_0 = arith.constant 0 : i32
    %c0_i32_1 = arith.constant 0 : i32
    return %c0_i32, %c0_i32_0 : i32, i32
  }
  func.func @transform_13(%arg0: i32) -> (i32, i32) {
    %c0_i32 = arith.constant 0 : i32
    %c0_i32_0 = arith.constant 0 : i32
    %c0_i32_1 = arith.constant 0 : i32
    return %c0_i32, %c0_i32_0 : i32, i32
  }
  func.func @transform_14(%arg0: i32) -> (i32, i32) {
    %c0_i32 = arith.constant 0 : i32
    %c0_i32_0 = arith.constant 0 : i32
    %c0_i32_1 = arith.constant 0 : i32
    return %c0_i32, %c0_i32_0 : i32, i32
  }
  func.func @transform_15(%arg0: i32) -> (i32, i32) {
    %c0_i32 = arith.constant 0 : i32
    %c0_i32_0 = arith.constant 0 : i32
    %c0_i32_1 = arith.constant 0 : i32
    return %c0_i32, %c0_i32_0 : i32, i32
  }
}

module attributes {stable_mosaic.version = 11 : i64} {
  func.func @_mm_kernel(%arg0: i32, %arg1: i32, %arg2: i32, %arg3: memref<16x16xbf16, #tpu.memory_space<vmem>>, %arg4: memref<16x16xbf16, #tpu.memory_space<vmem>>, %arg5: memref<1x16xf32, #tpu.memory_space<vmem>>, %arg6: memref<16x16xbf16, #tpu.memory_space<vmem>>, %arg7: memref<16x16xf32, #tpu.memory_space<vmem>>) attributes {dimension_semantics = [#tpu.dimension_semantics<parallel>, #tpu.dimension_semantics<parallel>, #tpu.dimension_semantics<arbitrary>], iteration_bounds = array<i64: 1, 1, 1>, scalar_prefetch = 0 : i64, scratch_operands = 1 : i64, tpu.core_type = #tpu.core_type<tc>, window_params = [{transform_indices = @transform_0, window_bounds = array<i64: 16, 16>}, {transform_indices = @transform_1, window_bounds = array<i64: 16, 16>}, {transform_indices = @transform_2, window_bounds = array<i64: 1, 16>}, {transform_indices = @transform_3, window_bounds = array<i64: 16, 16>}]} {
    %c0_i32 = arith.constant 0 : i32
    %0 = arith.cmpi eq, %arg2, %c0_i32 : i32
    %1 = arith.extui %0 : i1 to i32
    %c0_i32_0 = arith.constant 0 : i32
    %2 = arith.cmpi ne, %1, %c0_i32_0 : i32
    scf.if %2 {
      %cst_10 = arith.constant 0.000000e+00 : f32
      %12 = vector.broadcast %cst_10 : f32 to vector<16x16xf32>
      %c0_11 = arith.constant 0 : index
      %c0_12 = arith.constant 0 : index
      %13 = vector.load %arg7[%c0_11, %c0_12] : memref<16x16xf32, #tpu.memory_space<vmem>>, vector<16x16xf32>
      tpu.vector_store %arg7[%c0_11, %c0_12], %12 {strides = array<i32>} : memref<16x16xf32, #tpu.memory_space<vmem>>, vector<16x16xf32>,
    } else {
    }
    %c0 = arith.constant 0 : index
    %c0_1 = arith.constant 0 : index
    %3 = vector.load %arg7[%c0, %c0_1] : memref<16x16xf32, #tpu.memory_space<vmem>>, vector<16x16xf32>
    %c0_2 = arith.constant 0 : index
    %c0_3 = arith.constant 0 : index
    %4 = vector.load %arg3[%c0_2, %c0_3] : memref<16x16xbf16, #tpu.memory_space<vmem>>, vector<16x16xbf16>
    %c0_4 = arith.constant 0 : index
    %c0_5 = arith.constant 0 : index
    %5 = vector.load %arg4[%c0_4, %c0_5] : memref<16x16xbf16, #tpu.memory_space<vmem>>, vector<16x16xbf16>
    %cst = arith.constant dense<0.000000e+00> : vector<16x16xf32>
    %6 = tpu.matmul %4, %5, %cst {dimension_numbers = #tpu.dot_dimension_numbers<[1], [0], [0], [1], [0, 0, 1, 1], [], []>} : vector<16x16xbf16>, vector<16x16xbf16>, vector<16x16xf32> -> vector<16x16xf32>
    %7 = arith.addf %3, %6 : vector<16x16xf32>
    %c0_6 = arith.constant 0 : index
    %c0_7 = arith.constant 0 : index
    %8 = vector.load %arg7[%c0_6, %c0_7] : memref<16x16xf32, #tpu.memory_space<vmem>>, vector<16x16xf32>
    tpu.vector_store %arg7[%c0_6, %c0_7], %7 {strides = array<i32>} : memref<16x16xf32, #tpu.memory_space<vmem>>, vector<16x16xf32>,
    %c0_i32_8 = arith.constant 0 : i32
    %9 = arith.cmpi eq, %arg2, %c0_i32_8 : i32
    %10 = arith.extui %9 : i1 to i32
    %c0_i32_9 = arith.constant 0 : i32
    %11 = arith.cmpi ne, %10, %c0_i32_9 : i32
    scf.if %11 {
      %c0_10 = arith.constant 0 : index
      %c0_11 = arith.constant 0 : index
      %12 = vector.load %arg7[%c0_10, %c0_11] : memref<16x16xf32, #tpu.memory_space<vmem>>, vector<16x16xf32>
      %c0_12 = arith.constant 0 : index
      %c0_13 = arith.constant 0 : index
      %13 = vector.load %arg5[%c0_12, %c0_13] : memref<1x16xf32, #tpu.memory_space<vmem>>, vector<1x16xf32>
      %14 = vector.broadcast %13 : vector<1x16xf32> to vector<16x16xf32>
      %15 = arith.addf %12, %14 : vector<16x16xf32>
      %cst_14 = arith.constant 0.000000e+00 : f32
      %16 = vector.broadcast %cst_14 : f32 to vector<16x16xf32>
      %17 = arith.maximumf %15, %16 : vector<16x16xf32>
      %18 = arith.truncf %17 : vector<16x16xf32> to vector<16x16xbf16>
      %c0_15 = arith.constant 0 : index
      %c0_16 = arith.constant 0 : index
      %19 = vector.load %arg6[%c0_15, %c0_16] : memref<16x16xbf16, #tpu.memory_space<vmem>>, vector<16x16xbf16>
      tpu.vector_store %arg6[%c0_15, %c0_16], %18 {strides = array<i32>} : memref<16x16xbf16, #tpu.memory_space<vmem>>, vector<16x16xbf16>,
    } else {
    }
    return
  }
  func.func @transform_0(%arg0: i32, %arg1: i32, %arg2: i32) -> (i32, i32) {
    %c0_i32 = arith.constant 0 : i32
    return %arg0, %arg2 : i32, i32
  }
  func.func @transform_1(%arg0: i32, %arg1: i32, %arg2: i32) -> (i32, i32) {
    %c0_i32 = arith.constant 0 : i32
    return %arg2, %arg1 : i32, i32
  }
  func.func @transform_2(%arg0: i32, %arg1: i32, %arg2: i32) -> (i32, i32) {
    %c0_i32 = arith.constant 0 : i32
    %c0_i32_0 = arith.constant 0 : i32
    return %c0_i32, %arg1 : i32, i32
  }
  func.func @transform_3(%arg0: i32, %arg1: i32, %arg2: i32) -> (i32, i32) {
    %c0_i32 = arith.constant 0 : i32
    return %arg0, %arg1 : i32, i32
  }
}

module attributes {stable_mosaic.version = 11 : i64} {
  func.func @_mm_kernel(%arg0: i32, %arg1: i32, %arg2: i32, %arg3: memref<16x16xbf16, #tpu.memory_space<vmem>>, %arg4: memref<16x16xbf16, #tpu.memory_space<vmem>>, %arg5: memref<1x16xf32, #tpu.memory_space<vmem>>, %arg6: memref<16x16xbf16, #tpu.memory_space<vmem>>, %arg7: memref<16x16xf32, #tpu.memory_space<vmem>>) attributes {dimension_semantics = [#tpu.dimension_semantics<parallel>, #tpu.dimension_semantics<parallel>, #tpu.dimension_semantics<arbitrary>], iteration_bounds = array<i64: 1, 1, 1>, scalar_prefetch = 0 : i64, scratch_operands = 1 : i64, tpu.core_type = #tpu.core_type<tc>, window_params = [{transform_indices = @transform_0, window_bounds = array<i64: 16, 16>}, {transform_indices = @transform_1, window_bounds = array<i64: 16, 16>}, {transform_indices = @transform_2, window_bounds = array<i64: 1, 16>}, {transform_indices = @transform_3, window_bounds = array<i64: 16, 16>}]} {
    %c0_i32 = arith.constant 0 : i32
    %0 = arith.cmpi eq, %arg2, %c0_i32 : i32
    %1 = arith.extui %0 : i1 to i32
    %c0_i32_0 = arith.constant 0 : i32
    %2 = arith.cmpi ne, %1, %c0_i32_0 : i32
    scf.if %2 {
      %cst_10 = arith.constant 0.000000e+00 : f32
      %12 = vector.broadcast %cst_10 : f32 to vector<16x16xf32>
      %c0_11 = arith.constant 0 : index
      %c0_12 = arith.constant 0 : index
      %13 = vector.load %arg7[%c0_11, %c0_12] : memref<16x16xf32, #tpu.memory_space<vmem>>, vector<16x16xf32>
      tpu.vector_store %arg7[%c0_11, %c0_12], %12 {strides = array<i32>} : memref<16x16xf32, #tpu.memory_space<vmem>>, vector<16x16xf32>,
    } else {
    }
    %c0 = arith.constant 0 : index
    %c0_1 = arith.constant 0 : index
    %3 = vector.load %arg7[%c0, %c0_1] : memref<16x16xf32, #tpu.memory_space<vmem>>, vector<16x16xf32>
    %c0_2 = arith.constant 0 : index
    %c0_3 = arith.constant 0 : index
    %4 = vector.load %arg3[%c0_2, %c0_3] : memref<16x16xbf16, #tpu.memory_space<vmem>>, vector<16x16xbf16>
    %c0_4 = arith.constant 0 : index
    %c0_5 = arith.constant 0 : index
    %5 = vector.load %arg4[%c0_4, %c0_5] : memref<16x16xbf16, #tpu.memory_space<vmem>>, vector<16x16xbf16>
    %cst = arith.constant dense<0.000000e+00> : vector<16x16xf32>
    %6 = tpu.matmul %4, %5, %cst {dimension_numbers = #tpu.dot_dimension_numbers<[1], [0], [0], [1], [0, 0, 1, 1], [], []>} : vector<16x16xbf16>, vector<16x16xbf16>, vector<16x16xf32> -> vector<16x16xf32>
    %7 = arith.addf %3, %6 : vector<16x16xf32>
    %c0_6 = arith.constant 0 : index
    %c0_7 = arith.constant 0 : index
    %8 = vector.load %arg7[%c0_6, %c0_7] : memref<16x16xf32, #tpu.memory_space<vmem>>, vector<16x16xf32>
    tpu.vector_store %arg7[%c0_6, %c0_7], %7 {strides = array<i32>} : memref<16x16xf32, #tpu.memory_space<vmem>>, vector<16x16xf32>,
    %c0_i32_8 = arith.constant 0 : i32
    %9 = arith.cmpi eq, %arg2, %c0_i32_8 : i32
    %10 = arith.extui %9 : i1 to i32
    %c0_i32_9 = arith.constant 0 : i32
    %11 = arith.cmpi ne, %10, %c0_i32_9 : i32
    scf.if %11 {
      %c0_10 = arith.constant 0 : index
      %c0_11 = arith.constant 0 : index
      %12 = vector.load %arg7[%c0_10, %c0_11] : memref<16x16xf32, #tpu.memory_space<vmem>>, vector<16x16xf32>
      %c0_12 = arith.constant 0 : index
      %c0_13 = arith.constant 0 : index
      %13 = vector.load %arg5[%c0_12, %c0_13] : memref<1x16xf32, #tpu.memory_space<vmem>>, vector<1x16xf32>
      %14 = vector.broadcast %13 : vector<1x16xf32> to vector<16x16xf32>
      %15 = arith.addf %12, %14 : vector<16x16xf32>
      %16 = arith.truncf %15 : vector<16x16xf32> to vector<16x16xbf16>
      %c0_14 = arith.constant 0 : index
      %c0_15 = arith.constant 0 : index
      %17 = vector.load %arg6[%c0_14, %c0_15] : memref<16x16xbf16, #tpu.memory_space<vmem>>, vector<16x16xbf16>
      tpu.vector_store %arg6[%c0_14, %c0_15], %16 {strides = array<i32>} : memref<16x16xbf16, #tpu.memory_space<vmem>>, vector<16x16xbf16>,
    } else {
    }
    return
  }
  func.func @transform_0(%arg0: i32, %arg1: i32, %arg2: i32) -> (i32, i32) {
    %c0_i32 = arith.constant 0 : i32
    return %arg0, %arg2 : i32, i32
  }
  func.func @transform_1(%arg0: i32, %arg1: i32, %arg2: i32) -> (i32, i32) {
    %c0_i32 = arith.constant 0 : i32
    return %arg2, %arg1 : i32, i32
  }
  func.func @transform_2(%arg0: i32, %arg1: i32, %arg2: i32) -> (i32, i32) {
    %c0_i32 = arith.constant 0 : i32
    %c0_i32_0 = arith.constant 0 : i32
    return %c0_i32, %arg1 : i32, i32
  }
  func.func @transform_3(%arg0: i32, %arg1: i32, %arg2: i32) -> (i32, i32) {
    %c0_i32 = arith.constant 0 : i32
    return %arg0, %arg1 : i32, i32
  }
}

module attributes {stable_mosaic.version = 11 : i64} {
  func.func @_mm_kernel(%arg0: i32, %arg1: i32, %arg2: i32, %arg3: memref<16x64xbf16, #tpu.memory_space<vmem>>, %arg4: memref<64x32xbf16, #tpu.memory_space<vmem>>, %arg5: memref<1x32xf32, #tpu.memory_space<vmem>>, %arg6: memref<16x32xbf16, #tpu.memory_space<vmem>>, %arg7: memref<16x32xf32, #tpu.memory_space<vmem>>) attributes {dimension_semantics = [#tpu.dimension_semantics<parallel>, #tpu.dimension_semantics<parallel>, #tpu.dimension_semantics<arbitrary>], iteration_bounds = array<i64: 1, 1, 1>, scalar_prefetch = 0 : i64, scratch_operands = 1 : i64, tpu.core_type = #tpu.core_type<tc>, window_params = [{transform_indices = @transform_0, window_bounds = array<i64: 16, 64>}, {transform_indices = @transform_1, window_bounds = array<i64: 64, 32>}, {transform_indices = @transform_2, window_bounds = array<i64: 1, 32>}, {transform_indices = @transform_3, window_bounds = array<i64: 16, 32>}]} {
    %c0_i32 = arith.constant 0 : i32
    %0 = arith.cmpi eq, %arg2, %c0_i32 : i32
    %1 = arith.extui %0 : i1 to i32
    %c0_i32_0 = arith.constant 0 : i32
    %2 = arith.cmpi ne, %1, %c0_i32_0 : i32
    scf.if %2 {
      %cst_10 = arith.constant 0.000000e+00 : f32
      %12 = vector.broadcast %cst_10 : f32 to vector<16x32xf32>
      %c0_11 = arith.constant 0 : index
      %c0_12 = arith.constant 0 : index
      %13 = vector.load %arg7[%c0_11, %c0_12] : memref<16x32xf32, #tpu.memory_space<vmem>>, vector<16x32xf32>
      tpu.vector_store %arg7[%c0_11, %c0_12], %12 {strides = array<i32>} : memref<16x32xf32, #tpu.memory_space<vmem>>, vector<16x32xf32>,
    } else {
    }
    %c0 = arith.constant 0 : index
    %c0_1 = arith.constant 0 : index
    %3 = vector.load %arg7[%c0, %c0_1] : memref<16x32xf32, #tpu.memory_space<vmem>>, vector<16x32xf32>
    %c0_2 = arith.constant 0 : index
    %c0_3 = arith.constant 0 : index
    %4 = vector.load %arg3[%c0_2, %c0_3] : memref<16x64xbf16, #tpu.memory_space<vmem>>, vector<16x64xbf16>
    %c0_4 = arith.constant 0 : index
    %c0_5 = arith.constant 0 : index
    %5 = vector.load %arg4[%c0_4, %c0_5] : memref<64x32xbf16, #tpu.memory_space<vmem>>, vector<64x32xbf16>
    %cst = arith.constant dense<0.000000e+00> : vector<16x32xf32>
    %6 = tpu.matmul %4, %5, %cst {dimension_numbers = #tpu.dot_dimension_numbers<[1], [0], [0], [1], [0, 0, 1, 1], [], []>} : vector<16x64xbf16>, vector<64x32xbf16>, vector<16x32xf32> -> vector<16x32xf32>
    %7 = arith.addf %3, %6 : vector<16x32xf32>
    %c0_6 = arith.constant 0 : index
    %c0_7 = arith.constant 0 : index
    %8 = vector.load %arg7[%c0_6, %c0_7] : memref<16x32xf32, #tpu.memory_space<vmem>>, vector<16x32xf32>
    tpu.vector_store %arg7[%c0_6, %c0_7], %7 {strides = array<i32>} : memref<16x32xf32, #tpu.memory_space<vmem>>, vector<16x32xf32>,
    %c0_i32_8 = arith.constant 0 : i32
    %9 = arith.cmpi eq, %arg2, %c0_i32_8 : i32
    %10 = arith.extui %9 : i1 to i32
    %c0_i32_9 = arith.constant 0 : i32
    %11 = arith.cmpi ne, %10, %c0_i32_9 : i32
    scf.if %11 {
      %c0_10 = arith.constant 0 : index
      %c0_11 = arith.constant 0 : index
      %12 = vector.load %arg7[%c0_10, %c0_11] : memref<16x32xf32, #tpu.memory_space<vmem>>, vector<16x32xf32>
      %c0_12 = arith.constant 0 : index
      %c0_13 = arith.constant 0 : index
      %13 = vector.load %arg5[%c0_12, %c0_13] : memref<1x32xf32, #tpu.memory_space<vmem>>, vector<1x32xf32>
      %14 = vector.broadcast %13 : vector<1x32xf32> to vector<16x32xf32>
      %15 = arith.addf %12, %14 : vector<16x32xf32>
      %cst_14 = arith.constant 0.000000e+00 : f32
      %16 = vector.broadcast %cst_14 : f32 to vector<16x32xf32>
      %17 = arith.maximumf %15, %16 : vector<16x32xf32>
      %18 = arith.truncf %17 : vector<16x32xf32> to vector<16x32xbf16>
      %c0_15 = arith.constant 0 : index
      %c0_16 = arith.constant 0 : index
      %19 = vector.load %arg6[%c0_15, %c0_16] : memref<16x32xbf16, #tpu.memory_space<vmem>>, vector<16x32xbf16>
      tpu.vector_store %arg6[%c0_15, %c0_16], %18 {strides = array<i32>} : memref<16x32xbf16, #tpu.memory_space<vmem>>, vector<16x32xbf16>,
    } else {
    }
    return
  }
  func.func @transform_0(%arg0: i32, %arg1: i32, %arg2: i32) -> (i32, i32) {
    %c0_i32 = arith.constant 0 : i32
    return %arg0, %arg2 : i32, i32
  }
  func.func @transform_1(%arg0: i32, %arg1: i32, %arg2: i32) -> (i32, i32) {
    %c0_i32 = arith.constant 0 : i32
    return %arg2, %arg1 : i32, i32
  }
  func.func @transform_2(%arg0: i32, %arg1: i32, %arg2: i32) -> (i32, i32) {
    %c0_i32 = arith.constant 0 : i32
    %c0_i32_0 = arith.constant 0 : i32
    return %c0_i32, %arg1 : i32, i32
  }
  func.func @transform_3(%arg0: i32, %arg1: i32, %arg2: i32) -> (i32, i32) {
    %c0_i32 = arith.constant 0 : i32
    return %arg0, %arg1 : i32, i32
  }
}

module attributes {stable_mosaic.version = 11 : i64} {
  func.func @_mlp_tail2_kernel(%arg0: i32, %arg1: memref<16x32xbf16, #tpu.memory_space<vmem>>, %arg2: memref<32x32xbf16, #tpu.memory_space<vmem>>, %arg3: memref<1x32xf32, #tpu.memory_space<vmem>>, %arg4: memref<32x32xbf16, #tpu.memory_space<vmem>>, %arg5: memref<1x32xf32, #tpu.memory_space<vmem>>, %arg6: memref<16x32xbf16, #tpu.memory_space<vmem>>) attributes {dimension_semantics = [#tpu.dimension_semantics<parallel>], iteration_bounds = array<i64: 1>, scalar_prefetch = 0 : i64, scratch_operands = 0 : i64, tpu.core_type = #tpu.core_type<tc>, window_params = [{transform_indices = @transform_0, window_bounds = array<i64: 16, 32>}, {pipeline_mode = #tpu.pipeline_mode<synchronous>, transform_indices = @transform_1, window_bounds = array<i64: 32, 32>}, {pipeline_mode = #tpu.pipeline_mode<synchronous>, transform_indices = @transform_2, window_bounds = array<i64: 1, 32>}, {pipeline_mode = #tpu.pipeline_mode<synchronous>, transform_indices = @transform_3, window_bounds = array<i64: 32, 32>}, {pipeline_mode = #tpu.pipeline_mode<synchronous>, transform_indices = @transform_4, window_bounds = array<i64: 1, 32>}, {transform_indices = @transform_5, window_bounds = array<i64: 16, 32>}]} {
    %c0 = arith.constant 0 : index
    %c0_0 = arith.constant 0 : index
    %0 = vector.load %arg1[%c0, %c0_0] : memref<16x32xbf16, #tpu.memory_space<vmem>>, vector<16x32xbf16>
    %c0_1 = arith.constant 0 : index
    %c0_2 = arith.constant 0 : index
    %1 = vector.load %arg2[%c0_1, %c0_2] : memref<32x32xbf16, #tpu.memory_space<vmem>>, vector<32x32xbf16>
    %cst = arith.constant dense<0.000000e+00> : vector<16x32xf32>
    %2 = tpu.matmul %0, %1, %cst {dimension_numbers = #tpu.dot_dimension_numbers<[1], [0], [0], [1], [0, 0, 1, 1], [], []>} : vector<16x32xbf16>, vector<32x32xbf16>, vector<16x32xf32> -> vector<16x32xf32>
    %c0_3 = arith.constant 0 : index
    %c0_4 = arith.constant 0 : index
    %3 = vector.load %arg3[%c0_3, %c0_4] : memref<1x32xf32, #tpu.memory_space<vmem>>, vector<1x32xf32>
    %4 = vector.broadcast %3 : vector<1x32xf32> to vector<16x32xf32>
    %5 = arith.addf %2, %4 : vector<16x32xf32>
    %cst_5 = arith.constant 0.000000e+00 : f32
    %6 = vector.broadcast %cst_5 : f32 to vector<16x32xf32>
    %7 = arith.maximumf %5, %6 : vector<16x32xf32>
    %8 = arith.truncf %7 : vector<16x32xf32> to vector<16x32xbf16>
    %c0_6 = arith.constant 0 : index
    %c0_7 = arith.constant 0 : index
    %9 = vector.load %arg4[%c0_6, %c0_7] : memref<32x32xbf16, #tpu.memory_space<vmem>>, vector<32x32xbf16>
    %cst_8 = arith.constant dense<0.000000e+00> : vector<16x32xf32>
    %10 = tpu.matmul %8, %9, %cst_8 {dimension_numbers = #tpu.dot_dimension_numbers<[1], [0], [0], [1], [0, 0, 1, 1], [], []>} : vector<16x32xbf16>, vector<32x32xbf16>, vector<16x32xf32> -> vector<16x32xf32>
    %c0_9 = arith.constant 0 : index
    %c0_10 = arith.constant 0 : index
    %11 = vector.load %arg5[%c0_9, %c0_10] : memref<1x32xf32, #tpu.memory_space<vmem>>, vector<1x32xf32>
    %12 = vector.broadcast %11 : vector<1x32xf32> to vector<16x32xf32>
    %13 = arith.addf %10, %12 : vector<16x32xf32>
    %14 = arith.truncf %13 : vector<16x32xf32> to vector<16x32xbf16>
    %c0_11 = arith.constant 0 : index
    %c0_12 = arith.constant 0 : index
    %15 = vector.load %arg6[%c0_11, %c0_12] : memref<16x32xbf16, #tpu.memory_space<vmem>>, vector<16x32xbf16>
    tpu.vector_store %arg6[%c0_11, %c0_12], %14 {strides = array<i32>} : memref<16x32xbf16, #tpu.memory_space<vmem>>, vector<16x32xbf16>,
    return
  }
  func.func @transform_0(%arg0: i32) -> (i32, i32) {
    %c0_i32 = arith.constant 0 : i32
    %c0_i32_0 = arith.constant 0 : i32
    return %arg0, %c0_i32 : i32, i32
  }
  func.func @transform_1(%arg0: i32) -> (i32, i32) {
    %c0_i32 = arith.constant 0 : i32
    %c0_i32_0 = arith.constant 0 : i32
    %c0_i32_1 = arith.constant 0 : i32
    return %c0_i32, %c0_i32_0 : i32, i32
  }
  func.func @transform_2(%arg0: i32) -> (i32, i32) {
    %c0_i32 = arith.constant 0 : i32
    %c0_i32_0 = arith.constant 0 : i32
    %c0_i32_1 = arith.constant 0 : i32
    return %c0_i32, %c0_i32_0 : i32, i32
  }
  func.func @transform_3(%arg0: i32) -> (i32, i32) {
    %c0_i32 = arith.constant 0 : i32
    %c0_i32_0 = arith.constant 0 : i32
    %c0_i32_1 = arith.constant 0 : i32
    return %c0_i32, %c0_i32_0 : i32, i32
  }
  func.func @transform_4(%arg0: i32) -> (i32, i32) {
    %c0_i32 = arith.constant 0 : i32
    %c0_i32_0 = arith.constant 0 : i32
    %c0_i32_1 = arith.constant 0 : i32
    return %c0_i32, %c0_i32_0 : i32, i32
  }
  func.func @transform_5(%arg0: i32) -> (i32, i32) {
    %c0_i32 = arith.constant 0 : i32
    %c0_i32_0 = arith.constant 0 : i32
    return %arg0, %c0_i32 : i32, i32
  }
}

module attributes {stable_mosaic.version = 11 : i64} {
  func.func @_agg_fd2_kernel(%arg0: i32, %arg1: memref<16x32xbf16, #tpu.memory_space<vmem>>, %arg2: memref<16x16xbf16, #tpu.memory_space<vmem>>, %arg3: memref<16x32xbf16, #tpu.memory_space<vmem>>, %arg4: memref<16x16xf32, #tpu.memory_space<vmem>>, %arg5: memref<32x32xbf16, #tpu.memory_space<vmem>>, %arg6: memref<16x32xbf16, #tpu.memory_space<vmem>>, %arg7: memref<32x32xbf16, #tpu.memory_space<vmem>>, %arg8: memref<1x32xf32, #tpu.memory_space<vmem>>, %arg9: memref<32x32xbf16, #tpu.memory_space<vmem>>, %arg10: memref<1x32xf32, #tpu.memory_space<vmem>>, %arg11: memref<32x32xbf16, #tpu.memory_space<vmem>>, %arg12: memref<1x32xf32, #tpu.memory_space<vmem>>, %arg13: memref<32x32xbf16, #tpu.memory_space<vmem>>, %arg14: memref<1x32xf32, #tpu.memory_space<vmem>>, %arg15: memref<32x32xbf16, #tpu.memory_space<vmem>>, %arg16: memref<1x32xf32, #tpu.memory_space<vmem>>, %arg17: memref<32x16xbf16, #tpu.memory_space<vmem>>, %arg18: memref<1x16xf32, #tpu.memory_space<vmem>>, %arg19: memref<1x1xf32, #tpu.memory_space<smem>>) attributes {dimension_semantics = [#tpu.dimension_semantics<arbitrary>], iteration_bounds = array<i64: 1>, scalar_prefetch = 0 : i64, scratch_operands = 0 : i64, tpu.core_type = #tpu.core_type<tc>, window_params = [{transform_indices = @transform_0, window_bounds = array<i64: 16, 32>}, {transform_indices = @transform_1, window_bounds = array<i64: 16, 16>}, {transform_indices = @transform_2, window_bounds = array<i64: 16, 32>}, {transform_indices = @transform_3, window_bounds = array<i64: 16, 16>}, {pipeline_mode = #tpu.pipeline_mode<synchronous>, transform_indices = @transform_4, window_bounds = array<i64: 32, 32>}, {pipeline_mode = #tpu.pipeline_mode<synchronous>, transform_indices = @transform_5, window_bounds = array<i64: 16, 32>}, {pipeline_mode = #tpu.pipeline_mode<synchronous>, transform_indices = @transform_6, window_bounds = array<i64: 32, 32>}, {pipeline_mode = #tpu.pipeline_mode<synchronous>, transform_indices = @transform_7, window_bounds = array<i64: 1, 32>}, {pipeline_mode = #tpu.pipeline_mode<synchronous>, transform_indices = @transform_8, window_bounds = array<i64: 32, 32>}, {pipeline_mode = #tpu.pipeline_mode<synchronous>, transform_indices = @transform_9, window_bounds = array<i64: 1, 32>}, {pipeline_mode = #tpu.pipeline_mode<synchronous>, transform_indices = @transform_10, window_bounds = array<i64: 32, 32>}, {pipeline_mode = #tpu.pipeline_mode<synchronous>, transform_indices = @transform_11, window_bounds = array<i64: 1, 32>}, {pipeline_mode = #tpu.pipeline_mode<synchronous>, transform_indices = @transform_12, window_bounds = array<i64: 32, 32>}, {pipeline_mode = #tpu.pipeline_mode<synchronous>, transform_indices = @transform_13, window_bounds = array<i64: 1, 32>}, {pipeline_mode = #tpu.pipeline_mode<synchronous>, transform_indices = @transform_14, window_bounds = array<i64: 32, 32>}, {pipeline_mode = #tpu.pipeline_mode<synchronous>, transform_indices = @transform_15, window_bounds = array<i64: 1, 32>}, {pipeline_mode = #tpu.pipeline_mode<synchronous>, transform_indices = @transform_16, window_bounds = array<i64: 32, 16>}, {pipeline_mode = #tpu.pipeline_mode<synchronous>, transform_indices = @transform_17, window_bounds = array<i64: 1, 16>}, {transform_indices = @transform_18, window_bounds = array<i64: 1, 1>}]} {
    %c0_i32 = arith.constant 0 : i32
    %0 = arith.cmpi eq, %arg0, %c0_i32 : i32
    %1 = arith.extui %0 : i1 to i32
    %c0_i32_0 = arith.constant 0 : i32
    %2 = arith.cmpi ne, %1, %c0_i32_0 : i32
    scf.if %2 {
      %cst_53 = arith.constant 0.000000e+00 : f32
      %c0_54 = arith.constant 0 : index
      %c0_55 = arith.constant 0 : index
      %66 = memref.load %arg19[%c0_54, %c0_55] : memref<1x1xf32, #tpu.memory_space<smem>>
      memref.store %cst_53, %arg19[%c0_54, %c0_55] : memref<1x1xf32, #tpu.memory_space<smem>>
    } else {
    }
    %c0 = arith.constant 0 : index
    %c0_1 = arith.constant 0 : index
    %3 = vector.load %arg1[%c0, %c0_1] : memref<16x32xbf16, #tpu.memory_space<vmem>>, vector<16x32xbf16>
    %c0_2 = arith.constant 0 : index
    %c0_3 = arith.constant 0 : index
    %4 = vector.load %arg5[%c0_2, %c0_3] : memref<32x32xbf16, #tpu.memory_space<vmem>>, vector<32x32xbf16>
    %cst = arith.constant dense<0.000000e+00> : vector<16x32xf32>
    %5 = tpu.matmul %3, %4, %cst {dimension_numbers = #tpu.dot_dimension_numbers<[1], [0], [0], [1], [0, 0, 1, 1], [], []>} : vector<16x32xbf16>, vector<32x32xbf16>, vector<16x32xf32> -> vector<16x32xf32>
    %c0_4 = arith.constant 0 : index
    %c0_5 = arith.constant 0 : index
    %6 = vector.load %arg2[%c0_4, %c0_5] : memref<16x16xbf16, #tpu.memory_space<vmem>>, vector<16x16xbf16>
    %c0_6 = arith.constant 0 : index
    %c0_7 = arith.constant 0 : index
    %7 = vector.load %arg6[%c0_6, %c0_7] : memref<16x32xbf16, #tpu.memory_space<vmem>>, vector<16x32xbf16>
    %cst_8 = arith.constant dense<0.000000e+00> : vector<16x32xf32>
    %8 = tpu.matmul %6, %7, %cst_8 {dimension_numbers = #tpu.dot_dimension_numbers<[1], [0], [0], [1], [0, 0, 1, 1], [], []>} : vector<16x16xbf16>, vector<16x32xbf16>, vector<16x32xf32> -> vector<16x32xf32>
    %9 = arith.addf %5, %8 : vector<16x32xf32>
    %c0_9 = arith.constant 0 : index
    %c0_10 = arith.constant 0 : index
    %10 = vector.load %arg3[%c0_9, %c0_10] : memref<16x32xbf16, #tpu.memory_space<vmem>>, vector<16x32xbf16>
    %c0_11 = arith.constant 0 : index
    %c0_12 = arith.constant 0 : index
    %11 = vector.load %arg7[%c0_11, %c0_12] : memref<32x32xbf16, #tpu.memory_space<vmem>>, vector<32x32xbf16>
    %cst_13 = arith.constant dense<0.000000e+00> : vector<16x32xf32>
    %12 = tpu.matmul %10, %11, %cst_13 {dimension_numbers = #tpu.dot_dimension_numbers<[1], [0], [0], [1], [0, 0, 1, 1], [], []>} : vector<16x32xbf16>, vector<32x32xbf16>, vector<16x32xf32> -> vector<16x32xf32>
    %13 = arith.addf %9, %12 : vector<16x32xf32>
    %c0_14 = arith.constant 0 : index
    %c0_15 = arith.constant 0 : index
    %14 = vector.load %arg8[%c0_14, %c0_15] : memref<1x32xf32, #tpu.memory_space<vmem>>, vector<1x32xf32>
    %15 = vector.broadcast %14 : vector<1x32xf32> to vector<16x32xf32>
    %16 = arith.addf %13, %15 : vector<16x32xf32>
    %cst_16 = arith.constant 0.000000e+00 : f32
    %17 = vector.broadcast %cst_16 : f32 to vector<16x32xf32>
    %18 = arith.maximumf %16, %17 : vector<16x32xf32>
    %19 = arith.truncf %18 : vector<16x32xf32> to vector<16x32xbf16>
    %c0_17 = arith.constant 0 : index
    %c0_18 = arith.constant 0 : index
    %20 = vector.load %arg9[%c0_17, %c0_18] : memref<32x32xbf16, #tpu.memory_space<vmem>>, vector<32x32xbf16>
    %cst_19 = arith.constant dense<0.000000e+00> : vector<16x32xf32>
    %21 = tpu.matmul %19, %20, %cst_19 {dimension_numbers = #tpu.dot_dimension_numbers<[1], [0], [0], [1], [0, 0, 1, 1], [], []>} : vector<16x32xbf16>, vector<32x32xbf16>, vector<16x32xf32> -> vector<16x32xf32>
    %c0_20 = arith.constant 0 : index
    %c0_21 = arith.constant 0 : index
    %22 = vector.load %arg10[%c0_20, %c0_21] : memref<1x32xf32, #tpu.memory_space<vmem>>, vector<1x32xf32>
    %23 = vector.broadcast %22 : vector<1x32xf32> to vector<16x32xf32>
    %24 = arith.addf %21, %23 : vector<16x32xf32>
    %cst_22 = arith.constant 0.000000e+00 : f32
    %25 = vector.broadcast %cst_22 : f32 to vector<16x32xf32>
    %26 = arith.maximumf %24, %25 : vector<16x32xf32>
    %27 = arith.truncf %26 : vector<16x32xf32> to vector<16x32xbf16>
    %c0_23 = arith.constant 0 : index
    %c0_24 = arith.constant 0 : index
    %28 = vector.load %arg11[%c0_23, %c0_24] : memref<32x32xbf16, #tpu.memory_space<vmem>>, vector<32x32xbf16>
    %cst_25 = arith.constant dense<0.000000e+00> : vector<16x32xf32>
    %29 = tpu.matmul %27, %28, %cst_25 {dimension_numbers = #tpu.dot_dimension_numbers<[1], [0], [0], [1], [0, 0, 1, 1], [], []>} : vector<16x32xbf16>, vector<32x32xbf16>, vector<16x32xf32> -> vector<16x32xf32>
    %c0_26 = arith.constant 0 : index
    %c0_27 = arith.constant 0 : index
    %30 = vector.load %arg12[%c0_26, %c0_27] : memref<1x32xf32, #tpu.memory_space<vmem>>, vector<1x32xf32>
    %31 = vector.broadcast %30 : vector<1x32xf32> to vector<16x32xf32>
    %32 = arith.addf %29, %31 : vector<16x32xf32>
    %33 = arith.truncf %32 : vector<16x32xf32> to vector<16x32xbf16>
    %c0_28 = arith.constant 0 : index
    %c0_29 = arith.constant 0 : index
    %34 = vector.load %arg13[%c0_28, %c0_29] : memref<32x32xbf16, #tpu.memory_space<vmem>>, vector<32x32xbf16>
    %c0_30 = arith.constant 0 : index
    %c0_31 = arith.constant 0 : index
    %35 = vector.load %arg14[%c0_30, %c0_31] : memref<1x32xf32, #tpu.memory_space<vmem>>, vector<1x32xf32>
    %c0_32 = arith.constant 0 : index
    %c0_33 = arith.constant 0 : index
    %36 = vector.load %arg15[%c0_32, %c0_33] : memref<32x32xbf16, #tpu.memory_space<vmem>>, vector<32x32xbf16>
    %c0_34 = arith.constant 0 : index
    %c0_35 = arith.constant 0 : index
    %37 = vector.load %arg16[%c0_34, %c0_35] : memref<1x32xf32, #tpu.memory_space<vmem>>, vector<1x32xf32>
    %c0_36 = arith.constant 0 : index
    %c0_37 = arith.constant 0 : index
    %38 = vector.load %arg17[%c0_36, %c0_37] : memref<32x16xbf16, #tpu.memory_space<vmem>>, vector<32x16xbf16>
    %c0_38 = arith.constant 0 : index
    %c0_39 = arith.constant 0 : index
    %39 = vector.load %arg18[%c0_38, %c0_39] : memref<1x16xf32, #tpu.memory_space<vmem>>, vector<1x16xf32>
    %cst_40 = arith.constant dense<0.000000e+00> : vector<16x32xf32>
    %40 = tpu.matmul %33, %34, %cst_40 {dimension_numbers = #tpu.dot_dimension_numbers<[1], [0], [0], [1], [0, 0, 1, 1], [], []>} : vector<16x32xbf16>, vector<32x32xbf16>, vector<16x32xf32> -> vector<16x32xf32>
    %41 = vector.broadcast %35 : vector<1x32xf32> to vector<16x32xf32>
    %42 = arith.addf %40, %41 : vector<16x32xf32>
    %cst_41 = arith.constant 0.000000e+00 : f32
    %43 = vector.broadcast %cst_41 : f32 to vector<16x32xf32>
    %44 = arith.maximumf %42, %43 : vector<16x32xf32>
    %45 = arith.truncf %44 : vector<16x32xf32> to vector<16x32xbf16>
    %cst_42 = arith.constant dense<0.000000e+00> : vector<16x32xf32>
    %46 = tpu.matmul %45, %36, %cst_42 {dimension_numbers = #tpu.dot_dimension_numbers<[1], [0], [0], [1], [0, 0, 1, 1], [], []>} : vector<16x32xbf16>, vector<32x32xbf16>, vector<16x32xf32> -> vector<16x32xf32>
    %47 = vector.broadcast %37 : vector<1x32xf32> to vector<16x32xf32>
    %48 = arith.addf %46, %47 : vector<16x32xf32>
    %cst_43 = arith.constant 0.000000e+00 : f32
    %49 = vector.broadcast %cst_43 : f32 to vector<16x32xf32>
    %50 = arith.maximumf %48, %49 : vector<16x32xf32>
    %51 = arith.truncf %50 : vector<16x32xf32> to vector<16x32xbf16>
    %cst_44 = arith.constant dense<0.000000e+00> : vector<16x16xf32>
    %52 = tpu.matmul %51, %38, %cst_44 {dimension_numbers = #tpu.dot_dimension_numbers<[1], [0], [0], [1], [0, 0, 1, 1], [], []>} : vector<16x32xbf16>, vector<32x16xbf16>, vector<16x16xf32> -> vector<16x16xf32>
    %53 = vector.broadcast %39 : vector<1x16xf32> to vector<16x16xf32>
    %54 = arith.addf %52, %53 : vector<16x16xf32>
    %c0_45 = arith.constant 0 : index
    %c0_46 = arith.constant 0 : index
    %55 = vector.load %arg4[%c0_45, %c0_46] : memref<16x16xf32, #tpu.memory_space<vmem>>, vector<16x16xf32>
    %56 = arith.subf %54, %55 : vector<16x16xf32>
    %c0_47 = arith.constant 0 : index
    %c0_48 = arith.constant 0 : index
    %57 = memref.load %arg19[%c0_47, %c0_48] : memref<1x1xf32, #tpu.memory_space<smem>>
    %58 = arith.mulf %56, %56 : vector<16x16xf32>
    %59 = vector.shape_cast %58 : vector<16x16xf32> to vector<1x16x16xf32>
    %cst_49 = arith.constant dense<0.000000e+00> : vector<1xf32>
    %60 = vector.multi_reduction <add>, %59, %cst_49 [1, 2] : vector<1x16x16xf32> to vector<1xf32>
    %61 = vector.shape_cast %60 : vector<1xf32> to vector<1x1x1xf32>
    %62 = vector.extract %61[0, 0, 0] : f32 from vector<1x1x1xf32>
    %cst_50 = arith.constant 3.906250e-03 : f32
    %63 = arith.mulf %62, %cst_50 : f32
    %64 = arith.addf %57, %63 : f32
    %c0_51 = arith.constant 0 : index
    %c0_52 = arith.constant 0 : index
    %65 = memref.load %arg19[%c0_51, %c0_52] : memref<1x1xf32, #tpu.memory_space<smem>>
    memref.store %64, %arg19[%c0_51, %c0_52] : memref<1x1xf32, #tpu.memory_space<smem>>
    return
  }
  func.func @transform_0(%arg0: i32) -> (i32, i32) {
    %c0_i32 = arith.constant 0 : i32
    %c0_i32_0 = arith.constant 0 : i32
    return %arg0, %c0_i32 : i32, i32
  }
  func.func @transform_1(%arg0: i32) -> (i32, i32) {
    %c0_i32 = arith.constant 0 : i32
    %c0_i32_0 = arith.constant 0 : i32
    return %arg0, %c0_i32 : i32, i32
  }
  func.func @transform_2(%arg0: i32) -> (i32, i32) {
    %c0_i32 = arith.constant 0 : i32
    %c0_i32_0 = arith.constant 0 : i32
    return %arg0, %c0_i32 : i32, i32
  }
  func.func @transform_3(%arg0: i32) -> (i32, i32) {
    %c0_i32 = arith.constant 0 : i32
    %c0_i32_0 = arith.constant 0 : i32
    return %arg0, %c0_i32 : i32, i32
  }
  func.func @transform_4(%arg0: i32) -> (i32, i32) {
    %c0_i32 = arith.constant 0 : i32
    %c0_i32_0 = arith.constant 0 : i32
    %c0_i32_1 = arith.constant 0 : i32
    return %c0_i32, %c0_i32_0 : i32, i32
  }
  func.func @transform_5(%arg0: i32) -> (i32, i32) {
    %c0_i32 = arith.constant 0 : i32
    %c0_i32_0 = arith.constant 0 : i32
    %c0_i32_1 = arith.constant 0 : i32
    return %c0_i32, %c0_i32_0 : i32, i32
  }
  func.func @transform_6(%arg0: i32) -> (i32, i32) {
    %c0_i32 = arith.constant 0 : i32
    %c0_i32_0 = arith.constant 0 : i32
    %c0_i32_1 = arith.constant 0 : i32
    return %c0_i32, %c0_i32_0 : i32, i32
  }
  func.func @transform_7(%arg0: i32) -> (i32, i32) {
    %c0_i32 = arith.constant 0 : i32
    %c0_i32_0 = arith.constant 0 : i32
    %c0_i32_1 = arith.constant 0 : i32
    return %c0_i32, %c0_i32_0 : i32, i32
  }
  func.func @transform_8(%arg0: i32) -> (i32, i32) {
    %c0_i32 = arith.constant 0 : i32
    %c0_i32_0 = arith.constant 0 : i32
    %c0_i32_1 = arith.constant 0 : i32
    return %c0_i32, %c0_i32_0 : i32, i32
  }
  func.func @transform_9(%arg0: i32) -> (i32, i32) {
    %c0_i32 = arith.constant 0 : i32
    %c0_i32_0 = arith.constant 0 : i32
    %c0_i32_1 = arith.constant 0 : i32
    return %c0_i32, %c0_i32_0 : i32, i32
  }
  func.func @transform_10(%arg0: i32) -> (i32, i32) {
    %c0_i32 = arith.constant 0 : i32
    %c0_i32_0 = arith.constant 0 : i32
    %c0_i32_1 = arith.constant 0 : i32
    return %c0_i32, %c0_i32_0 : i32, i32
  }
  func.func @transform_11(%arg0: i32) -> (i32, i32) {
    %c0_i32 = arith.constant 0 : i32
    %c0_i32_0 = arith.constant 0 : i32
    %c0_i32_1 = arith.constant 0 : i32
    return %c0_i32, %c0_i32_0 : i32, i32
  }
  func.func @transform_12(%arg0: i32) -> (i32, i32) {
    %c0_i32 = arith.constant 0 : i32
    %c0_i32_0 = arith.constant 0 : i32
    %c0_i32_1 = arith.constant 0 : i32
    return %c0_i32, %c0_i32_0 : i32, i32
  }
  func.func @transform_13(%arg0: i32) -> (i32, i32) {
    %c0_i32 = arith.constant 0 : i32
    %c0_i32_0 = arith.constant 0 : i32
    %c0_i32_1 = arith.constant 0 : i32
    return %c0_i32, %c0_i32_0 : i32, i32
  }
  func.func @transform_14(%arg0: i32) -> (i32, i32) {
    %c0_i32 = arith.constant 0 : i32
    %c0_i32_0 = arith.constant 0 : i32
    %c0_i32_1 = arith.constant 0 : i32
    return %c0_i32, %c0_i32_0 : i32, i32
  }
  func.func @transform_15(%arg0: i32) -> (i32, i32) {
    %c0_i32 = arith.constant 0 : i32
    %c0_i32_0 = arith.constant 0 : i32
    %c0_i32_1 = arith.constant 0 : i32
    return %c0_i32, %c0_i32_0 : i32, i32
  }
  func.func @transform_16(%arg0: i32) -> (i32, i32) {
    %c0_i32 = arith.constant 0 : i32
    %c0_i32_0 = arith.constant 0 : i32
    %c0_i32_1 = arith.constant 0 : i32
    return %c0_i32, %c0_i32_0 : i32, i32
  }
  func.func @transform_17(%arg0: i32) -> (i32, i32) {
    %c0_i32 = arith.constant 0 : i32
    %c0_i32_0 = arith.constant 0 : i32
    %c0_i32_1 = arith.constant 0 : i32
    return %c0_i32, %c0_i32_0 : i32, i32
  }
  func.func @transform_18(%arg0: i32) -> (i32, i32) {
    %c0_i32 = arith.constant 0 : i32
    %c0_i32_0 = arith.constant 0 : i32
    %c0_i32_1 = arith.constant 0 : i32
    return %c0_i32, %c0_i32_0 : i32, i32
  }
}

</mosaic_0001>

<llo_original>
// kernel: dgi_forward.12
$region0: #{dgi_forward.12}
  #allocation0 [shape = 'u32[]', space=smem, size = 0x4, offset = 0x4, fixed_abs, tag = 'smem constant byte address 0x4 - core index']
  #allocation1 [shape = 'u32[144,128]{1,0:T(1,128)}', space=vmem, size = 0x12000, scoped, tag = 'internal scratch']
  #allocation2 [shape = 'f32[32,32]{1,0:T(8,128)}', space=vmem, size = 0x4000, scoped, tag = 'scratch operand']
  %s0 = inlined_call_operand.vmem [shape: bf16[32,16], index: 0, kind: input, shape index: {}]
  %s1 = inlined_call_operand.vmem [shape: bf16[16,32], index: 1, kind: input, shape index: {}]
  %s2 = inlined_call_operand.vmem [shape: f32[1,32], index: 2, kind: input, shape index: {}]
  %s3 = inlined_call_operand.vmem [shape: bf16[32,32], index: 3, kind: output, shape index: {}]
  %s4 = sld [smem:[#allocation0]]
  $region30: #{dgi_forward.12} parent=0
    _
  %s6 = ssub.s32 1, %s4
  %s7 = scalar_select 0, %s6, %s4
  // Predicated region
  $region2: #{dgi_forward.12} parent=0 // pred_check
    _
  $region3: #{dgi_forward.12} parent=0 // pred_check_branch
    %9 = sbr.rel (0) target = $region5
  $region4: #{dgi_forward.12} parent=0 // pred_region
    _
  $region5: #{dgi_forward.12} parent=0 // pred_fallthru
    _
  // Predicated region
  $region6: #{dgi_forward.12} parent=0 // pred_check
    _
  $region7: #{dgi_forward.12} parent=0 // pred_check_branch
    %11 = sbr.rel (0) target = $region9
  $region8: #{dgi_forward.12} parent=0 // pred_region
    _
  $region9: #{dgi_forward.12} parent=0 // pred_fallthru
    _
  // Predicated region
  $region10: #{dgi_forward.12} parent=0 // pred_check
    _
  $region11: #{dgi_forward.12} parent=0 // pred_check_branch
    %13 = sbr.rel (0) target = $region13
  $region12: #{dgi_forward.12} parent=0 // pred_region
    _
  $region13: #{dgi_forward.12} parent=0 // pred_fallthru
    _
  %p15 = scmp.eq.s32.totalorder 0, 0
  // Predicated region
  $region14: #{dgi_forward.12} parent=0 // pred_check
    %p16 = pneg %p15
  $region15: #{dgi_forward.12} parent=0 // pred_check_branch
    %18 = sbr.rel (%p16) target = $region17
  $region16: #{dgi_forward.12} parent=0 // pred_region
    %vm19 = vcmask 261120
    %20 = vst.msk [vmem:[#allocation2] sm:$0xff] %vm19, 0.0
    %21 = vst.msk [vmem:[#allocation2 + $0x8] sm:$0xff] %vm19, 0.0
    %22 = vst.msk [vmem:[#allocation2 + $0x10] sm:$0xff] %vm19, 0.0
    %23 = vst.msk [vmem:[#allocation2 + $0x18] sm:$0xff] %vm19, 0.0
  $region17: #{dgi_forward.12} parent=0 // pred_fallthru
    _
  %v24 = vld [vmem:[#allocation2] sm:$0xff]
  %v25 = vld [vmem:[#allocation2 + $0x8] sm:$0xff]
  %v26 = vld [vmem:[#allocation2 + $0x10] sm:$0xff]
  %v27 = vld [vmem:[#allocation2 + $0x18] sm:$0xff]
  %v28 = vld [vmem:[%s0] sm:$0xf]
  %v29 = vld [vmem:[%s0 + $0x4] sm:$0xf]
  %v30 = vld [vmem:[%s0 + $0x8] sm:$0xf]
  %v31 = vld [vmem:[%s0 + $0xc] sm:$0xf]
  %v32 = vld [vmem:[%s1] sm:$0xf]
  %v33 = vld [vmem:[%s1 + $0x4] sm:$0xf]
  %v38 = vunpack.c.l.b16 %v28
  %v39 = vunpack.c.l.b16 %v29
  %v40 = vunpack.c.l.b16 %v30
  %v41 = vunpack.c.l.b16 %v31
  %v42 = vpack.c.b16 %v39, %v38
  %v43 = vpack.c.b16 %v41, %v40
  %v46 = vunpack.c.l.b16 %v32
  %v47 = vunpack.c.l.b16 %v33
  %v48 = vpack.c.b16 %v47, %v46
  %vm50 = vcmask 130048
  %v52 = vsel %vm50, %v42, 0
  %v55 = vsel %vm50, %v43, 0
  %57 = vmatprep.subr.bf16.mxu0 0
  %58 = vmatpush1.bf16.msra.mxu0 %v48
  %59 = vmatprep.subr.bf16.mxu0 0
  %60 = vmatpush1.bf16.msra.mxu0 0
  %61 = vmatprep.subr.bf16.mxu0 0
  %62 = vmatpush1.bf16.msra.mxu0 0
  %63 = vmatprep.subr.bf16.mxu0 0
  %64 = vmatpush1.bf16.msra.mxu0 0
  %65 = vmatprep.subr.bf16.mxu0 0
  %66 = vmatpush1.bf16.msra.mxu0 0
  %67 = vmatprep.subr.bf16.mxu0 0
  %68 = vmatpush1.bf16.msra.mxu0 0
  %69 = vmatprep.subr.bf16.mxu0 0
  %70 = vmatpush1.bf16.msra.mxu0 0
  %71 = vmatprep.subr.bf16.mxu0 0
  %72 = vmatpush1.bf16.msra.mxu0 0
  %73 = vmatprep.subr.bf16.mxu0 0
  %74 = vmatpush1.bf16.msra.mxu0 0
  %75 = vmatprep.subr.bf16.mxu0 0
  %76 = vmatpush1.bf16.msra.mxu0 0
  %77 = vmatprep.subr.bf16.mxu0 0
  %78 = vmatpush1.bf16.msra.mxu0 0
  %79 = vmatprep.subr.bf16.mxu0 0
  %80 = vmatpush1.bf16.msra.mxu0 0
  %81 = vmatprep.subr.bf16.mxu0 0
  %82 = vmatpush1.bf16.msra.mxu0 0
  %83 = vmatprep.subr.bf16.mxu0 0
  %84 = vmatpush1.bf16.msra.mxu0 0
  %85 = vmatprep.subr.bf16.mxu0 0
  %86 = vmatpush1.bf16.msra.mxu0 0
  %87 = vmatprep.subr.bf16.mxu0 0
  %88 = vmatpush1.bf16.msra.mxu0 0
  %89 = vmatprep.mubr.bf16.mxu0 0
  %90 = vmatmul.mubr.bf16.gmra.mrb[0].mxu0 %v52
  %v91 = vpop.f32.mrb[0].mxu0
  %v92 = vadd.f32 0.0, %v91
  %v93 = vpop.f32.mrb[0].mxu0
  %v94 = vpop.f32.mrb[0].mxu0
  %v95 = vadd.f32 0.0, %v94
  %v96 = vpop.f32.mrb[0].mxu0
  %97 = vmatprep.mubr.bf16.mxu0 0
  %98 = vmatmul.mubr.bf16.gmra.mrb[0].mxu0 %v55
  %v99 = vpop.f32.mrb[0].mxu0
  %v100 = vadd.f32 0.0, %v99
  %v101 = vpop.f32.mrb[0].mxu0
  %v102 = vpop.f32.mrb[0].mxu0
  %v103 = vadd.f32 0.0, %v102
  %v104 = vpop.f32.mrb[0].mxu0
  %105 = vdwg.mxu0
  %v106 = vadd.f32 %v24, %v92
  %v107 = vadd.f32 %v25, %v95
  %v108 = vadd.f32 %v26, %v100
  %v109 = vadd.f32 %v27, %v103
  %vm110 = vcmask 261120
  %111 = vst.msk [vmem:[#allocation2] sm:$0xff] %vm110, %v106
  %112 = vst.msk [vmem:[#allocation2 + $0x8] sm:$0xff] %vm110, %v107
  %113 = vst.msk [vmem:[#allocation2 + $0x10] sm:$0xff] %vm110, %v108
  %114 = vst.msk [vmem:[#allocation2 + $0x18] sm:$0xff] %vm110, %v109
  // Predicated region
  $region18: #{dgi_forward.12} parent=0 // pred_check
    %p115 = pneg %p15
  $region19: #{dgi_forward.12} parent=0 // pred_check_branch
    %117 = sbr.rel (%p115) target = $region21
  $region20: #{dgi_forward.12} parent=0 // pred_region
    %v118 = vld [vmem:[#allocation2] sm:$0xff]
    %v119 = vld [vmem:[#allocation2 + $0x8] sm:$0xff]
    %v120 = vld [vmem:[#allocation2 + $0x10] sm:$0xff]
    %v121 = vld [vmem:[#allocation2 + $0x18] sm:$0xff]
    %v122 = vld [vmem:[%s2] sm:$0x1]
    %v124 = vlaneseq
    %v125 = vshrl.u32 %v124, 7
    %v126 = vsub.s32 0, %v125
    %v127 = vrot.slane %v122, %v126
    %v129 = vadd.f32 %v118, %v127
    %v130 = vadd.f32 %v119, %v127
    %v131 = vadd.f32 %v120, %v127
    %v132 = vadd.f32 %v121, %v127
    %v133 = vtanh.pop %v129
    %v134 = vtanh.pop %v130
    %v135 = vtanh.pop %v131
    %v136 = vtanh.pop %v132
    %v137 = vpack.c.bf16 %v134, %v133
    %v138 = vpack.c.bf16 %v136, %v135
    %v141 = vunpack.c.l.b16 %v137
    %v142 = vunpack.c.h.b16 %v137
    %v143 = vunpack.c.l.b16 %v138
    %v144 = vunpack.c.h.b16 %v138
    %v145 = vpack.c.b16 %v141, %v141
    %v146 = vpack.c.b16 %v142, %v142
    %v147 = vpack.c.b16 %v143, %v143
    %v148 = vpack.c.b16 %v144, %v144
    %vm153 = vcmask 257024
    %154 = vst.msk [vmem:[%s3] sm:$0xf] %vm153, %v145
    %155 = vst.msk [vmem:[%s3 + $0x4] sm:$0xf] %vm153, %v146
    %156 = vst.msk [vmem:[%s3 + $0x8] sm:$0xf] %vm153, %v147
    %157 = vst.msk [vmem:[%s3 + $0xc] sm:$0xf] %vm153, %v148
  $region21: #{dgi_forward.12} parent=0 // pred_fallthru
    _
  // Predicated region
  $region22: #{dgi_forward.12} parent=0 // pred_check
    _
  $region23: #{dgi_forward.12} parent=0 // pred_check_branch
    %159 = sbr.rel (0) target = $region25
  $region24: #{dgi_forward.12} parent=0 // pred_region
    _
  $region25: #{dgi_forward.12} parent=0 // pred_fallthru
    _
  // Predicated region
  $region26: #{dgi_forward.12} parent=0 // pred_check
    _
  $region27: #{dgi_forward.12} parent=0 // pred_check_branch
    %161 = sbr.rel (0) target = $region29
  $region28: #{dgi_forward.12} parent=0 // pred_region
    _
  $region29: #{dgi_forward.12} parent=0 // pred_fallthru
    _

// kernel: dgi_forward.13
$region0: #{dgi_forward.13}
  #allocation0 [shape = 'u32[]', space=smem, size = 0x4, offset = 0x4, fixed_abs, tag = 'smem constant byte address 0x4 - core index']
  #allocation1 [shape = 'u32[144,128]{1,0:T(1,128)}', space=vmem, size = 0x12000, scoped, tag = 'internal scratch']
  %s0 = inlined_call_operand.vmem [shape: bf16[32,32], index: 0, kind: input, shape index: {}]
  %s1 = inlined_call_operand.vmem [shape: f32[1,32], index: 1, kind: output, shape index: {}]
  %s2 = sld [smem:[#allocation0]]
  $region22: #{dgi_forward.13} parent=0
    _
  %s4 = ssub.s32 1, %s2
  %s5 = scalar_select 0, %s4, %s2
  // Predicated region
  $region2: #{dgi_forward.13} parent=0 // pred_check
    _
  $region3: #{dgi_forward.13} parent=0 // pred_check_branch
    %7 = sbr.rel (0) target = $region5
  $region4: #{dgi_forward.13} parent=0 // pred_region
    _
  $region5: #{dgi_forward.13} parent=0 // pred_fallthru
    _
  %p8 = scmp.eq.s32.totalorder 0, 0
  // Predicated region
  $region6: #{dgi_forward.13} parent=0 // pred_check
    %p9 = pneg %p8
  $region7: #{dgi_forward.13} parent=0 // pred_check_branch
    %11 = sbr.rel (%p9) target = $region9
  $region8: #{dgi_forward.13} parent=0 // pred_region
    %vm12 = vcmask 253952
    %13 = vst.msk [vmem:[%s1] sm:$0x1] %vm12, 0.0
  $region9: #{dgi_forward.13} parent=0 // pred_fallthru
    _
  %v14 = vld [vmem:[%s1] sm:$0x1]
  %v15 = vld [vmem:[%s0] sm:$0xf]
  %v16 = vld [vmem:[%s0 + $0x4] sm:$0xf]
  %v17 = vunpack.c.l.bf16 %v15
  %v18 = vunpack.c.l.bf16 %v16
  %vm19 = vcmask 261120
  %v20 = vsel %vm19, %v17, 0.0
  %v21 = vsel %vm19, %v18, 0.0
  %v22 = vadd.f32 %v20, %v21
  %v23 = vrot.slane %v22, 4
  %v24 = vadd.f32 %v22, %v23
  %v25 = vrot.slane %v24, 2
  %v26 = vadd.f32 %v24, %v25
  %v27 = vrot.slane %v26, 1
  %v28 = vadd.f32 %v26, %v27
  %v29 = vmul.f32 %v28, 0.0625
  %v30 = vadd.f32 %v14, %v29
  %vm31 = vcmask 253952
  %32 = vst.msk [vmem:[%s1] sm:$0x1] %vm31, %v30
  // Predicated region
  $region10: #{dgi_forward.13} parent=0 // pred_check
    %p33 = pneg %p8
  $region11: #{dgi_forward.13} parent=0 // pred_check_branch
    %35 = sbr.rel (%p33) target = $region13
  $region12: #{dgi_forward.13} parent=0 // pred_region
    %v36 = vld [vmem:[%s1] sm:$0x1]
    %v37 = vxor.u32 %v36, 2147483648
    %v38 = vmul.f32 %v37, 1.442695
    %v39 = vpow.pop %v38
    %v40 = vadd.f32 %v39, 1.0
    %v41 = vrcp.pop %v40
    %v42 = vmul.f32 1.0, %v41
    %43 = vst.msk [vmem:[%s1] sm:$0x1] %vm31, %v42
  $region13: #{dgi_forward.13} parent=0 // pred_fallthru
    _
  // Predicated region
  $region14: #{dgi_forward.13} parent=0 // pred_check
    _
  $region15: #{dgi_forward.13} parent=0 // pred_check_branch
    %45 = sbr.rel (0) target = $region17
  $region16: #{dgi_forward.13} parent=0 // pred_region
    _
  $region17: #{dgi_forward.13} parent=0 // pred_fallthru
    _
  // Predicated region
  $region18: #{dgi_forward.13} parent=0 // pred_check
    _
  $region19: #{dgi_forward.13} parent=0 // pred_check_branch
    %47 = sbr.rel (0) target = $region21
  $region20: #{dgi_forward.13} parent=0 // pred_region
    _
  $region21: #{dgi_forward.13} parent=0 // pred_fallthru
    _

// kernel: dgi_forward.20
$region0: #{dgi_forward.20}
  #allocation0 [shape = 'u32[]', space=smem, size = 0x4, offset = 0x4, fixed_abs, tag = 'smem constant byte address 0x4 - core index']
  #allocation1 [shape = 'u32[144,128]{1,0:T(1,128)}', space=vmem, size = 0x12000, scoped, tag = 'internal scratch']
  #allocation2 [shape = 'f32[1,1]{1,0:T(1,128)S(6)}', space=smem, size = 0x200, scoped, tag = 'scoped memory for dgi_forward.20']
  %s0 = inlined_call_operand.vmem [shape: bf16[1,32], index: 0, kind: input, shape index: {}]
  %s1 = inlined_call_operand.vmem [shape: bf16[32,32], index: 1, kind: input, shape index: {}]
  %s2 = inlined_call_operand.<no memory space> [shape: f32[1,1], index: 2, kind: input, shape index: {}]
  %s3 = inlined_call_operand.hbm [shape: f32[1,32], index: 3, kind: output, shape index: {}]
  %s4 = sld [smem:[#allocation0]]
  $region22: #{dgi_forward.20} parent=0
    _
  %s6 = ssub.s32 1, %s4
  %s7 = scalar_select 0, %s6, %s4
  %8 = sst [smem:[#allocation2]] %s2
  $region1: #{dgi_forward.20} parent=0
    #allocation3 [shape = 'u8[512]{0}', space=vmem, size = 0x400, scoped, tag = 'output window, operand 0, single buffered']
    #allocation4 [shape = 's32[1]{0}', space=sflag, size = 0x4, scoped, tag = 'scoped memory for dgi_forward.20']
    %9 = vsyncpa [#allocation4], 0
    // Predicated region
    $region2: #{dgi_forward.20} parent=1 // pred_check
      _
    $region3: #{dgi_forward.20} parent=1 // pred_check_branch
      %11 = sbr.rel (0) target = $region5
    $region4: #{dgi_forward.20} parent=1 // pred_region
      _
    $region5: #{dgi_forward.20} parent=1 // pred_fallthru
      _
    // Predicated region
    $region6: #{dgi_forward.20} parent=1 // pred_check
      _
    $region7: #{dgi_forward.20} parent=1 // pred_check_branch
      %13 = sbr.rel (0) target = $region9
    $region8: #{dgi_forward.20} parent=1 // pred_region
      _
    $region9: #{dgi_forward.20} parent=1 // pred_fallthru
      _
    // Predicated region
    $region10: #{dgi_forward.20} parent=1 // pred_check
      _
    $region11: #{dgi_forward.20} parent=1 // pred_check_branch
      %15 = sbr.rel (0) target = $region13
    $region12: #{dgi_forward.20} parent=1 // pred_region
      _
    $region13: #{dgi_forward.20} parent=1 // pred_fallthru
      _
    %v17 = vld [vmem:[%s0] sm:$0x1]
    %v18 = vld [vmem:[%s1] sm:$0xf]
    %v19 = vld [vmem:[%s1 + $0x4] sm:$0xf]
    %v20 = vld [vmem:[%s1 + $0x8] sm:$0xf]
    %v21 = vld [vmem:[%s1 + $0xc] sm:$0xf]
    %s22 = sld [smem:[#allocation2]]
    %v23 = vstv %s22
    %v28 = vunpack.c.l.b16 %v18
    %v29 = vunpack.c.l.b16 %v19
    %v30 = vunpack.c.l.b16 %v20
    %v31 = vunpack.c.l.b16 %v21
    %v32 = vpack.c.b16 %v29, %v28
    %v33 = vpack.c.b16 %v31, %v30
    %vm34 = vcmask 261120
    %v36 = vsel %vm34, %v17, 0
    %v39 = vsel %vm34, %v32, 0
    %v42 = vsel %vm34, %v33, 0
    %44 = vmatprep.subr.bf16.mxu0 0
    %45 = vmatpush1.bf16.xpose.msra.mxu0 %v39
    %46 = vmatprep.subr.bf16.mxu0 0
    %47 = vmatpush1.bf16.xpose.msra.mxu0 %v42
    %48 = vmatprep.subr.bf16.mxu0 0
    %49 = vmatpush1.bf16.xpose.msra.mxu0 0
    %50 = vmatprep.subr.bf16.mxu0 0
    %51 = vmatpush1.bf16.xpose.msra.mxu0 0
    %52 = vmatprep.subr.bf16.mxu0 0
    %53 = vmatpush1.bf16.xpose.msra.mxu0 0
    %54 = vmatprep.subr.bf16.mxu0 0
    %55 = vmatpush1.bf16.xpose.msra.mxu0 0
    %56 = vmatprep.subr.bf16.mxu0 0
    %57 = vmatpush1.bf16.xpose.msra.mxu0 0
    %58 = vmatprep.subr.bf16.mxu0 0
    %59 = vmatpush1.bf16.xpose.msra.mxu0 0
    %60 = vmatprep.subr.bf16.mxu0 0
    %61 = vmatpush1.bf16.xpose.msra.mxu0 0
    %62 = vmatprep.subr.bf16.mxu0 0
    %63 = vmatpush1.bf16.xpose.msra.mxu0 0
    %64 = vmatprep.subr.bf16.mxu0 0
    %65 = vmatpush1.bf16.xpose.msra.mxu0 0
    %66 = vmatprep.subr.bf16.mxu0 0
    %67 = vmatpush1.bf16.xpose.msra.mxu0 0
    %68 = vmatprep.subr.bf16.mxu0 0
    %69 = vmatpush1.bf16.xpose.msra.mxu0 0
    %70 = vmatprep.subr.bf16.mxu0 0
    %71 = vmatpush1.bf16.xpose.msra.mxu0 0
    %72 = vmatprep.subr.bf16.mxu0 0
    %73 = vmatpush1.bf16.xpose.msra.mxu0 0
    %74 = vmatprep.subr.bf16.mxu0 0
    %75 = vmatpush1.bf16.xpose.msra.mxu0 0
    %76 = vmatprep.mubr.bf16.mxu0 0
    %77 = vmatmul.mubr.bf16.gmra.mrb[0].mxu0 %v36
    %v78 = vpop.f32.mrb[0].mxu0
    %v79 = vadd.f32 %v23, %v78
    %v80 = vpop.f32.mrb[0].mxu0
    %v81 = vpop.f32.mrb[0].mxu0
    %v82 = vpop.f32.mrb[0].mxu0
    %83 = vdwg.mxu0
    %vm84 = vcmask 253952
    %85 = vst.msk [vmem:[#allocation3] sm:$0x1] %vm84, %v79
    // Predicated region
    $region14: #{dgi_forward.20} parent=1 // pred_check
      _
    $region15: #{dgi_forward.20} parent=1 // pred_check_branch
      %87 = sbr.rel (0) target = $region17
    $region16: #{dgi_forward.20} parent=1 // pred_region
      %s89 = ssub.s32 16, 16
      %90 = vsyncadd [#allocation4], %s89
      %s92 = sshll.u32 [#allocation3], 4
      %s93 = int_to_ptr.vmem [resolvable:$true] %s92
      %95 = dma.vmem_to_hbm [thread:$0]  %s93, 16, %s3, [#allocation4]
    $region17: #{dgi_forward.20} parent=1 // pred_fallthru
      _
    // Predicated region
    $region18: #{dgi_forward.20} parent=1 // pred_check
      _
    $region19: #{dgi_forward.20} parent=1 // pred_check_branch
      %97 = sbr.rel (0) target = $region21
    $region20: #{dgi_forward.20} parent=1 // pred_region
      %98 = dma.done [#allocation4], 16
    $region21: #{dgi_forward.20} parent=1 // pred_fallthru
      _
    %99 = vsyncpa [#allocation4], 1

// kernel: dgi_forward.21
$region0: #{dgi_forward.21}
  #allocation0 [shape = 'u32[]', space=smem, size = 0x4, offset = 0x4, fixed_abs, tag = 'smem constant byte address 0x4 - core index']
  #allocation1 [shape = 'u32[144,128]{1,0:T(1,128)}', space=vmem, size = 0x12000, scoped, tag = 'internal scratch']
  %s0 = inlined_call_operand.vmem [shape: bf16[16,16], index: 0, kind: input, shape index: {}]
  %s1 = inlined_call_operand.vmem [shape: bf16[4,16,16], index: 1, kind: input, shape index: {}]
  %s2 = inlined_call_operand.vmem [shape: f32[4,16], index: 2, kind: output, shape index: {}]
  %s3 = sld [smem:[#allocation0]]
  $region18: #{dgi_forward.21} parent=0
    _
  %s5 = ssub.s32 1, %s3
  %s6 = scalar_select 0, %s5, %s3
  // Predicated region
  $region2: #{dgi_forward.21} parent=0 // pred_check
    _
  $region3: #{dgi_forward.21} parent=0 // pred_check_branch
    %8 = sbr.rel (0) target = $region5
  $region4: #{dgi_forward.21} parent=0 // pred_region
    _
  $region5: #{dgi_forward.21} parent=0 // pred_fallthru
    _
  // Predicated region
  $region6: #{dgi_forward.21} parent=0 // pred_check
    _
  $region7: #{dgi_forward.21} parent=0 // pred_check_branch
    %10 = sbr.rel (0) target = $region9
  $region8: #{dgi_forward.21} parent=0 // pred_region
    _
  $region9: #{dgi_forward.21} parent=0 // pred_fallthru
    _
  %v11 = vld [vmem:[%s0] sm:$0xf]
  %v12 = vld [vmem:[%s0 + $0x4] sm:$0xf]
  %v13 = vunpack.c.l.bf16 %v11
  %v14 = vunpack.c.l.bf16 %v12
  %v15 = vld [vmem:[%s1] sm:$0xf]
  %v16 = vld [vmem:[%s1 + $0x4] sm:$0xf]
  %v17 = vld [vmem:[%s1 + $0x8] sm:$0xf]
  %v18 = vld [vmem:[%s1 + $0xc] sm:$0xf]
  %v19 = vld [vmem:[%s1 + $0x10] sm:$0xf]
  %v20 = vld [vmem:[%s1 + $0x14] sm:$0xf]
  %v21 = vld [vmem:[%s1 + $0x18] sm:$0xf]
  %v22 = vld [vmem:[%s1 + $0x1c] sm:$0xf]
  %v23 = vunpack.c.l.bf16 %v15
  %v24 = vunpack.c.l.bf16 %v16
  %v25 = vunpack.c.l.bf16 %v17
  %v26 = vunpack.c.l.bf16 %v18
  %v27 = vunpack.c.l.bf16 %v19
  %v28 = vunpack.c.l.bf16 %v20
  %v29 = vunpack.c.l.bf16 %v21
  %v30 = vunpack.c.l.bf16 %v22
  %v31 = vmul.f32 %v23, %v13
  %v32 = vmul.f32 %v24, %v14
  %v33 = vmul.f32 %v25, %v13
  %v34 = vmul.f32 %v26, %v14
  %v35 = vmul.f32 %v27, %v13
  %v36 = vmul.f32 %v28, %v14
  %v37 = vmul.f32 %v29, %v13
  %v38 = vmul.f32 %v30, %v14
  %vm39 = vcmask 130048
  %v40 = vsel %vm39, %v31, 0.0
  %41 = vadd.xlane.f32.xlu0 %v40
  %v42 = vpop.xlane.xlu0 %41
  %v43 = vsel %vm39, %v32, 0.0
  %44 = vadd.xlane.f32.xlu0 %v43
  %v45 = vpop.xlane.xlu0 %44
  %v46 = vsel %vm39, %v33, 0.0
  %47 = vadd.xlane.f32.xlu0 %v46
  %v48 = vpop.xlane.xlu0 %47
  %v49 = vsel %vm39, %v34, 0.0
  %50 = vadd.xlane.f32.xlu0 %v49
  %v51 = vpop.xlane.xlu0 %50
  %v52 = vsel %vm39, %v35, 0.0
  %53 = vadd.xlane.f32.xlu0 %v52
  %v54 = vpop.xlane.xlu0 %53
  %v55 = vsel %vm39, %v36, 0.0
  %56 = vadd.xlane.f32.xlu0 %v55
  %v57 = vpop.xlane.xlu0 %56
  %v58 = vsel %vm39, %v37, 0.0
  %59 = vadd.xlane.f32.xlu0 %v58
  %v60 = vpop.xlane.xlu0 %59
  %v61 = vsel %vm39, %v38, 0.0
  %62 = vadd.xlane.f32.xlu0 %v61
  %v63 = vpop.xlane.xlu0 %62
  %v72 = vlaneseq
  %v73 = vand.u32 %v72, 127
  %v74 = vlaneseq
  %v75 = vshrl.u32 %v74, 7
  %v76 = vsub.s32 %v73, %v75
  %v77 = vrot.slane %v42, %v76
  %v78 = vadd.s32 %v73, 4294967288
  %v79 = vlaneseq
  %v80 = vshrl.u32 %v79, 7
  %v81 = vsub.s32 %v78, %v80
  %v82 = vrot.slane %v45, %v81
  %vm83 = vcmask 130112
  %v84 = vsel %vm83, %v82, %v77
  %v85 = vlaneseq
  %v86 = vshrl.u32 %v85, 7
  %v87 = vsub.s32 %v73, %v86
  %v88 = vrot.slane %v48, %v87
  %v89 = vlaneseq
  %v90 = vshrl.u32 %v89, 7
  %v91 = vsub.s32 %v78, %v90
  %v92 = vrot.slane %v51, %v91
  %v93 = vsel %vm83, %v92, %v88
  %v94 = vlaneseq
  %v95 = vshrl.u32 %v94, 7
  %v96 = vsub.s32 %v73, %v95
  %v97 = vrot.slane %v54, %v96
  %v98 = vlaneseq
  %v99 = vshrl.u32 %v98, 7
  %v100 = vsub.s32 %v78, %v99
  %v101 = vrot.slane %v57, %v100
  %v102 = vsel %vm83, %v101, %v97
  %v103 = vlaneseq
  %v104 = vshrl.u32 %v103, 7
  %v105 = vsub.s32 %v73, %v104
  %v106 = vrot.slane %v60, %v105
  %v107 = vlaneseq
  %v108 = vshrl.u32 %v107, 7
  %v109 = vsub.s32 %v78, %v108
  %v110 = vrot.slane %v63, %v109
  %v111 = vsel %vm83, %v110, %v106
  %vm112 = vcmask 1041409
  %v113 = vsel %vm112, %v93, %v84
  %vm114 = vcmask 1042434
  %v115 = vsel %vm114, %v102, %v113
  %vm116 = vcmask 1043459
  %v117 = vsel %vm116, %v111, %v115
  %vm119 = vcmask 125952
  %120 = vst.msk [vmem:[%s2] sm:$0xf] %vm119, %v117
  // Predicated region
  $region10: #{dgi_forward.21} parent=0 // pred_check
    _
  $region11: #{dgi_forward.21} parent=0 // pred_check_branch
    %122 = sbr.rel (0) target = $region13
  $region12: #{dgi_forward.21} parent=0 // pred_region
    _
  $region13: #{dgi_forward.21} parent=0 // pred_fallthru
    _
  // Predicated region
  $region14: #{dgi_forward.21} parent=0 // pred_check
    _
  $region15: #{dgi_forward.21} parent=0 // pred_check_branch
    %124 = sbr.rel (0) target = $region17
  $region16: #{dgi_forward.21} parent=0 // pred_region
    _
  $region17: #{dgi_forward.21} parent=0 // pred_fallthru
    _

// kernel: dgi_forward.15
$region0: #{dgi_forward.15}
  #allocation0 [shape = 'u32[]', space=smem, size = 0x4, offset = 0x4, fixed_abs, tag = 'smem constant byte address 0x4 - core index']
  #allocation1 [shape = 'u32[144,128]{1,0:T(1,128)}', space=vmem, size = 0x12000, scoped, tag = 'internal scratch']
  #allocation2 [shape = 'f32[16,16]{1,0:T(8,128)}', space=vmem, size = 0x2000, scoped, tag = 'scratch operand']
  %s0 = inlined_call_operand.vmem [shape: bf16[16,16], index: 0, kind: input, shape index: {}]
  %s1 = inlined_call_operand.vmem [shape: bf16[16,16], index: 1, kind: input, shape index: {}]
  %s2 = inlined_call_operand.vmem [shape: f32[1,16], index: 2, kind: input, shape index: {}]
  %s3 = inlined_call_operand.vmem [shape: bf16[16,16], index: 3, kind: output, shape index: {}]
  %s4 = sld [smem:[#allocation0]]
  $region30: #{dgi_forward.15} parent=0
    _
  %s6 = ssub.s32 1, %s4
  %s7 = scalar_select 0, %s6, %s4
  // Predicated region
  $region2: #{dgi_forward.15} parent=0 // pred_check
    _
  $region3: #{dgi_forward.15} parent=0 // pred_check_branch
    %9 = sbr.rel (0) target = $region5
  $region4: #{dgi_forward.15} parent=0 // pred_region
    _
  $region5: #{dgi_forward.15} parent=0 // pred_fallthru
    _
  // Predicated region
  $region6: #{dgi_forward.15} parent=0 // pred_check
    _
  $region7: #{dgi_forward.15} parent=0 // pred_check_branch
    %11 = sbr.rel (0) target = $region9
  $region8: #{dgi_forward.15} parent=0 // pred_region
    _
  $region9: #{dgi_forward.15} parent=0 // pred_fallthru
    _
  // Predicated region
  $region10: #{dgi_forward.15} parent=0 // pred_check
    _
  $region11: #{dgi_forward.15} parent=0 // pred_check_branch
    %13 = sbr.rel (0) target = $region13
  $region12: #{dgi_forward.15} parent=0 // pred_region
    _
  $region13: #{dgi_forward.15} parent=0 // pred_fallthru
    _
  %p15 = scmp.eq.s32.totalorder 0, 0
  // Predicated region
  $region14: #{dgi_forward.15} parent=0 // pred_check
    %p16 = pneg %p15
  $region15: #{dgi_forward.15} parent=0 // pred_check_branch
    %18 = sbr.rel (%p16) target = $region17
  $region16: #{dgi_forward.15} parent=0 // pred_region
    %vm19 = vcmask 130048
    %20 = vst.msk [vmem:[#allocation2] sm:$0xff] %vm19, 0.0
    %21 = vst.msk [vmem:[#allocation2 + $0x8] sm:$0xff] %vm19, 0.0
  $region17: #{dgi_forward.15} parent=0 // pred_fallthru
    _
  %v22 = vld [vmem:[#allocation2] sm:$0xff]
  %v23 = vld [vmem:[#allocation2 + $0x8] sm:$0xff]
  %v24 = vld [vmem:[%s0] sm:$0xf]
  %v25 = vld [vmem:[%s0 + $0x4] sm:$0xf]
  %v26 = vld [vmem:[%s1] sm:$0xf]
  %v27 = vld [vmem:[%s1 + $0x4] sm:$0xf]
  %v30 = vunpack.c.l.b16 %v24
  %v31 = vunpack.c.l.b16 %v25
  %v32 = vpack.c.b16 %v31, %v30
  %v35 = vunpack.c.l.b16 %v26
  %v36 = vunpack.c.l.b16 %v27
  %v37 = vpack.c.b16 %v36, %v35
  %vm39 = vcmask 130048
  %v41 = vsel %vm39, %v32, 0
  %43 = vmatprep.subr.bf16.mxu0 0
  %44 = vmatpush1.bf16.msra.mxu0 %v37
  %45 = vmatprep.subr.bf16.mxu0 0
  %46 = vmatpush1.bf16.msra.mxu0 0
  %47 = vmatprep.subr.bf16.mxu0 0
  %48 = vmatpush1.bf16.msra.mxu0 0
  %49 = vmatprep.subr.bf16.mxu0 0
  %50 = vmatpush1.bf16.msra.mxu0 0
  %51 = vmatprep.subr.bf16.mxu0 0
  %52 = vmatpush1.bf16.msra.mxu0 0
  %53 = vmatprep.subr.bf16.mxu0 0
  %54 = vmatpush1.bf16.msra.mxu0 0
  %55 = vmatprep.subr.bf16.mxu0 0
  %56 = vmatpush1.bf16.msra.mxu0 0
  %57 = vmatprep.subr.bf16.mxu0 0
  %58 = vmatpush1.bf16.msra.mxu0 0
  %59 = vmatprep.subr.bf16.mxu0 0
  %60 = vmatpush1.bf16.msra.mxu0 0
  %61 = vmatprep.subr.bf16.mxu0 0
  %62 = vmatpush1.bf16.msra.mxu0 0
  %63 = vmatprep.subr.bf16.mxu0 0
  %64 = vmatpush1.bf16.msra.mxu0 0
  %65 = vmatprep.subr.bf16.mxu0 0
  %66 = vmatpush1.bf16.msra.mxu0 0
  %67 = vmatprep.subr.bf16.mxu0 0
  %68 = vmatpush1.bf16.msra.mxu0 0
  %69 = vmatprep.subr.bf16.mxu0 0
  %70 = vmatpush1.bf16.msra.mxu0 0
  %71 = vmatprep.subr.bf16.mxu0 0
  %72 = vmatpush1.bf16.msra.mxu0 0
  %73 = vmatprep.subr.bf16.mxu0 0
  %74 = vmatpush1.bf16.msra.mxu0 0
  %75 = vmatprep.mubr.bf16.mxu0 0
  %76 = vmatmul.mubr.bf16.gmra.mrb[0].mxu0 %v41
  %v77 = vpop.f32.mrb[0].mxu0
  %v78 = vadd.f32 0.0, %v77
  %v79 = vpop.f32.mrb[0].mxu0
  %v80 = vpop.f32.mrb[0].mxu0
  %v81 = vadd.f32 0.0, %v80
  %v82 = vpop.f32.mrb[0].mxu0
  %83 = vdwg.mxu0
  %v84 = vadd.f32 %v22, %v78
  %v85 = vadd.f32 %v23, %v81
  %86 = vst.msk [vmem:[#allocation2] sm:$0xff] %vm39, %v84
  %87 = vst.msk [vmem:[#allocation2 + $0x8] sm:$0xff] %vm39, %v85
  // Predicated region
  $region18: #{dgi_forward.15} parent=0 // pred_check
    %p88 = pneg %p15
  $region19: #{dgi_forward.15} parent=0 // pred_check_branch
    %90 = sbr.rel (%p88) target = $region21
  $region20: #{dgi_forward.15} parent=0 // pred_region
    %v91 = vld [vmem:[#allocation2] sm:$0xff]
    %v92 = vld [vmem:[#allocation2 + $0x8] sm:$0xff]
    %v93 = vld [vmem:[%s2] sm:$0x1]
    %v95 = vlaneseq
    %v96 = vshrl.u32 %v95, 7
    %v97 = vsub.s32 0, %v96
    %v98 = vrot.slane %v93, %v97
    %v100 = vadd.f32 %v91, %v98
    %v101 = vadd.f32 %v92, %v98
    %v102 = vmax.f32 %v100, 0.0
    %v103 = vmax.f32 %v101, 0.0
    %v104 = vpack.c.bf16 %v103, %v102
    %v106 = vunpack.c.l.b16 %v104
    %v107 = vunpack.c.h.b16 %v104
    %v108 = vpack.c.b16 %v106, %v106
    %v109 = vpack.c.b16 %v107, %v107
    %vm112 = vcmask 125952
    %113 = vst.msk [vmem:[%s3] sm:$0xf] %vm112, %v108
    %114 = vst.msk [vmem:[%s3 + $0x4] sm:$0xf] %vm112, %v109
  $region21: #{dgi_forward.15} parent=0 // pred_fallthru
    _
  // Predicated region
  $region22: #{dgi_forward.15} parent=0 // pred_check
    _
  $region23: #{dgi_forward.15} parent=0 // pred_check_branch
    %116 = sbr.rel (0) target = $region25
  $region24: #{dgi_forward.15} parent=0 // pred_region
    _
  $region25: #{dgi_forward.15} parent=0 // pred_fallthru
    _
  // Predicated region
  $region26: #{dgi_forward.15} parent=0 // pred_check
    _
  $region27: #{dgi_forward.15} parent=0 // pred_check_branch
    %118 = sbr.rel (0) target = $region29
  $region28: #{dgi_forward.15} parent=0 // pred_region
    _
  $region29: #{dgi_forward.15} parent=0 // pred_fallthru
    _

// kernel: dgi_forward.14
$region0: #{dgi_forward.14}
  #allocation0 [shape = 'u32[]', space=smem, size = 0x4, offset = 0x4, fixed_abs, tag = 'smem constant byte address 0x4 - core index']
  #allocation1 [shape = 'u32[144,128]{1,0:T(1,128)}', space=vmem, size = 0x12000, scoped, tag = 'internal scratch']
  #allocation2 [shape = 'f32[16,16]{1,0:T(8,128)}', space=vmem, size = 0x2000, scoped, tag = 'scratch operand']
  %s0 = inlined_call_operand.vmem [shape: bf16[16,16], index: 0, kind: input, shape index: {}]
  %s1 = inlined_call_operand.vmem [shape: bf16[16,16], index: 1, kind: input, shape index: {}]
  %s2 = inlined_call_operand.vmem [shape: f32[1,16], index: 2, kind: input, shape index: {}]
  %s3 = inlined_call_operand.vmem [shape: bf16[16,16], index: 3, kind: output, shape index: {}]
  %s4 = sld [smem:[#allocation0]]
  $region30: #{dgi_forward.14} parent=0
    _
  %s6 = ssub.s32 1, %s4
  %s7 = scalar_select 0, %s6, %s4
  // Predicated region
  $region2: #{dgi_forward.14} parent=0 // pred_check
    _
  $region3: #{dgi_forward.14} parent=0 // pred_check_branch
    %9 = sbr.rel (0) target = $region5
  $region4: #{dgi_forward.14} parent=0 // pred_region
    _
  $region5: #{dgi_forward.14} parent=0 // pred_fallthru
    _
  // Predicated region
  $region6: #{dgi_forward.14} parent=0 // pred_check
    _
  $region7: #{dgi_forward.14} parent=0 // pred_check_branch
    %11 = sbr.rel (0) target = $region9
  $region8: #{dgi_forward.14} parent=0 // pred_region
    _
  $region9: #{dgi_forward.14} parent=0 // pred_fallthru
    _
  // Predicated region
  $region10: #{dgi_forward.14} parent=0 // pred_check
    _
  $region11: #{dgi_forward.14} parent=0 // pred_check_branch
    %13 = sbr.rel (0) target = $region13
  $region12: #{dgi_forward.14} parent=0 // pred_region
    _
  $region13: #{dgi_forward.14} parent=0 // pred_fallthru
    _
  %p15 = scmp.eq.s32.totalorder 0, 0
  // Predicated region
  $region14: #{dgi_forward.14} parent=0 // pred_check
    %p16 = pneg %p15
  $region15: #{dgi_forward.14} parent=0 // pred_check_branch
    %18 = sbr.rel (%p16) target = $region17
  $region16: #{dgi_forward.14} parent=0 // pred_region
    %vm19 = vcmask 130048
    %20 = vst.msk [vmem:[#allocation2] sm:$0xff] %vm19, 0.0
    %21 = vst.msk [vmem:[#allocation2 + $0x8] sm:$0xff] %vm19, 0.0
  $region17: #{dgi_forward.14} parent=0 // pred_fallthru
    _
  %v22 = vld [vmem:[#allocation2] sm:$0xff]
  %v23 = vld [vmem:[#allocation2 + $0x8] sm:$0xff]
  %v24 = vld [vmem:[%s0] sm:$0xf]
  %v25 = vld [vmem:[%s0 + $0x4] sm:$0xf]
  %v26 = vld [vmem:[%s1] sm:$0xf]
  %v27 = vld [vmem:[%s1 + $0x4] sm:$0xf]
  %v30 = vunpack.c.l.b16 %v24
  %v31 = vunpack.c.l.b16 %v25
  %v32 = vpack.c.b16 %v31, %v30
  %v35 = vunpack.c.l.b16 %v26
  %v36 = vunpack.c.l.b16 %v27
  %v37 = vpack.c.b16 %v36, %v35
  %vm39 = vcmask 130048
  %v41 = vsel %vm39, %v32, 0
  %43 = vmatprep.subr.bf16.mxu0 0
  %44 = vmatpush1.bf16.msra.mxu0 %v37
  %45 = vmatprep.subr.bf16.mxu0 0
  %46 = vmatpush1.bf16.msra.mxu0 0
  %47 = vmatprep.subr.bf16.mxu0 0
  %48 = vmatpush1.bf16.msra.mxu0 0
  %49 = vmatprep.subr.bf16.mxu0 0
  %50 = vmatpush1.bf16.msra.mxu0 0
  %51 = vmatprep.subr.bf16.mxu0 0
  %52 = vmatpush1.bf16.msra.mxu0 0
  %53 = vmatprep.subr.bf16.mxu0 0
  %54 = vmatpush1.bf16.msra.mxu0 0
  %55 = vmatprep.subr.bf16.mxu0 0
  %56 = vmatpush1.bf16.msra.mxu0 0
  %57 = vmatprep.subr.bf16.mxu0 0
  %58 = vmatpush1.bf16.msra.mxu0 0
  %59 = vmatprep.subr.bf16.mxu0 0
  %60 = vmatpush1.bf16.msra.mxu0 0
  %61 = vmatprep.subr.bf16.mxu0 0
  %62 = vmatpush1.bf16.msra.mxu0 0
  %63 = vmatprep.subr.bf16.mxu0 0
  %64 = vmatpush1.bf16.msra.mxu0 0
  %65 = vmatprep.subr.bf16.mxu0 0
  %66 = vmatpush1.bf16.msra.mxu0 0
  %67 = vmatprep.subr.bf16.mxu0 0
  %68 = vmatpush1.bf16.msra.mxu0 0
  %69 = vmatprep.subr.bf16.mxu0 0
  %70 = vmatpush1.bf16.msra.mxu0 0
  %71 = vmatprep.subr.bf16.mxu0 0
  %72 = vmatpush1.bf16.msra.mxu0 0
  %73 = vmatprep.subr.bf16.mxu0 0
  %74 = vmatpush1.bf16.msra.mxu0 0
  %75 = vmatprep.mubr.bf16.mxu0 0
  %76 = vmatmul.mubr.bf16.gmra.mrb[0].mxu0 %v41
  %v77 = vpop.f32.mrb[0].mxu0
  %v78 = vadd.f32 0.0, %v77
  %v79 = vpop.f32.mrb[0].mxu0
  %v80 = vpop.f32.mrb[0].mxu0
  %v81 = vadd.f32 0.0, %v80
  %v82 = vpop.f32.mrb[0].mxu0
  %83 = vdwg.mxu0
  %v84 = vadd.f32 %v22, %v78
  %v85 = vadd.f32 %v23, %v81
  %86 = vst.msk [vmem:[#allocation2] sm:$0xff] %vm39, %v84
  %87 = vst.msk [vmem:[#allocation2 + $0x8] sm:$0xff] %vm39, %v85
  // Predicated region
  $region18: #{dgi_forward.14} parent=0 // pred_check
    %p88 = pneg %p15
  $region19: #{dgi_forward.14} parent=0 // pred_check_branch
    %90 = sbr.rel (%p88) target = $region21
  $region20: #{dgi_forward.14} parent=0 // pred_region
    %v91 = vld [vmem:[#allocation2] sm:$0xff]
    %v92 = vld [vmem:[#allocation2 + $0x8] sm:$0xff]
    %v93 = vld [vmem:[%s2] sm:$0x1]
    %v95 = vlaneseq
    %v96 = vshrl.u32 %v95, 7
    %v97 = vsub.s32 0, %v96
    %v98 = vrot.slane %v93, %v97
    %v100 = vadd.f32 %v91, %v98
    %v101 = vadd.f32 %v92, %v98
    %v102 = vpack.c.bf16 %v101, %v100
    %v104 = vunpack.c.l.b16 %v102
    %v105 = vunpack.c.h.b16 %v102
    %v106 = vpack.c.b16 %v104, %v104
    %v107 = vpack.c.b16 %v105, %v105
    %vm110 = vcmask 125952
    %111 = vst.msk [vmem:[%s3] sm:$0xf] %vm110, %v106
    %112 = vst.msk [vmem:[%s3 + $0x4] sm:$0xf] %vm110, %v107
  $region21: #{dgi_forward.14} parent=0 // pred_fallthru
    _
  // Predicated region
  $region22: #{dgi_forward.14} parent=0 // pred_check
    _
  $region23: #{dgi_forward.14} parent=0 // pred_check_branch
    %114 = sbr.rel (0) target = $region25
  $region24: #{dgi_forward.14} parent=0 // pred_region
    _
  $region25: #{dgi_forward.14} parent=0 // pred_fallthru
    _
  // Predicated region
  $region26: #{dgi_forward.14} parent=0 // pred_check
    _
  $region27: #{dgi_forward.14} parent=0 // pred_check_branch
    %116 = sbr.rel (0) target = $region29
  $region28: #{dgi_forward.14} parent=0 // pred_region
    _
  $region29: #{dgi_forward.14} parent=0 // pred_fallthru
    _

// kernel: dgi_forward.22
$region0: #{dgi_forward.22}
  #allocation0 [shape = 'u32[]', space=smem, size = 0x4, offset = 0x4, fixed_abs, tag = 'smem constant byte address 0x4 - core index']
  #allocation1 [shape = 'u32[144,128]{1,0:T(1,128)}', space=vmem, size = 0x12000, scoped, tag = 'internal scratch']
  %s0 = inlined_call_operand.vmem [shape: bf16[32,32], index: 0, kind: input, shape index: {}]
  %s1 = inlined_call_operand.vmem [shape: f32[16,16], index: 1, kind: input, shape index: {}]
  %s2 = inlined_call_operand.vmem [shape: f32[16,4], index: 2, kind: input, shape index: {}]
  %s3 = inlined_call_operand.vmem [shape: bf16[32,32], index: 3, kind: input, shape index: {}]
  %s4 = inlined_call_operand.vmem [shape: f32[1,32], index: 4, kind: input, shape index: {}]
  %s5 = inlined_call_operand.vmem [shape: bf16[32,32], index: 5, kind: input, shape index: {}]
  %s6 = inlined_call_operand.vmem [shape: f32[1,32], index: 6, kind: input, shape index: {}]
  %s7 = inlined_call_operand.vmem [shape: bf16[32,16], index: 7, kind: input, shape index: {}]
  %s8 = inlined_call_operand.vmem [shape: f32[1,16], index: 8, kind: input, shape index: {}]
  %s9 = inlined_call_operand.vmem [shape: bf16[32,32], index: 9, kind: input, shape index: {}]
  %s10 = inlined_call_operand.vmem [shape: f32[1,32], index: 10, kind: input, shape index: {}]
  %s11 = inlined_call_operand.vmem [shape: bf16[32,32], index: 11, kind: input, shape index: {}]
  %s12 = inlined_call_operand.vmem [shape: f32[1,32], index: 12, kind: input, shape index: {}]
  %s13 = inlined_call_operand.vmem [shape: bf16[32,4], index: 13, kind: input, shape index: {}]
  %s14 = inlined_call_operand.vmem [shape: f32[1,4], index: 14, kind: input, shape index: {}]
  %s15 = inlined_call_operand.vmem [shape: f32[1,2], index: 15, kind: output, shape index: {}]
  %s16 = sld [smem:[#allocation0]]
  $region74: #{dgi_forward.22} parent=0
    _
  %s18 = ssub.s32 1, %s16
  %s19 = scalar_select 0, %s18, %s16
  $region1: #{dgi_forward.22} parent=0
    #allocation2 [shape = 'u8[512]{0}', space=smem, size = 0x200, scoped, tag = 'output window, operand 0, single buffered']
    #allocation3 [shape = 's32[1]{0}', space=sflag, size = 0x4, scoped, tag = 'scoped memory for dgi_forward.22']
    %20 = vsyncpa [#allocation3], 0
    // Predicated region
    $region2: #{dgi_forward.22} parent=1 // pred_check
      _
    $region3: #{dgi_forward.22} parent=1 // pred_check_branch
      %22 = sbr.rel (0) target = $region5
    $region4: #{dgi_forward.22} parent=1 // pred_region
      _
    $region5: #{dgi_forward.22} parent=1 // pred_fallthru
      _
    // Predicated region
    $region6: #{dgi_forward.22} parent=1 // pred_check
      _
    $region7: #{dgi_forward.22} parent=1 // pred_check_branch
      %24 = sbr.rel (0) target = $region9
    $region8: #{dgi_forward.22} parent=1 // pred_region
      _
    $region9: #{dgi_forward.22} parent=1 // pred_fallthru
      _
    // Predicated region
    $region10: #{dgi_forward.22} parent=1 // pred_check
      _
    $region11: #{dgi_forward.22} parent=1 // pred_check_branch
      %26 = sbr.rel (0) target = $region13
    $region12: #{dgi_forward.22} parent=1 // pred_region
      _
    $region13: #{dgi_forward.22} parent=1 // pred_fallthru
      _
    // Predicated region
    $region14: #{dgi_forward.22} parent=1 // pred_check
      _
    $region15: #{dgi_forward.22} parent=1 // pred_check_branch
      %28 = sbr.rel (0) target = $region17
    $region16: #{dgi_forward.22} parent=1 // pred_region
      _
    $region17: #{dgi_forward.22} parent=1 // pred_fallthru
      _
    // Predicated region
    $region18: #{dgi_forward.22} parent=1 // pred_check
      _
    $region19: #{dgi_forward.22} parent=1 // pred_check_branch
      %30 = sbr.rel (0) target = $region21
    $region20: #{dgi_forward.22} parent=1 // pred_region
      _
    $region21: #{dgi_forward.22} parent=1 // pred_fallthru
      _
    // Predicated region
    $region22: #{dgi_forward.22} parent=1 // pred_check
      _
    $region23: #{dgi_forward.22} parent=1 // pred_check_branch
      %32 = sbr.rel (0) target = $region25
    $region24: #{dgi_forward.22} parent=1 // pred_region
      _
    $region25: #{dgi_forward.22} parent=1 // pred_fallthru
      _
    // Predicated region
    $region26: #{dgi_forward.22} parent=1 // pred_check
      _
    $region27: #{dgi_forward.22} parent=1 // pred_check_branch
      %34 = sbr.rel (0) target = $region29
    $region28: #{dgi_forward.22} parent=1 // pred_region
      _
    $region29: #{dgi_forward.22} parent=1 // pred_fallthru
      _
    // Predicated region
    $region30: #{dgi_forward.22} parent=1 // pred_check
      _
    $region31: #{dgi_forward.22} parent=1 // pred_check_branch
      %36 = sbr.rel (0) target = $region33
    $region32: #{dgi_forward.22} parent=1 // pred_region
      _
    $region33: #{dgi_forward.22} parent=1 // pred_fallthru
      _
    // Predicated region
    $region34: #{dgi_forward.22} parent=1 // pred_check
      _
    $region35: #{dgi_forward.22} parent=1 // pred_check_branch
      %38 = sbr.rel (0) target = $region37
    $region36: #{dgi_forward.22} parent=1 // pred_region
      _
    $region37: #{dgi_forward.22} parent=1 // pred_fallthru
      _
    // Predicated region
    $region38: #{dgi_forward.22} parent=1 // pred_check
      _
    $region39: #{dgi_forward.22} parent=1 // pred_check_branch
      %40 = sbr.rel (0) target = $region41
    $region40: #{dgi_forward.22} parent=1 // pred_region
      _
    $region41: #{dgi_forward.22} parent=1 // pred_fallthru
      _
    // Predicated region
    $region42: #{dgi_forward.22} parent=1 // pred_check
      _
    $region43: #{dgi_forward.22} parent=1 // pred_check_branch
      %42 = sbr.rel (0) target = $region45
    $region44: #{dgi_forward.22} parent=1 // pred_region
      _
    $region45: #{dgi_forward.22} parent=1 // pred_fallthru
      _
    // Predicated region
    $region46: #{dgi_forward.22} parent=1 // pred_check
      _
    $region47: #{dgi_forward.22} parent=1 // pred_check_branch
      %44 = sbr.rel (0) target = $region49
    $region48: #{dgi_forward.22} parent=1 // pred_region
      _
    $region49: #{dgi_forward.22} parent=1 // pred_fallthru
      _
    // Predicated region
    $region50: #{dgi_forward.22} parent=1 // pred_check
      _
    $region51: #{dgi_forward.22} parent=1 // pred_check_branch
      %46 = sbr.rel (0) target = $region53
    $region52: #{dgi_forward.22} parent=1 // pred_region
      _
    $region53: #{dgi_forward.22} parent=1 // pred_fallthru
      _
    // Predicated region
    $region54: #{dgi_forward.22} parent=1 // pred_check
      _
    $region55: #{dgi_forward.22} parent=1 // pred_check_branch
      %48 = sbr.rel (0) target = $region57
    $region56: #{dgi_forward.22} parent=1 // pred_region
      _
    $region57: #{dgi_forward.22} parent=1 // pred_fallthru
      _
    // Predicated region
    $region58: #{dgi_forward.22} parent=1 // pred_check
      _
    $region59: #{dgi_forward.22} parent=1 // pred_check_branch
      %50 = sbr.rel (0) target = $region61
    $region60: #{dgi_forward.22} parent=1 // pred_region
      _
    $region61: #{dgi_forward.22} parent=1 // pred_fallthru
      _
    %p52 = scmp.eq.s32.totalorder 0, 0
    // Predicated region
    $region62: #{dgi_forward.22} parent=1 // pred_check
      %p53 = pneg %p52
    $region63: #{dgi_forward.22} parent=1 // pred_check_branch
      %55 = sbr.rel (%p53) target = $region65
    $region64: #{dgi_forward.22} parent=1 // pred_region
      %s56 = scalar_lea.smem [#allocation2], 0
      %57 = sst [smem:[%s56]] 0.0
      %s58 = scalar_lea.smem [#allocation2], 1
      %59 = sst [smem:[%s58]] 0.0
    $region65: #{dgi_forward.22} parent=1 // pred_fallthru
      _
    %v60 = vld [vmem:[%s0] sm:$0xf]
    %v61 = vld [vmem:[%s0 + $0x4] sm:$0xf]
    %v62 = vld [vmem:[%s3] sm:$0xf]
    %v63 = vld [vmem:[%s3 + $0x4] sm:$0xf]
    %v64 = vld [vmem:[%s3 + $0x8] sm:$0xf]
    %v65 = vld [vmem:[%s3 + $0xc] sm:$0xf]
    %v66 = vld [vmem:[%s4] sm:$0x1]
    %v67 = vld [vmem:[%s5] sm:$0xf]
    %v68 = vld [vmem:[%s5 + $0x4] sm:$0xf]
    %v69 = vld [vmem:[%s5 + $0x8] sm:$0xf]
    %v70 = vld [vmem:[%s5 + $0xc] sm:$0xf]
    %v71 = vld [vmem:[%s6] sm:$0x1]
    %v72 = vld [vmem:[%s7] sm:$0xf]
    %v73 = vld [vmem:[%s7 + $0x4] sm:$0xf]
    %v74 = vld [vmem:[%s7 + $0x8] sm:$0xf]
    %v75 = vld [vmem:[%s7 + $0xc] sm:$0xf]
    %v76 = vld [vmem:[%s8] sm:$0x1]
    %v78 = vlaneseq
    %v79 = vshrl.u32 %v78, 7
    %v80 = vsub.s32 0, %v79
    %v81 = vrot.slane %v66, %v80
    %v85 = vunpack.c.l.b16 %v60
    %v86 = vunpack.c.l.b16 %v61
    %v87 = vpack.c.b16 %v86, %v85
    %v92 = vunpack.c.l.b16 %v62
    %v93 = vunpack.c.l.b16 %v63
    %v94 = vunpack.c.l.b16 %v64
    %v95 = vunpack.c.l.b16 %v65
    %v96 = vpack.c.b16 %v93, %v92
    %v97 = vpack.c.b16 %v95, %v94
    %vm100 = vcmask 261120
    %v102 = vsel %vm100, %v87, 0
    %104 = vmatprep.subr.bf16.mxu0 0
    %105 = vmatpush1.bf16.msra.mxu0 %v96
    %106 = vmatprep.subr.bf16.mxu0 0
    %107 = vmatpush1.bf16.msra.mxu0 %v97
    %108 = vmatprep.subr.bf16.mxu0 0
    %109 = vmatpush1.bf16.msra.mxu0 0
    %110 = vmatprep.subr.bf16.mxu0 0
    %111 = vmatpush1.bf16.msra.mxu0 0
    %112 = vmatprep.subr.bf16.mxu0 0
    %113 = vmatpush1.bf16.msra.mxu0 0
    %114 = vmatprep.subr.bf16.mxu0 0
    %115 = vmatpush1.bf16.msra.mxu0 0
    %116 = vmatprep.subr.bf16.mxu0 0
    %117 = vmatpush1.bf16.msra.mxu0 0
    %118 = vmatprep.subr.bf16.mxu0 0
    %119 = vmatpush1.bf16.msra.mxu0 0
    %120 = vmatprep.subr.bf16.mxu0 0
    %121 = vmatpush1.bf16.msra.mxu0 0
    %122 = vmatprep.subr.bf16.mxu0 0
    %123 = vmatpush1.bf16.msra.mxu0 0
    %124 = vmatprep.subr.bf16.mxu0 0
    %125 = vmatpush1.bf16.msra.mxu0 0
    %126 = vmatprep.subr.bf16.mxu0 0
    %127 = vmatpush1.bf16.msra.mxu0 0
    %128 = vmatprep.subr.bf16.mxu0 0
    %129 = vmatpush1.bf16.msra.mxu0 0
    %130 = vmatprep.subr.bf16.mxu0 0
    %131 = vmatpush1.bf16.msra.mxu0 0
    %132 = vmatprep.subr.bf16.mxu0 0
    %133 = vmatpush1.bf16.msra.mxu0 0
    %134 = vmatprep.subr.bf16.mxu0 0
    %135 = vmatpush1.bf16.msra.mxu0 0
    %136 = vmatprep.mubr.bf16.mxu0 0
    %137 = vmatmul.mubr.bf16.gmra.mrb[0].mxu0 %v102
    %v138 = vpop.f32.mrb[0].mxu0
    %v139 = vadd.f32 %v81, %v138
    %v140 = vpop.f32.mrb[0].mxu0
    %v141 = vpop.f32.mrb[0].mxu0
    %v142 = vadd.f32 %v81, %v141
    %v143 = vpop.f32.mrb[0].mxu0
    %144 = vdwg.mxu0
    %v145 = vmax.f32 %v139, 0.0
    %v146 = vmax.f32 %v142, 0.0
    %v147 = vpack.c.bf16 %v146, %v145
    %v149 = vlaneseq
    %v150 = vshrl.u32 %v149, 7
    %v151 = vsub.s32 0, %v150
    %v152 = vrot.slane %v71, %v151
    %v158 = vunpack.c.l.b16 %v67
    %v159 = vunpack.c.l.b16 %v68
    %v160 = vunpack.c.l.b16 %v69
    %v161 = vunpack.c.l.b16 %v70
    %v162 = vpack.c.b16 %v159, %v158
    %v163 = vpack.c.b16 %v161, %v160
    %v167 = vsel %vm100, %v147, 0
    %169 = vmatprep.subr.bf16.mxu0 0
    %170 = vmatpush1.bf16.msra.mxu0 %v162
    %171 = vmatprep.subr.bf16.mxu0 0
    %172 = vmatpush1.bf16.msra.mxu0 %v163
    %173 = vmatprep.subr.bf16.mxu0 0
    %174 = vmatpush1.bf16.msra.mxu0 0
    %175 = vmatprep.subr.bf16.mxu0 0
    %176 = vmatpush1.bf16.msra.mxu0 0
    %177 = vmatprep.subr.bf16.mxu0 0
    %178 = vmatpush1.bf16.msra.mxu0 0
    %179 = vmatprep.subr.bf16.mxu0 0
    %180 = vmatpush1.bf16.msra.mxu0 0
    %181 = vmatprep.subr.bf16.mxu0 0
    %182 = vmatpush1.bf16.msra.mxu0 0
    %183 = vmatprep.subr.bf16.mxu0 0
    %184 = vmatpush1.bf16.msra.mxu0 0
    %185 = vmatprep.subr.bf16.mxu0 0
    %186 = vmatpush1.bf16.msra.mxu0 0
    %187 = vmatprep.subr.bf16.mxu0 0
    %188 = vmatpush1.bf16.msra.mxu0 0
    %189 = vmatprep.subr.bf16.mxu0 0
    %190 = vmatpush1.bf16.msra.mxu0 0
    %191 = vmatprep.subr.bf16.mxu0 0
    %192 = vmatpush1.bf16.msra.mxu0 0
    %193 = vmatprep.subr.bf16.mxu0 0
    %194 = vmatpush1.bf16.msra.mxu0 0
    %195 = vmatprep.subr.bf16.mxu0 0
    %196 = vmatpush1.bf16.msra.mxu0 0
    %197 = vmatprep.subr.bf16.mxu0 0
    %198 = vmatpush1.bf16.msra.mxu0 0
    %199 = vmatprep.subr.bf16.mxu0 0
    %200 = vmatpush1.bf16.msra.mxu0 0
    %201 = vmatprep.mubr.bf16.mxu0 0
    %202 = vmatmul.mubr.bf16.gmra.mrb[0].mxu0 %v167
    %v203 = vpop.f32.mrb[0].mxu0
    %v204 = vadd.f32 %v152, %v203
    %v205 = vpop.f32.mrb[0].mxu0
    %v206 = vpop.f32.mrb[0].mxu0
    %v207 = vadd.f32 %v152, %v206
    %v208 = vpop.f32.mrb[0].mxu0
    %209 = vdwg.mxu0
    %v210 = vmax.f32 %v204, 0.0
    %v211 = vmax.f32 %v207, 0.0
    %v212 = vpack.c.bf16 %v211, %v210
    %v214 = vlaneseq
    %v215 = vshrl.u32 %v214, 7
    %v216 = vsub.s32 0, %v215
    %v217 = vrot.slane %v76, %v216
    %v223 = vunpack.c.l.b16 %v72
    %v224 = vunpack.c.l.b16 %v73
    %v225 = vunpack.c.l.b16 %v74
    %v226 = vunpack.c.l.b16 %v75
    %v227 = vpack.c.b16 %v224, %v223
    %v228 = vpack.c.b16 %v226, %v225
    %v232 = vsel %vm100, %v212, 0
    %234 = vmatprep.subr.bf16.mxu0 0
    %235 = vmatpush1.bf16.msra.mxu0 %v227
    %236 = vmatprep.subr.bf16.mxu0 0
    %237 = vmatpush1.bf16.msra.mxu0 %v228
    %238 = vmatprep.subr.bf16.mxu0 0
    %239 = vmatpush1.bf16.msra.mxu0 0
    %240 = vmatprep.subr.bf16.mxu0 0
    %241 = vmatpush1.bf16.msra.mxu0 0
    %242 = vmatprep.subr.bf16.mxu0 0
    %243 = vmatpush1.bf16.msra.mxu0 0
    %244 = vmatprep.subr.bf16.mxu0 0
    %245 = vmatpush1.bf16.msra.mxu0 0
    %246 = vmatprep.subr.bf16.mxu0 0
    %247 = vmatpush1.bf16.msra.mxu0 0
    %248 = vmatprep.subr.bf16.mxu0 0
    %249 = vmatpush1.bf16.msra.mxu0 0
    %250 = vmatprep.subr.bf16.mxu0 0
    %251 = vmatpush1.bf16.msra.mxu0 0
    %252 = vmatprep.subr.bf16.mxu0 0
    %253 = vmatpush1.bf16.msra.mxu0 0
    %254 = vmatprep.subr.bf16.mxu0 0
    %255 = vmatpush1.bf16.msra.mxu0 0
    %256 = vmatprep.subr.bf16.mxu0 0
    %257 = vmatpush1.bf16.msra.mxu0 0
    %258 = vmatprep.subr.bf16.mxu0 0
    %259 = vmatpush1.bf16.msra.mxu0 0
    %260 = vmatprep.subr.bf16.mxu0 0
    %261 = vmatpush1.bf16.msra.mxu0 0
    %262 = vmatprep.subr.bf16.mxu0 0
    %263 = vmatpush1.bf16.msra.mxu0 0
    %264 = vmatprep.subr.bf16.mxu0 0
    %265 = vmatpush1.bf16.msra.mxu0 0
    %266 = vmatprep.mubr.bf16.mxu0 0
    %267 = vmatmul.mubr.bf16.gmra.mrb[0].mxu0 %v232
    %v268 = vpop.f32.mrb[0].mxu0
    %v269 = vadd.f32 %v217, %v268
    %v270 = vpop.f32.mrb[0].mxu0
    %v271 = vpop.f32.mrb[0].mxu0
    %v272 = vadd.f32 %v217, %v271
    %v273 = vpop.f32.mrb[0].mxu0
    %274 = vdwg.mxu0
    %v275 = vld [vmem:[%s1] sm:$0xff]
    %v276 = vld [vmem:[%s1 + $0x8] sm:$0xff]
    %v277 = vsub.f32 %v269, %v275
    %v278 = vsub.f32 %v272, %v276
    %s279 = sld [smem:[#allocation2]]
    %v280 = vmul.f32 %v277, %v277
    %v281 = vmul.f32 %v278, %v278
    %vm282 = vcmask 130048
    %v283 = vsel %vm282, %v280, 0.0
    %v284 = vsel %vm282, %v281, 0.0
    %v285 = vadd.f32 %v283, %v284
    %286 = vadd.xlane.f32.xlu0 %v285
    %v287 = vpop.xlane.xlu0 %286
    %v288 = vrot.slane %v287, 4
    %v289 = vadd.f32 %v287, %v288
    %v290 = vrot.slane %v289, 2
    %v291 = vadd.f32 %v289, %v290
    %v292 = vrot.slane %v291, 1
    %v293 = vadd.f32 %v291, %v292
    %s294 = vtos %v293
    %s295 = smul.f32 %s294, 0.00390625
    %s296 = sadd.f32 %s279, %s295
    %s297 = scalar_lea.smem [#allocation2], 0
    %298 = sst [smem:[%s297]] %s296
    %v299 = vld [vmem:[%s9] sm:$0xf]
    %v300 = vld [vmem:[%s9 + $0x4] sm:$0xf]
    %v301 = vld [vmem:[%s9 + $0x8] sm:$0xf]
    %v302 = vld [vmem:[%s9 + $0xc] sm:$0xf]
    %v303 = vld [vmem:[%s10] sm:$0x1]
    %v304 = vld [vmem:[%s11] sm:$0xf]
    %v305 = vld [vmem:[%s11 + $0x4] sm:$0xf]
    %v306 = vld [vmem:[%s11 + $0x8] sm:$0xf]
    %v307 = vld [vmem:[%s11 + $0xc] sm:$0xf]
    %v308 = vld [vmem:[%s12] sm:$0x1]
    %v309 = vld [vmem:[%s13] sm:$0xf]
    %v310 = vld [vmem:[%s13 + $0x4] sm:$0xf]
    %v311 = vld [vmem:[%s13 + $0x8] sm:$0xf]
    %v312 = vld [vmem:[%s13 + $0xc] sm:$0xf]
    %v313 = vld [vmem:[%s14] sm:$0x1]
    %v315 = vlaneseq
    %v316 = vshrl.u32 %v315, 7
    %v317 = vsub.s32 0, %v316
    %v318 = vrot.slane %v303, %v317
    %v324 = vunpack.c.l.b16 %v299
    %v325 = vunpack.c.l.b16 %v300
    %v326 = vunpack.c.l.b16 %v301
    %v327 = vunpack.c.l.b16 %v302
    %v328 = vpack.c.b16 %v325, %v324
    %v329 = vpack.c.b16 %v327, %v326
    %332 = vmatprep.subr.bf16.mxu0 0
    %333 = vmatpush1.bf16.msra.mxu0 %v328
    %334 = vmatprep.subr.bf16.mxu0 0
    %335 = vmatpush1.bf16.msra.mxu0 %v329
    %336 = vmatprep.subr.bf16.mxu0 0
    %337 = vmatpush1.bf16.msra.mxu0 0
    %338 = vmatprep.subr.bf16.mxu0 0
    %339 = vmatpush1.bf16.msra.mxu0 0
    %340 = vmatprep.subr.bf16.mxu0 0
    %341 = vmatpush1.bf16.msra.mxu0 0
    %342 = vmatprep.subr.bf16.mxu0 0
    %343 = vmatpush1.bf16.msra.mxu0 0
    %344 = vmatprep.subr.bf16.mxu0 0
    %345 = vmatpush1.bf16.msra.mxu0 0
    %346 = vmatprep.subr.bf16.mxu0 0
    %347 = vmatpush1.bf16.msra.mxu0 0
    %348 = vmatprep.subr.bf16.mxu0 0
    %349 = vmatpush1.bf16.msra.mxu0 0
    %350 = vmatprep.subr.bf16.mxu0 0
    %351 = vmatpush1.bf16.msra.mxu0 0
    %352 = vmatprep.subr.bf16.mxu0 0
    %353 = vmatpush1.bf16.msra.mxu0 0
    %354 = vmatprep.subr.bf16.mxu0 0
    %355 = vmatpush1.bf16.msra.mxu0 0
    %356 = vmatprep.subr.bf16.mxu0 0
    %357 = vmatpush1.bf16.msra.mxu0 0
    %358 = vmatprep.subr.bf16.mxu0 0
    %359 = vmatpush1.bf16.msra.mxu0 0
    %360 = vmatprep.subr.bf16.mxu0 0
    %361 = vmatpush1.bf16.msra.mxu0 0
    %362 = vmatprep.subr.bf16.mxu0 0
    %363 = vmatpush1.bf16.msra.mxu0 0
    %364 = vmatprep.mubr.bf16.mxu0 0
    %365 = vmatmul.mubr.bf16.gmra.mrb[0].mxu0 %v102
    %v366 = vpop.f32.mrb[0].mxu0
    %v367 = vadd.f32 %v318, %v366
    %v368 = vpop.f32.mrb[0].mxu0
    %v369 = vpop.f32.mrb[0].mxu0
    %v370 = vadd.f32 %v318, %v369
    %v371 = vpop.f32.mrb[0].mxu0
    %372 = vdwg.mxu0
    %v373 = vmax.f32 %v367, 0.0
    %v374 = vmax.f32 %v370, 0.0
    %v375 = vpack.c.bf16 %v374, %v373
    %v377 = vlaneseq
    %v378 = vshrl.u32 %v377, 7
    %v379 = vsub.s32 0, %v378
    %v380 = vrot.slane %v308, %v379
    %v386 = vunpack.c.l.b16 %v304
    %v387 = vunpack.c.l.b16 %v305
    %v388 = vunpack.c.l.b16 %v306
    %v389 = vunpack.c.l.b16 %v307
    %v390 = vpack.c.b16 %v387, %v386
    %v391 = vpack.c.b16 %v389, %v388
    %v395 = vsel %vm100, %v375, 0
    %397 = vmatprep.subr.bf16.mxu0 0
    %398 = vmatpush1.bf16.msra.mxu0 %v390
    %399 = vmatprep.subr.bf16.mxu0 0
    %400 = vmatpush1.bf16.msra.mxu0 %v391
    %401 = vmatprep.subr.bf16.mxu0 0
    %402 = vmatpush1.bf16.msra.mxu0 0
    %403 = vmatprep.subr.bf16.mxu0 0
    %404 = vmatpush1.bf16.msra.mxu0 0
    %405 = vmatprep.subr.bf16.mxu0 0
    %406 = vmatpush1.bf16.msra.mxu0 0
    %407 = vmatprep.subr.bf16.mxu0 0
    %408 = vmatpush1.bf16.msra.mxu0 0
    %409 = vmatprep.subr.bf16.mxu0 0
    %410 = vmatpush1.bf16.msra.mxu0 0
    %411 = vmatprep.subr.bf16.mxu0 0
    %412 = vmatpush1.bf16.msra.mxu0 0
    %413 = vmatprep.subr.bf16.mxu0 0
    %414 = vmatpush1.bf16.msra.mxu0 0
    %415 = vmatprep.subr.bf16.mxu0 0
    %416 = vmatpush1.bf16.msra.mxu0 0
    %417 = vmatprep.subr.bf16.mxu0 0
    %418 = vmatpush1.bf16.msra.mxu0 0
    %419 = vmatprep.subr.bf16.mxu0 0
    %420 = vmatpush1.bf16.msra.mxu0 0
    %421 = vmatprep.subr.bf16.mxu0 0
    %422 = vmatpush1.bf16.msra.mxu0 0
    %423 = vmatprep.subr.bf16.mxu0 0
    %424 = vmatpush1.bf16.msra.mxu0 0
    %425 = vmatprep.subr.bf16.mxu0 0
    %426 = vmatpush1.bf16.msra.mxu0 0
    %427 = vmatprep.subr.bf16.mxu0 0
    %428 = vmatpush1.bf16.msra.mxu0 0
    %429 = vmatprep.mubr.bf16.mxu0 0
    %430 = vmatmul.mubr.bf16.gmra.mrb[0].mxu0 %v395
    %v431 = vpop.f32.mrb[0].mxu0
    %v432 = vadd.f32 %v380, %v431
    %v433 = vpop.f32.mrb[0].mxu0
    %v434 = vpop.f32.mrb[0].mxu0
    %v435 = vadd.f32 %v380, %v434
    %v436 = vpop.f32.mrb[0].mxu0
    %437 = vdwg.mxu0
    %v438 = vmax.f32 %v432, 0.0
    %v439 = vmax.f32 %v435, 0.0
    %v440 = vpack.c.bf16 %v439, %v438
    %v442 = vlaneseq
    %v443 = vshrl.u32 %v442, 7
    %v444 = vsub.s32 0, %v443
    %v445 = vrot.slane %v313, %v444
    %v451 = vunpack.c.l.b16 %v309
    %v452 = vunpack.c.l.b16 %v310
    %v453 = vunpack.c.l.b16 %v311
    %v454 = vunpack.c.l.b16 %v312
    %v455 = vpack.c.b16 %v452, %v451
    %v456 = vpack.c.b16 %v454, %v453
    %v460 = vsel %vm100, %v440, 0
    %462 = vmatprep.subr.bf16.mxu0 0
    %463 = vmatpush1.bf16.msra.mxu0 %v455
    %464 = vmatprep.subr.bf16.mxu0 0
    %465 = vmatpush1.bf16.msra.mxu0 %v456
    %466 = vmatprep.subr.bf16.mxu0 0
    %467 = vmatpush1.bf16.msra.mxu0 0
    %468 = vmatprep.subr.bf16.mxu0 0
    %469 = vmatpush1.bf16.msra.mxu0 0
    %470 = vmatprep.subr.bf16.mxu0 0
    %471 = vmatpush1.bf16.msra.mxu0 0
    %472 = vmatprep.subr.bf16.mxu0 0
    %473 = vmatpush1.bf16.msra.mxu0 0
    %474 = vmatprep.subr.bf16.mxu0 0
    %475 = vmatpush1.bf16.msra.mxu0 0
    %476 = vmatprep.subr.bf16.mxu0 0
    %477 = vmatpush1.bf16.msra.mxu0 0
    %478 = vmatprep.subr.bf16.mxu0 0
    %479 = vmatpush1.bf16.msra.mxu0 0
    %480 = vmatprep.subr.bf16.mxu0 0
    %481 = vmatpush1.bf16.msra.mxu0 0
    %482 = vmatprep.subr.bf16.mxu0 0
    %483 = vmatpush1.bf16.msra.mxu0 0
    %484 = vmatprep.subr.bf16.mxu0 0
    %485 = vmatpush1.bf16.msra.mxu0 0
    %486 = vmatprep.subr.bf16.mxu0 0
    %487 = vmatpush1.bf16.msra.mxu0 0
    %488 = vmatprep.subr.bf16.mxu0 0
    %489 = vmatpush1.bf16.msra.mxu0 0
    %490 = vmatprep.subr.bf16.mxu0 0
    %491 = vmatpush1.bf16.msra.mxu0 0
    %492 = vmatprep.subr.bf16.mxu0 0
    %493 = vmatpush1.bf16.msra.mxu0 0
    %494 = vmatprep.mubr.bf16.mxu0 0
    %495 = vmatmul.mubr.bf16.gmra.mrb[0].mxu0 %v460
    %v496 = vpop.f32.mrb[0].mxu0
    %v497 = vadd.f32 %v445, %v496
    %v498 = vpop.f32.mrb[0].mxu0
    %v499 = vpop.f32.mrb[0].mxu0
    %v500 = vadd.f32 %v445, %v499
    %v501 = vpop.f32.mrb[0].mxu0
    %502 = vdwg.mxu0
    %v503 = vld [vmem:[%s2] sm:$0xff]
    %v504 = vld [vmem:[%s2 + $0x8] sm:$0xff]
    %v505 = vsub.f32 %v497, %v503
    %v506 = vsub.f32 %v500, %v504
    %s507 = sld [smem:[#allocation2 + $0x1]]
    %v508 = vmul.f32 %v505, %v505
    %v509 = vmul.f32 %v506, %v506
    %vm510 = vcmask 31744
    %v511 = vsel %vm510, %v508, 0.0
    %v512 = vsel %vm510, %v509, 0.0
    %v513 = vadd.f32 %v511, %v512
    %514 = vadd.xlane.f32.xlu0 %v513
    %v515 = vpop.xlane.xlu0 %514
    %v516 = vrot.slane %v515, 4
    %v517 = vadd.f32 %v515, %v516
    %v518 = vrot.slane %v517, 2
    %v519 = vadd.f32 %v517, %v518
    %v520 = vrot.slane %v519, 1
    %v521 = vadd.f32 %v519, %v520
    %s522 = vtos %v521
    %s523 = smul.f32 %s522, 0.015625
    %s524 = sadd.f32 %s507, %s523
    %s525 = scalar_lea.smem [#allocation2], 1
    %526 = sst [smem:[%s525]] %s524
    // Predicated region
    $region66: #{dgi_forward.22} parent=1 // pred_check
      _
    $region67: #{dgi_forward.22} parent=1 // pred_check_branch
      %528 = sbr.rel (0) target = $region69
    $region68: #{dgi_forward.22} parent=1 // pred_region
      %s530 = ssub.s32 16, 16
      %531 = vsyncadd [#allocation3], %s530
      %s533 = sshll.u32 %s15, 4
      %s534 = int_to_ptr.vmem [resolvable:$true] %s533
      %536 = dma.smem_to_vmem [#allocation2], 16, %s534, [#allocation3]
    $region69: #{dgi_forward.22} parent=1 // pred_fallthru
      _
    // Predicated region
    $region70: #{dgi_forward.22} parent=1 // pred_check
      _
    $region71: #{dgi_forward.22} parent=1 // pred_check_branch
      %538 = sbr.rel (0) target = $region73
    $region72: #{dgi_forward.22} parent=1 // pred_region
      %539 = dma.done [#allocation3], 16
    $region73: #{dgi_forward.22} parent=1 // pred_fallthru
      _
    %540 = sfence
    %541 = vsyncpa [#allocation3], 1

// kernel: dgi_forward.18
$region0: #{dgi_forward.18}
  #allocation0 [shape = 'u32[]', space=smem, size = 0x4, offset = 0x4, fixed_abs, tag = 'smem constant byte address 0x4 - core index']
  #allocation1 [shape = 'u32[144,128]{1,0:T(1,128)}', space=vmem, size = 0x12000, scoped, tag = 'internal scratch']
  #allocation2 [shape = 'f32[16,32]{1,0:T(8,128)}', space=vmem, size = 0x2000, scoped, tag = 'scratch operand']
  %s0 = inlined_call_operand.vmem [shape: bf16[16,64], index: 0, kind: input, shape index: {}]
  %s1 = inlined_call_operand.vmem [shape: bf16[64,32], index: 1, kind: input, shape index: {}]
  %s2 = inlined_call_operand.vmem [shape: f32[1,32], index: 2, kind: input, shape index: {}]
  %s3 = inlined_call_operand.vmem [shape: bf16[16,32], index: 3, kind: output, shape index: {}]
  %s4 = sld [smem:[#allocation0]]
  $region30: #{dgi_forward.18} parent=0
    _
  %s6 = ssub.s32 1, %s4
  %s7 = scalar_select 0, %s6, %s4
  // Predicated region
  $region2: #{dgi_forward.18} parent=0 // pred_check
    _
  $region3: #{dgi_forward.18} parent=0 // pred_check_branch
    %9 = sbr.rel (0) target = $region5
  $region4: #{dgi_forward.18} parent=0 // pred_region
    _
  $region5: #{dgi_forward.18} parent=0 // pred_fallthru
    _
  // Predicated region
  $region6: #{dgi_forward.18} parent=0 // pred_check
    _
  $region7: #{dgi_forward.18} parent=0 // pred_check_branch
    %11 = sbr.rel (0) target = $region9
  $region8: #{dgi_forward.18} parent=0 // pred_region
    _
  $region9: #{dgi_forward.18} parent=0 // pred_fallthru
    _
  // Predicated region
  $region10: #{dgi_forward.18} parent=0 // pred_check
    _
  $region11: #{dgi_forward.18} parent=0 // pred_check_branch
    %13 = sbr.rel (0) target = $region13
  $region12: #{dgi_forward.18} parent=0 // pred_region
    _
  $region13: #{dgi_forward.18} parent=0 // pred_fallthru
    _
  %p15 = scmp.eq.s32.totalorder 0, 0
  // Predicated region
  $region14: #{dgi_forward.18} parent=0 // pred_check
    %p16 = pneg %p15
  $region15: #{dgi_forward.18} parent=0 // pred_check_branch
    %18 = sbr.rel (%p16) target = $region17
  $region16: #{dgi_forward.18} parent=0 // pred_region
    %vm19 = vcmask 261120
    %20 = vst.msk [vmem:[#allocation2] sm:$0xff] %vm19, 0.0
    %21 = vst.msk [vmem:[#allocation2 + $0x8] sm:$0xff] %vm19, 0.0
  $region17: #{dgi_forward.18} parent=0 // pred_fallthru
    _
  %v22 = vld [vmem:[#allocation2] sm:$0xff]
  %v23 = vld [vmem:[#allocation2 + $0x8] sm:$0xff]
  %v24 = vld [vmem:[%s0] sm:$0xf]
  %v25 = vld [vmem:[%s0 + $0x4] sm:$0xf]
  %v26 = vld [vmem:[%s1] sm:$0xf]
  %v27 = vld [vmem:[%s1 + $0x4] sm:$0xf]
  %v28 = vld [vmem:[%s1 + $0x8] sm:$0xf]
  %v29 = vld [vmem:[%s1 + $0xc] sm:$0xf]
  %v30 = vld [vmem:[%s1 + $0x10] sm:$0xf]
  %v31 = vld [vmem:[%s1 + $0x14] sm:$0xf]
  %v32 = vld [vmem:[%s1 + $0x18] sm:$0xf]
  %v33 = vld [vmem:[%s1 + $0x1c] sm:$0xf]
  %v36 = vunpack.c.l.b16 %v24
  %v37 = vunpack.c.l.b16 %v25
  %v38 = vpack.c.b16 %v37, %v36
  %v47 = vunpack.c.l.b16 %v26
  %v48 = vunpack.c.l.b16 %v27
  %v49 = vunpack.c.l.b16 %v28
  %v50 = vunpack.c.l.b16 %v29
  %v51 = vunpack.c.l.b16 %v30
  %v52 = vunpack.c.l.b16 %v31
  %v53 = vunpack.c.l.b16 %v32
  %v54 = vunpack.c.l.b16 %v33
  %v55 = vpack.c.b16 %v48, %v47
  %v56 = vpack.c.b16 %v50, %v49
  %v57 = vpack.c.b16 %v52, %v51
  %v58 = vpack.c.b16 %v54, %v53
  %vm63 = vcmask 523264
  %v65 = vsel %vm63, %v38, 0
  %67 = vmatprep.subr.bf16.mxu0 0
  %68 = vmatpush1.bf16.msra.mxu0 %v55
  %69 = vmatprep.subr.bf16.mxu0 0
  %70 = vmatpush1.bf16.msra.mxu0 %v56
  %71 = vmatprep.subr.bf16.mxu0 0
  %72 = vmatpush1.bf16.msra.mxu0 %v57
  %73 = vmatprep.subr.bf16.mxu0 0
  %74 = vmatpush1.bf16.msra.mxu0 %v58
  %75 = vmatprep.subr.bf16.mxu0 0
  %76 = vmatpush1.bf16.msra.mxu0 0
  %77 = vmatprep.subr.bf16.mxu0 0
  %78 = vmatpush1.bf16.msra.mxu0 0
  %79 = vmatprep.subr.bf16.mxu0 0
  %80 = vmatpush1.bf16.msra.mxu0 0
  %81 = vmatprep.subr.bf16.mxu0 0
  %82 = vmatpush1.bf16.msra.mxu0 0
  %83 = vmatprep.subr.bf16.mxu0 0
  %84 = vmatpush1.bf16.msra.mxu0 0
  %85 = vmatprep.subr.bf16.mxu0 0
  %86 = vmatpush1.bf16.msra.mxu0 0
  %87 = vmatprep.subr.bf16.mxu0 0
  %88 = vmatpush1.bf16.msra.mxu0 0
  %89 = vmatprep.subr.bf16.mxu0 0
  %90 = vmatpush1.bf16.msra.mxu0 0
  %91 = vmatprep.subr.bf16.mxu0 0
  %92 = vmatpush1.bf16.msra.mxu0 0
  %93 = vmatprep.subr.bf16.mxu0 0
  %94 = vmatpush1.bf16.msra.mxu0 0
  %95 = vmatprep.subr.bf16.mxu0 0
  %96 = vmatpush1.bf16.msra.mxu0 0
  %97 = vmatprep.subr.bf16.mxu0 0
  %98 = vmatpush1.bf16.msra.mxu0 0
  %99 = vmatprep.mubr.bf16.mxu0 0
  %100 = vmatmul.mubr.bf16.gmra.mrb[0].mxu0 %v65
  %v101 = vpop.f32.mrb[0].mxu0
  %v102 = vadd.f32 0.0, %v101
  %v103 = vpop.f32.mrb[0].mxu0
  %v104 = vpop.f32.mrb[0].mxu0
  %v105 = vadd.f32 0.0, %v104
  %v106 = vpop.f32.mrb[0].mxu0
  %107 = vdwg.mxu0
  %v108 = vadd.f32 %v22, %v102
  %v109 = vadd.f32 %v23, %v105
  %vm110 = vcmask 261120
  %111 = vst.msk [vmem:[#allocation2] sm:$0xff] %vm110, %v108
  %112 = vst.msk [vmem:[#allocation2 + $0x8] sm:$0xff] %vm110, %v109
  // Predicated region
  $region18: #{dgi_forward.18} parent=0 // pred_check
    %p113 = pneg %p15
  $region19: #{dgi_forward.18} parent=0 // pred_check_branch
    %115 = sbr.rel (%p113) target = $region21
  $region20: #{dgi_forward.18} parent=0 // pred_region
    %v116 = vld [vmem:[#allocation2] sm:$0xff]
    %v117 = vld [vmem:[#allocation2 + $0x8] sm:$0xff]
    %v118 = vld [vmem:[%s2] sm:$0x1]
    %v120 = vlaneseq
    %v121 = vshrl.u32 %v120, 7
    %v122 = vsub.s32 0, %v121
    %v123 = vrot.slane %v118, %v122
    %v125 = vadd.f32 %v116, %v123
    %v126 = vadd.f32 %v117, %v123
    %v127 = vmax.f32 %v125, 0.0
    %v128 = vmax.f32 %v126, 0.0
    %v129 = vpack.c.bf16 %v128, %v127
    %v131 = vunpack.c.l.b16 %v129
    %v132 = vunpack.c.h.b16 %v129
    %v133 = vpack.c.b16 %v131, %v131
    %v134 = vpack.c.b16 %v132, %v132
    %vm137 = vcmask 257024
    %138 = vst.msk [vmem:[%s3] sm:$0xf] %vm137, %v133
    %139 = vst.msk [vmem:[%s3 + $0x4] sm:$0xf] %vm137, %v134
  $region21: #{dgi_forward.18} parent=0 // pred_fallthru
    _
  // Predicated region
  $region22: #{dgi_forward.18} parent=0 // pred_check
    _
  $region23: #{dgi_forward.18} parent=0 // pred_check_branch
    %141 = sbr.rel (0) target = $region25
  $region24: #{dgi_forward.18} parent=0 // pred_region
    _
  $region25: #{dgi_forward.18} parent=0 // pred_fallthru
    _
  // Predicated region
  $region26: #{dgi_forward.18} parent=0 // pred_check
    _
  $region27: #{dgi_forward.18} parent=0 // pred_check_branch
    %143 = sbr.rel (0) target = $region29
  $region28: #{dgi_forward.18} parent=0 // pred_region
    _
  $region29: #{dgi_forward.18} parent=0 // pred_fallthru
    _

// kernel: dgi_forward.19
$region0: #{dgi_forward.19}
  #allocation0 [shape = 'u32[]', space=smem, size = 0x4, offset = 0x4, fixed_abs, tag = 'smem constant byte address 0x4 - core index']
  #allocation1 [shape = 'u32[144,128]{1,0:T(1,128)}', space=vmem, size = 0x12000, scoped, tag = 'internal scratch']
  %s0 = inlined_call_operand.vmem [shape: bf16[16,32], index: 0, kind: input, shape index: {}]
  %s1 = inlined_call_operand.vmem [shape: bf16[32,32], index: 1, kind: input, shape index: {}]
  %s2 = inlined_call_operand.vmem [shape: f32[1,32], index: 2, kind: input, shape index: {}]
  %s3 = inlined_call_operand.vmem [shape: bf16[32,32], index: 3, kind: input, shape index: {}]
  %s4 = inlined_call_operand.vmem [shape: f32[1,32], index: 4, kind: input, shape index: {}]
  %s5 = inlined_call_operand.vmem [shape: bf16[16,32], index: 5, kind: output, shape index: {}]
  %s6 = sld [smem:[#allocation0]]
  $region30: #{dgi_forward.19} parent=0
    _
  %s8 = ssub.s32 1, %s6
  %s9 = scalar_select 0, %s8, %s6
  // Predicated region
  $region2: #{dgi_forward.19} parent=0 // pred_check
    _
  $region3: #{dgi_forward.19} parent=0 // pred_check_branch
    %11 = sbr.rel (0) target = $region5
  $region4: #{dgi_forward.19} parent=0 // pred_region
    _
  $region5: #{dgi_forward.19} parent=0 // pred_fallthru
    _
  // Predicated region
  $region6: #{dgi_forward.19} parent=0 // pred_check
    _
  $region7: #{dgi_forward.19} parent=0 // pred_check_branch
    %13 = sbr.rel (0) target = $region9
  $region8: #{dgi_forward.19} parent=0 // pred_region
    _
  $region9: #{dgi_forward.19} parent=0 // pred_fallthru
    _
  // Predicated region
  $region10: #{dgi_forward.19} parent=0 // pred_check
    _
  $region11: #{dgi_forward.19} parent=0 // pred_check_branch
    %15 = sbr.rel (0) target = $region13
  $region12: #{dgi_forward.19} parent=0 // pred_region
    _
  $region13: #{dgi_forward.19} parent=0 // pred_fallthru
    _
  // Predicated region
  $region14: #{dgi_forward.19} parent=0 // pred_check
    _
  $region15: #{dgi_forward.19} parent=0 // pred_check_branch
    %17 = sbr.rel (0) target = $region17
  $region16: #{dgi_forward.19} parent=0 // pred_region
    _
  $region17: #{dgi_forward.19} parent=0 // pred_fallthru
    _
  // Predicated region
  $region18: #{dgi_forward.19} parent=0 // pred_check
    _
  $region19: #{dgi_forward.19} parent=0 // pred_check_branch
    %19 = sbr.rel (0) target = $region21
  $region20: #{dgi_forward.19} parent=0 // pred_region
    _
  $region21: #{dgi_forward.19} parent=0 // pred_fallthru
    _
  %v21 = vld [vmem:[%s0] sm:$0xf]
  %v22 = vld [vmem:[%s0 + $0x4] sm:$0xf]
  %v23 = vld [vmem:[%s1] sm:$0xf]
  %v24 = vld [vmem:[%s1 + $0x4] sm:$0xf]
  %v25 = vld [vmem:[%s1 + $0x8] sm:$0xf]
  %v26 = vld [vmem:[%s1 + $0xc] sm:$0xf]
  %v27 = vld [vmem:[%s2] sm:$0x1]
  %v29 = vlaneseq
  %v30 = vshrl.u32 %v29, 7
  %v31 = vsub.s32 0, %v30
  %v32 = vrot.slane %v27, %v31
  %v36 = vunpack.c.l.b16 %v21
  %v37 = vunpack.c.l.b16 %v22
  %v38 = vpack.c.b16 %v37, %v36
  %v43 = vunpack.c.l.b16 %v23
  %v44 = vunpack.c.l.b16 %v24
  %v45 = vunpack.c.l.b16 %v25
  %v46 = vunpack.c.l.b16 %v26
  %v47 = vpack.c.b16 %v44, %v43
  %v48 = vpack.c.b16 %v46, %v45
  %vm51 = vcmask 261120
  %v53 = vsel %vm51, %v38, 0
  %55 = vmatprep.subr.bf16.mxu0 0
  %56 = vmatpush1.bf16.msra.mxu0 %v47
  %57 = vmatprep.subr.bf16.mxu0 0
  %58 = vmatpush1.bf16.msra.mxu0 %v48
  %59 = vmatprep.subr.bf16.mxu0 0
  %60 = vmatpush1.bf16.msra.mxu0 0
  %61 = vmatprep.subr.bf16.mxu0 0
  %62 = vmatpush1.bf16.msra.mxu0 0
  %63 = vmatprep.subr.bf16.mxu0 0
  %64 = vmatpush1.bf16.msra.mxu0 0
  %65 = vmatprep.subr.bf16.mxu0 0
  %66 = vmatpush1.bf16.msra.mxu0 0
  %67 = vmatprep.subr.bf16.mxu0 0
  %68 = vmatpush1.bf16.msra.mxu0 0
  %69 = vmatprep.subr.bf16.mxu0 0
  %70 = vmatpush1.bf16.msra.mxu0 0
  %71 = vmatprep.subr.bf16.mxu0 0
  %72 = vmatpush1.bf16.msra.mxu0 0
  %73 = vmatprep.subr.bf16.mxu0 0
  %74 = vmatpush1.bf16.msra.mxu0 0
  %75 = vmatprep.subr.bf16.mxu0 0
  %76 = vmatpush1.bf16.msra.mxu0 0
  %77 = vmatprep.subr.bf16.mxu0 0
  %78 = vmatpush1.bf16.msra.mxu0 0
  %79 = vmatprep.subr.bf16.mxu0 0
  %80 = vmatpush1.bf16.msra.mxu0 0
  %81 = vmatprep.subr.bf16.mxu0 0
  %82 = vmatpush1.bf16.msra.mxu0 0
  %83 = vmatprep.subr.bf16.mxu0 0
  %84 = vmatpush1.bf16.msra.mxu0 0
  %85 = vmatprep.subr.bf16.mxu0 0
  %86 = vmatpush1.bf16.msra.mxu0 0
  %87 = vmatprep.mubr.bf16.mxu0 0
  %88 = vmatmul.mubr.bf16.gmra.mrb[0].mxu0 %v53
  %v89 = vpop.f32.mrb[0].mxu0
  %v90 = vadd.f32 %v32, %v89
  %v91 = vpop.f32.mrb[0].mxu0
  %v92 = vpop.f32.mrb[0].mxu0
  %v93 = vadd.f32 %v32, %v92
  %v94 = vpop.f32.mrb[0].mxu0
  %95 = vdwg.mxu0
  %v96 = vmax.f32 %v90, 0.0
  %v97 = vmax.f32 %v93, 0.0
  %v98 = vpack.c.bf16 %v97, %v96
  %v99 = vld [vmem:[%s3] sm:$0xf]
  %v100 = vld [vmem:[%s3 + $0x4] sm:$0xf]
  %v101 = vld [vmem:[%s3 + $0x8] sm:$0xf]
  %v102 = vld [vmem:[%s3 + $0xc] sm:$0xf]
  %v103 = vld [vmem:[%s4] sm:$0x1]
  %v105 = vlaneseq
  %v106 = vshrl.u32 %v105, 7
  %v107 = vsub.s32 0, %v106
  %v108 = vrot.slane %v103, %v107
  %v114 = vunpack.c.l.b16 %v99
  %v115 = vunpack.c.l.b16 %v100
  %v116 = vunpack.c.l.b16 %v101
  %v117 = vunpack.c.l.b16 %v102
  %v118 = vpack.c.b16 %v115, %v114
  %v119 = vpack.c.b16 %v117, %v116
  %v123 = vsel %vm51, %v98, 0
  %125 = vmatprep.subr.bf16.mxu0 0
  %126 = vmatpush1.bf16.msra.mxu0 %v118
  %127 = vmatprep.subr.bf16.mxu0 0
  %128 = vmatpush1.bf16.msra.mxu0 %v119
  %129 = vmatprep.subr.bf16.mxu0 0
  %130 = vmatpush1.bf16.msra.mxu0 0
  %131 = vmatprep.subr.bf16.mxu0 0
  %132 = vmatpush1.bf16.msra.mxu0 0
  %133 = vmatprep.subr.bf16.mxu0 0
  %134 = vmatpush1.bf16.msra.mxu0 0
  %135 = vmatprep.subr.bf16.mxu0 0
  %136 = vmatpush1.bf16.msra.mxu0 0
  %137 = vmatprep.subr.bf16.mxu0 0
  %138 = vmatpush1.bf16.msra.mxu0 0
  %139 = vmatprep.subr.bf16.mxu0 0
  %140 = vmatpush1.bf16.msra.mxu0 0
  %141 = vmatprep.subr.bf16.mxu0 0
  %142 = vmatpush1.bf16.msra.mxu0 0
  %143 = vmatprep.subr.bf16.mxu0 0
  %144 = vmatpush1.bf16.msra.mxu0 0
  %145 = vmatprep.subr.bf16.mxu0 0
  %146 = vmatpush1.bf16.msra.mxu0 0
  %147 = vmatprep.subr.bf16.mxu0 0
  %148 = vmatpush1.bf16.msra.mxu0 0
  %149 = vmatprep.subr.bf16.mxu0 0
  %150 = vmatpush1.bf16.msra.mxu0 0
  %151 = vmatprep.subr.bf16.mxu0 0
  %152 = vmatpush1.bf16.msra.mxu0 0
  %153 = vmatprep.subr.bf16.mxu0 0
  %154 = vmatpush1.bf16.msra.mxu0 0
  %155 = vmatprep.subr.bf16.mxu0 0
  %156 = vmatpush1.bf16.msra.mxu0 0
  %157 = vmatprep.mubr.bf16.mxu0 0
  %158 = vmatmul.mubr.bf16.gmra.mrb[0].mxu0 %v123
  %v159 = vpop.f32.mrb[0].mxu0
  %v160 = vadd.f32 %v108, %v159
  %v161 = vpop.f32.mrb[0].mxu0
  %v162 = vpop.f32.mrb[0].mxu0
  %v163 = vadd.f32 %v108, %v162
  %v164 = vpop.f32.mrb[0].mxu0
  %165 = vdwg.mxu0
  %v166 = vpack.c.bf16 %v163, %v160
  %v168 = vunpack.c.l.b16 %v166
  %v169 = vunpack.c.h.b16 %v166
  %v170 = vpack.c.b16 %v168, %v168
  %v171 = vpack.c.b16 %v169, %v169
  %vm174 = vcmask 257024
  %175 = vst.msk [vmem:[%s5] sm:$0xf] %vm174, %v170
  %176 = vst.msk [vmem:[%s5 + $0x4] sm:$0xf] %vm174, %v171
  // Predicated region
  $region22: #{dgi_forward.19} parent=0 // pred_check
    _
  $region23: #{dgi_forward.19} parent=0 // pred_check_branch
    %178 = sbr.rel (0) target = $region25
  $region24: #{dgi_forward.19} parent=0 // pred_region
    _
  $region25: #{dgi_forward.19} parent=0 // pred_fallthru
    _
  // Predicated region
  $region26: #{dgi_forward.19} parent=0 // pred_check
    _
  $region27: #{dgi_forward.19} parent=0 // pred_check_branch
    %180 = sbr.rel (0) target = $region29
  $region28: #{dgi_forward.19} parent=0 // pred_region
    _
  $region29: #{dgi_forward.19} parent=0 // pred_fallthru
    _

// kernel: dgi_forward.23
$region0: #{dgi_forward.23}
  #allocation0 [shape = 'u32[]', space=smem, size = 0x4, offset = 0x4, fixed_abs, tag = 'smem constant byte address 0x4 - core index']
  #allocation1 [shape = 'u32[144,128]{1,0:T(1,128)}', space=vmem, size = 0x12000, scoped, tag = 'internal scratch']
  %s0 = inlined_call_operand.vmem [shape: bf16[32,32], index: 0, kind: input, shape index: {}]
  %s1 = inlined_call_operand.vmem [shape: bf16[16,16], index: 1, kind: input, shape index: {}]
  %s2 = inlined_call_operand.vmem [shape: bf16[16,32], index: 2, kind: input, shape index: {}]
  %s3 = inlined_call_operand.vmem [shape: f32[16,16], index: 3, kind: input, shape index: {}]
  %s4 = inlined_call_operand.vmem [shape: bf16[32,32], index: 4, kind: input, shape index: {}]
  %s5 = inlined_call_operand.vmem [shape: bf16[16,32], index: 5, kind: input, shape index: {}]
  %s6 = inlined_call_operand.vmem [shape: bf16[32,32], index: 6, kind: input, shape index: {}]
  %s7 = inlined_call_operand.vmem [shape: f32[1,32], index: 7, kind: input, shape index: {}]
  %s8 = inlined_call_operand.vmem [shape: bf16[32,32], index: 8, kind: input, shape index: {}]
  %s9 = inlined_call_operand.vmem [shape: f32[1,32], index: 9, kind: input, shape index: {}]
  %s10 = inlined_call_operand.vmem [shape: bf16[32,32], index: 10, kind: input, shape index: {}]
  %s11 = inlined_call_operand.vmem [shape: f32[1,32], index: 11, kind: input, shape index: {}]
  %s12 = inlined_call_operand.vmem [shape: bf16[32,32], index: 12, kind: input, shape index: {}]
  %s13 = inlined_call_operand.vmem [shape: f32[1,32], index: 13, kind: input, shape index: {}]
  %s14 = inlined_call_operand.vmem [shape: bf16[32,32], index: 14, kind: input, shape index: {}]
  %s15 = inlined_call_operand.vmem [shape: f32[1,32], index: 15, kind: input, shape index: {}]
  %s16 = inlined_call_operand.vmem [shape: bf16[32,16], index: 16, kind: input, shape index: {}]
  %s17 = inlined_call_operand.vmem [shape: f32[1,16], index: 17, kind: input, shape index: {}]
  %s18 = inlined_call_operand.hbm [shape: f32[1,1], index: 18, kind: output, shape index: {}]
  %s19 = sld [smem:[#allocation0]]
  $region86: #{dgi_forward.23} parent=0
    _
  %s21 = ssub.s32 1, %s19
  %s22 = scalar_select 0, %s21, %s19
  $region1: #{dgi_forward.23} parent=0
    #allocation2 [shape = 'u8[512]{0}', space=smem, size = 0x200, scoped, tag = 'output window, operand 0, single buffered']
    #allocation3 [shape = 's32[1]{0}', space=sflag, size = 0x4, scoped, tag = 'scoped memory for dgi_forward.23']
    %23 = vsyncpa [#allocation3], 0
    // Predicated region
    $region2: #{dgi_forward.23} parent=1 // pred_check
      _
    $region3: #{dgi_forward.23} parent=1 // pred_check_branch
      %25 = sbr.rel (0) target = $region5
    $region4: #{dgi_forward.23} parent=1 // pred_region
      _
    $region5: #{dgi_forward.23} parent=1 // pred_fallthru
      _
    // Predicated region
    $region6: #{dgi_forward.23} parent=1 // pred_check
      _
    $region7: #{dgi_forward.23} parent=1 // pred_check_branch
      %27 = sbr.rel (0) target = $region9
    $region8: #{dgi_forward.23} parent=1 // pred_region
      _
    $region9: #{dgi_forward.23} parent=1 // pred_fallthru
      _
    // Predicated region
    $region10: #{dgi_forward.23} parent=1 // pred_check
      _
    $region11: #{dgi_forward.23} parent=1 // pred_check_branch
      %29 = sbr.rel (0) target = $region13
    $region12: #{dgi_forward.23} parent=1 // pred_region
      _
    $region13: #{dgi_forward.23} parent=1 // pred_fallthru
      _
    // Predicated region
    $region14: #{dgi_forward.23} parent=1 // pred_check
      _
    $region15: #{dgi_forward.23} parent=1 // pred_check_branch
      %31 = sbr.rel (0) target = $region17
    $region16: #{dgi_forward.23} parent=1 // pred_region
      _
    $region17: #{dgi_forward.23} parent=1 // pred_fallthru
      _
    // Predicated region
    $region18: #{dgi_forward.23} parent=1 // pred_check
      _
    $region19: #{dgi_forward.23} parent=1 // pred_check_branch
      %33 = sbr.rel (0) target = $region21
    $region20: #{dgi_forward.23} parent=1 // pred_region
      _
    $region21: #{dgi_forward.23} parent=1 // pred_fallthru
      _
    // Predicated region
    $region22: #{dgi_forward.23} parent=1 // pred_check
      _
    $region23: #{dgi_forward.23} parent=1 // pred_check_branch
      %35 = sbr.rel (0) target = $region25
    $region24: #{dgi_forward.23} parent=1 // pred_region
      _
    $region25: #{dgi_forward.23} parent=1 // pred_fallthru
      _
    // Predicated region
    $region26: #{dgi_forward.23} parent=1 // pred_check
      _
    $region27: #{dgi_forward.23} parent=1 // pred_check_branch
      %37 = sbr.rel (0) target = $region29
    $region28: #{dgi_forward.23} parent=1 // pred_region
      _
    $region29: #{dgi_forward.23} parent=1 // pred_fallthru
      _
    // Predicated region
    $region30: #{dgi_forward.23} parent=1 // pred_check
      _
    $region31: #{dgi_forward.23} parent=1 // pred_check_branch
      %39 = sbr.rel (0) target = $region33
    $region32: #{dgi_forward.23} parent=1 // pred_region
      _
    $region33: #{dgi_forward.23} parent=1 // pred_fallthru
      _
    // Predicated region
    $region34: #{dgi_forward.23} parent=1 // pred_check
      _
    $region35: #{dgi_forward.23} parent=1 // pred_check_branch
      %41 = sbr.rel (0) target = $region37
    $region36: #{dgi_forward.23} parent=1 // pred_region
      _
    $region37: #{dgi_forward.23} parent=1 // pred_fallthru
      _
    // Predicated region
    $region38: #{dgi_forward.23} parent=1 // pred_check
      _
    $region39: #{dgi_forward.23} parent=1 // pred_check_branch
      %43 = sbr.rel (0) target = $region41
    $region40: #{dgi_forward.23} parent=1 // pred_region
      _
    $region41: #{dgi_forward.23} parent=1 // pred_fallthru
      _
    // Predicated region
    $region42: #{dgi_forward.23} parent=1 // pred_check
      _
    $region43: #{dgi_forward.23} parent=1 // pred_check_branch
      %45 = sbr.rel (0) target = $region45
    $region44: #{dgi_forward.23} parent=1 // pred_region
      _
    $region45: #{dgi_forward.23} parent=1 // pred_fallthru
      _
    // Predicated region
    $region46: #{dgi_forward.23} parent=1 // pred_check
      _
    $region47: #{dgi_forward.23} parent=1 // pred_check_branch
      %47 = sbr.rel (0) target = $region49
    $region48: #{dgi_forward.23} parent=1 // pred_region
      _
    $region49: #{dgi_forward.23} parent=1 // pred_fallthru
      _
    // Predicated region
    $region50: #{dgi_forward.23} parent=1 // pred_check
      _
    $region51: #{dgi_forward.23} parent=1 // pred_check_branch
      %49 = sbr.rel (0) target = $region53
    $region52: #{dgi_forward.23} parent=1 // pred_region
      _
    $region53: #{dgi_forward.23} parent=1 // pred_fallthru
      _
    // Predicated region
    $region54: #{dgi_forward.23} parent=1 // pred_check
      _
    $region55: #{dgi_forward.23} parent=1 // pred_check_branch
      %51 = sbr.rel (0) target = $region57
    $region56: #{dgi_forward.23} parent=1 // pred_region
      _
    $region57: #{dgi_forward.23} parent=1 // pred_fallthru
      _
    // Predicated region
    $region58: #{dgi_forward.23} parent=1 // pred_check
      _
    $region59: #{dgi_forward.23} parent=1 // pred_check_branch
      %53 = sbr.rel (0) target = $region61
    $region60: #{dgi_forward.23} parent=1 // pred_region
      _
    $region61: #{dgi_forward.23} parent=1 // pred_fallthru
      _
    // Predicated region
    $region62: #{dgi_forward.23} parent=1 // pred_check
      _
    $region63: #{dgi_forward.23} parent=1 // pred_check_branch
      %55 = sbr.rel (0) target = $region65
    $region64: #{dgi_forward.23} parent=1 // pred_region
      _
    $region65: #{dgi_forward.23} parent=1 // pred_fallthru
      _
    // Predicated region
    $region66: #{dgi_forward.23} parent=1 // pred_check
      _
    $region67: #{dgi_forward.23} parent=1 // pred_check_branch
      %57 = sbr.rel (0) target = $region69
    $region68: #{dgi_forward.23} parent=1 // pred_region
      _
    $region69: #{dgi_forward.23} parent=1 // pred_fallthru
      _
    // Predicated region
    $region70: #{dgi_forward.23} parent=1 // pred_check
      _
    $region71: #{dgi_forward.23} parent=1 // pred_check_branch
      %59 = sbr.rel (0) target = $region73
    $region72: #{dgi_forward.23} parent=1 // pred_region
      _
    $region73: #{dgi_forward.23} parent=1 // pred_fallthru
      _
    %p61 = scmp.eq.s32.totalorder 0, 0
    // Predicated region
    $region74: #{dgi_forward.23} parent=1 // pred_check
      %p62 = pneg %p61
    $region75: #{dgi_forward.23} parent=1 // pred_check_branch
      %64 = sbr.rel (%p62) target = $region77
    $region76: #{dgi_forward.23} parent=1 // pred_region
      %s65 = scalar_lea.smem [#allocation2], 0
      %66 = sst [smem:[%s65]] 0.0
    $region77: #{dgi_forward.23} parent=1 // pred_fallthru
      _
    %v67 = vld [vmem:[%s0] sm:$0xf]
    %v68 = vld [vmem:[%s0 + $0x4] sm:$0xf]
    %v69 = vld [vmem:[%s4] sm:$0xf]
    %v70 = vld [vmem:[%s4 + $0x4] sm:$0xf]
    %v71 = vld [vmem:[%s4 + $0x8] sm:$0xf]
    %v72 = vld [vmem:[%s4 + $0xc] sm:$0xf]
    %v73 = vld [vmem:[%s1] sm:$0xf]
    %v74 = vld [vmem:[%s1 + $0x4] sm:$0xf]
    %v75 = vld [vmem:[%s5] sm:$0xf]
    %v76 = vld [vmem:[%s5 + $0x4] sm:$0xf]
    %v79 = vunpack.c.l.b16 %v73
    %v80 = vunpack.c.l.b16 %v74
    %v81 = vpack.c.b16 %v80, %v79
    %v84 = vunpack.c.l.b16 %v75
    %v85 = vunpack.c.l.b16 %v76
    %v86 = vpack.c.b16 %v85, %v84
    %vm88 = vcmask 130048
    %v90 = vsel %vm88, %v81, 0
    %92 = vmatprep.subr.bf16.mxu0 0
    %93 = vmatpush1.bf16.msra.mxu0 %v86
    %94 = vmatprep.subr.bf16.mxu0 0
    %95 = vmatpush1.bf16.msra.mxu0 0
    %96 = vmatprep.subr.bf16.mxu0 0
    %97 = vmatpush1.bf16.msra.mxu0 0
    %98 = vmatprep.subr.bf16.mxu0 0
    %99 = vmatpush1.bf16.msra.mxu0 0
    %100 = vmatprep.subr.bf16.mxu0 0
    %101 = vmatpush1.bf16.msra.mxu0 0
    %102 = vmatprep.subr.bf16.mxu0 0
    %103 = vmatpush1.bf16.msra.mxu0 0
    %104 = vmatprep.subr.bf16.mxu0 0
    %105 = vmatpush1.bf16.msra.mxu0 0
    %106 = vmatprep.subr.bf16.mxu0 0
    %107 = vmatpush1.bf16.msra.mxu0 0
    %108 = vmatprep.subr.bf16.mxu0 0
    %109 = vmatpush1.bf16.msra.mxu0 0
    %110 = vmatprep.subr.bf16.mxu0 0
    %111 = vmatpush1.bf16.msra.mxu0 0
    %112 = vmatprep.subr.bf16.mxu0 0
    %113 = vmatpush1.bf16.msra.mxu0 0
    %114 = vmatprep.subr.bf16.mxu0 0
    %115 = vmatpush1.bf16.msra.mxu0 0
    %116 = vmatprep.subr.bf16.mxu0 0
    %117 = vmatpush1.bf16.msra.mxu0 0
    %118 = vmatprep.subr.bf16.mxu0 0
    %119 = vmatpush1.bf16.msra.mxu0 0
    %120 = vmatprep.subr.bf16.mxu0 0
    %121 = vmatpush1.bf16.msra.mxu0 0
    %122 = vmatprep.subr.bf16.mxu0 0
    %123 = vmatpush1.bf16.msra.mxu0 0
    %124 = vmatprep.mubr.bf16.mxu0 0
    %125 = vmatmul.mubr.bf16.gmra.mrb[0].mxu0 %v90
    %v126 = vpop.f32.mrb[0].mxu0
    %v127 = vadd.f32 0.0, %v126
    %v128 = vpop.f32.mrb[0].mxu0
    %v129 = vpop.f32.mrb[0].mxu0
    %v130 = vadd.f32 0.0, %v129
    %v131 = vpop.f32.mrb[0].mxu0
    %132 = vdwg.mxu0
    %v135 = vunpack.c.l.b16 %v67
    %v136 = vunpack.c.l.b16 %v68
    %v137 = vpack.c.b16 %v136, %v135
    %v142 = vunpack.c.l.b16 %v69
    %v143 = vunpack.c.l.b16 %v70
    %v144 = vunpack.c.l.b16 %v71
    %v145 = vunpack.c.l.b16 %v72
    %v146 = vpack.c.b16 %v143, %v142
    %v147 = vpack.c.b16 %v145, %v144
    %vm150 = vcmask 261120
    %v152 = vsel %vm150, %v137, 0
    %154 = vmatprep.subr.bf16.mxu0 0
    %155 = vmatpush1.bf16.msra.mxu0 %v146
    %156 = vmatprep.subr.bf16.mxu0 0
    %157 = vmatpush1.bf16.msra.mxu0 %v147
    %158 = vmatprep.subr.bf16.mxu0 0
    %159 = vmatpush1.bf16.msra.mxu0 0
    %160 = vmatprep.subr.bf16.mxu0 0
    %161 = vmatpush1.bf16.msra.mxu0 0
    %162 = vmatprep.subr.bf16.mxu0 0
    %163 = vmatpush1.bf16.msra.mxu0 0
    %164 = vmatprep.subr.bf16.mxu0 0
    %165 = vmatpush1.bf16.msra.mxu0 0
    %166 = vmatprep.subr.bf16.mxu0 0
    %167 = vmatpush1.bf16.msra.mxu0 0
    %168 = vmatprep.subr.bf16.mxu0 0
    %169 = vmatpush1.bf16.msra.mxu0 0
    %170 = vmatprep.subr.bf16.mxu0 0
    %171 = vmatpush1.bf16.msra.mxu0 0
    %172 = vmatprep.subr.bf16.mxu0 0
    %173 = vmatpush1.bf16.msra.mxu0 0
    %174 = vmatprep.subr.bf16.mxu0 0
    %175 = vmatpush1.bf16.msra.mxu0 0
    %176 = vmatprep.subr.bf16.mxu0 0
    %177 = vmatpush1.bf16.msra.mxu0 0
    %178 = vmatprep.subr.bf16.mxu0 0
    %179 = vmatpush1.bf16.msra.mxu0 0
    %180 = vmatprep.subr.bf16.mxu0 0
    %181 = vmatpush1.bf16.msra.mxu0 0
    %182 = vmatprep.subr.bf16.mxu0 0
    %183 = vmatpush1.bf16.msra.mxu0 0
    %184 = vmatprep.subr.bf16.mxu0 0
    %185 = vmatpush1.bf16.msra.mxu0 0
    %186 = vmatprep.mubr.bf16.mxu0 0
    %187 = vmatmul.mubr.bf16.gmra.mrb[0].mxu0 %v152
    %v188 = vpop.f32.mrb[0].mxu0
    %v189 = vadd.f32 %v127, %v188
    %v190 = vpop.f32.mrb[0].mxu0
    %v191 = vpop.f32.mrb[0].mxu0
    %v192 = vadd.f32 %v130, %v191
    %v193 = vpop.f32.mrb[0].mxu0
    %194 = vdwg.mxu0
    %v195 = vld [vmem:[%s2] sm:$0xf]
    %v196 = vld [vmem:[%s2 + $0x4] sm:$0xf]
    %v197 = vld [vmem:[%s6] sm:$0xf]
    %v198 = vld [vmem:[%s6 + $0x4] sm:$0xf]
    %v199 = vld [vmem:[%s6 + $0x8] sm:$0xf]
    %v200 = vld [vmem:[%s6 + $0xc] sm:$0xf]
    %v203 = vunpack.c.l.b16 %v195
    %v204 = vunpack.c.l.b16 %v196
    %v205 = vpack.c.b16 %v204, %v203
    %v210 = vunpack.c.l.b16 %v197
    %v211 = vunpack.c.l.b16 %v198
    %v212 = vunpack.c.l.b16 %v199
    %v213 = vunpack.c.l.b16 %v200
    %v214 = vpack.c.b16 %v211, %v210
    %v215 = vpack.c.b16 %v213, %v212
    %v219 = vsel %vm150, %v205, 0
    %221 = vmatprep.subr.bf16.mxu0 0
    %222 = vmatpush1.bf16.msra.mxu0 %v214
    %223 = vmatprep.subr.bf16.mxu0 0
    %224 = vmatpush1.bf16.msra.mxu0 %v215
    %225 = vmatprep.subr.bf16.mxu0 0
    %226 = vmatpush1.bf16.msra.mxu0 0
    %227 = vmatprep.subr.bf16.mxu0 0
    %228 = vmatpush1.bf16.msra.mxu0 0
    %229 = vmatprep.subr.bf16.mxu0 0
    %230 = vmatpush1.bf16.msra.mxu0 0
    %231 = vmatprep.subr.bf16.mxu0 0
    %232 = vmatpush1.bf16.msra.mxu0 0
    %233 = vmatprep.subr.bf16.mxu0 0
    %234 = vmatpush1.bf16.msra.mxu0 0
    %235 = vmatprep.subr.bf16.mxu0 0
    %236 = vmatpush1.bf16.msra.mxu0 0
    %237 = vmatprep.subr.bf16.mxu0 0
    %238 = vmatpush1.bf16.msra.mxu0 0
    %239 = vmatprep.subr.bf16.mxu0 0
    %240 = vmatpush1.bf16.msra.mxu0 0
    %241 = vmatprep.subr.bf16.mxu0 0
    %242 = vmatpush1.bf16.msra.mxu0 0
    %243 = vmatprep.subr.bf16.mxu0 0
    %244 = vmatpush1.bf16.msra.mxu0 0
    %245 = vmatprep.subr.bf16.mxu0 0
    %246 = vmatpush1.bf16.msra.mxu0 0
    %247 = vmatprep.subr.bf16.mxu0 0
    %248 = vmatpush1.bf16.msra.mxu0 0
    %249 = vmatprep.subr.bf16.mxu0 0
    %250 = vmatpush1.bf16.msra.mxu0 0
    %251 = vmatprep.subr.bf16.mxu0 0
    %252 = vmatpush1.bf16.msra.mxu0 0
    %253 = vmatprep.mubr.bf16.mxu0 0
    %254 = vmatmul.mubr.bf16.gmra.mrb[0].mxu0 %v219
    %v255 = vpop.f32.mrb[0].mxu0
    %v256 = vadd.f32 0.0, %v255
    %v257 = vpop.f32.mrb[0].mxu0
    %v258 = vpop.f32.mrb[0].mxu0
    %v259 = vadd.f32 0.0, %v258
    %v260 = vpop.f32.mrb[0].mxu0
    %261 = vdwg.mxu0
    %v262 = vadd.f32 %v189, %v256
    %v263 = vadd.f32 %v192, %v259
    %v264 = vld [vmem:[%s7] sm:$0x1]
    %v266 = vlaneseq
    %v267 = vshrl.u32 %v266, 7
    %v268 = vsub.s32 0, %v267
    %v269 = vrot.slane %v264, %v268
    %v271 = vadd.f32 %v262, %v269
    %v272 = vadd.f32 %v263, %v269
    %v273 = vmax.f32 %v271, 0.0
    %v274 = vmax.f32 %v272, 0.0
    %v275 = vpack.c.bf16 %v274, %v273
    %v276 = vld [vmem:[%s8] sm:$0xf]
    %v277 = vld [vmem:[%s8 + $0x4] sm:$0xf]
    %v278 = vld [vmem:[%s8 + $0x8] sm:$0xf]
    %v279 = vld [vmem:[%s8 + $0xc] sm:$0xf]
    %v280 = vld [vmem:[%s9] sm:$0x1]
    %v282 = vlaneseq
    %v283 = vshrl.u32 %v282, 7
    %v284 = vsub.s32 0, %v283
    %v285 = vrot.slane %v280, %v284
    %v291 = vunpack.c.l.b16 %v276
    %v292 = vunpack.c.l.b16 %v277
    %v293 = vunpack.c.l.b16 %v278
    %v294 = vunpack.c.l.b16 %v279
    %v295 = vpack.c.b16 %v292, %v291
    %v296 = vpack.c.b16 %v294, %v293
    %v300 = vsel %vm150, %v275, 0
    %302 = vmatprep.subr.bf16.mxu0 0
    %303 = vmatpush1.bf16.msra.mxu0 %v295
    %304 = vmatprep.subr.bf16.mxu0 0
    %305 = vmatpush1.bf16.msra.mxu0 %v296
    %306 = vmatprep.subr.bf16.mxu0 0
    %307 = vmatpush1.bf16.msra.mxu0 0
    %308 = vmatprep.subr.bf16.mxu0 0
    %309 = vmatpush1.bf16.msra.mxu0 0
    %310 = vmatprep.subr.bf16.mxu0 0
    %311 = vmatpush1.bf16.msra.mxu0 0
    %312 = vmatprep.subr.bf16.mxu0 0
    %313 = vmatpush1.bf16.msra.mxu0 0
    %314 = vmatprep.subr.bf16.mxu0 0
    %315 = vmatpush1.bf16.msra.mxu0 0
    %316 = vmatprep.subr.bf16.mxu0 0
    %317 = vmatpush1.bf16.msra.mxu0 0
    %318 = vmatprep.subr.bf16.mxu0 0
    %319 = vmatpush1.bf16.msra.mxu0 0
    %320 = vmatprep.subr.bf16.mxu0 0
    %321 = vmatpush1.bf16.msra.mxu0 0
    %322 = vmatprep.subr.bf16.mxu0 0
    %323 = vmatpush1.bf16.msra.mxu0 0
    %324 = vmatprep.subr.bf16.mxu0 0
    %325 = vmatpush1.bf16.msra.mxu0 0
    %326 = vmatprep.subr.bf16.mxu0 0
    %327 = vmatpush1.bf16.msra.mxu0 0
    %328 = vmatprep.subr.bf16.mxu0 0
    %329 = vmatpush1.bf16.msra.mxu0 0
    %330 = vmatprep.subr.bf16.mxu0 0
    %331 = vmatpush1.bf16.msra.mxu0 0
    %332 = vmatprep.subr.bf16.mxu0 0
    %333 = vmatpush1.bf16.msra.mxu0 0
    %334 = vmatprep.mubr.bf16.mxu0 0
    %335 = vmatmul.mubr.bf16.gmra.mrb[0].mxu0 %v300
    %v336 = vpop.f32.mrb[0].mxu0
    %v337 = vadd.f32 %v285, %v336
    %v338 = vpop.f32.mrb[0].mxu0
    %v339 = vpop.f32.mrb[0].mxu0
    %v340 = vadd.f32 %v285, %v339
    %v341 = vpop.f32.mrb[0].mxu0
    %342 = vdwg.mxu0
    %v343 = vmax.f32 %v337, 0.0
    %v344 = vmax.f32 %v340, 0.0
    %v345 = vpack.c.bf16 %v344, %v343
    %v346 = vld [vmem:[%s10] sm:$0xf]
    %v347 = vld [vmem:[%s10 + $0x4] sm:$0xf]
    %v348 = vld [vmem:[%s10 + $0x8] sm:$0xf]
    %v349 = vld [vmem:[%s10 + $0xc] sm:$0xf]
    %v350 = vld [vmem:[%s11] sm:$0x1]
    %v352 = vlaneseq
    %v353 = vshrl.u32 %v352, 7
    %v354 = vsub.s32 0, %v353
    %v355 = vrot.slane %v350, %v354
    %v361 = vunpack.c.l.b16 %v346
    %v362 = vunpack.c.l.b16 %v347
    %v363 = vunpack.c.l.b16 %v348
    %v364 = vunpack.c.l.b16 %v349
    %v365 = vpack.c.b16 %v362, %v361
    %v366 = vpack.c.b16 %v364, %v363
    %v370 = vsel %vm150, %v345, 0
    %372 = vmatprep.subr.bf16.mxu0 0
    %373 = vmatpush1.bf16.msra.mxu0 %v365
    %374 = vmatprep.subr.bf16.mxu0 0
    %375 = vmatpush1.bf16.msra.mxu0 %v366
    %376 = vmatprep.subr.bf16.mxu0 0
    %377 = vmatpush1.bf16.msra.mxu0 0
    %378 = vmatprep.subr.bf16.mxu0 0
    %379 = vmatpush1.bf16.msra.mxu0 0
    %380 = vmatprep.subr.bf16.mxu0 0
    %381 = vmatpush1.bf16.msra.mxu0 0
    %382 = vmatprep.subr.bf16.mxu0 0
    %383 = vmatpush1.bf16.msra.mxu0 0
    %384 = vmatprep.subr.bf16.mxu0 0
    %385 = vmatpush1.bf16.msra.mxu0 0
    %386 = vmatprep.subr.bf16.mxu0 0
    %387 = vmatpush1.bf16.msra.mxu0 0
    %388 = vmatprep.subr.bf16.mxu0 0
    %389 = vmatpush1.bf16.msra.mxu0 0
    %390 = vmatprep.subr.bf16.mxu0 0
    %391 = vmatpush1.bf16.msra.mxu0 0
    %392 = vmatprep.subr.bf16.mxu0 0
    %393 = vmatpush1.bf16.msra.mxu0 0
    %394 = vmatprep.subr.bf16.mxu0 0
    %395 = vmatpush1.bf16.msra.mxu0 0
    %396 = vmatprep.subr.bf16.mxu0 0
    %397 = vmatpush1.bf16.msra.mxu0 0
    %398 = vmatprep.subr.bf16.mxu0 0
    %399 = vmatpush1.bf16.msra.mxu0 0
    %400 = vmatprep.subr.bf16.mxu0 0
    %401 = vmatpush1.bf16.msra.mxu0 0
    %402 = vmatprep.subr.bf16.mxu0 0
    %403 = vmatpush1.bf16.msra.mxu0 0
    %404 = vmatprep.mubr.bf16.mxu0 0
    %405 = vmatmul.mubr.bf16.gmra.mrb[0].mxu0 %v370
    %v406 = vpop.f32.mrb[0].mxu0
    %v407 = vadd.f32 %v355, %v406
    %v408 = vpop.f32.mrb[0].mxu0
    %v409 = vpop.f32.mrb[0].mxu0
    %v410 = vadd.f32 %v355, %v409
    %v411 = vpop.f32.mrb[0].mxu0
    %412 = vdwg.mxu0
    %v413 = vpack.c.bf16 %v410, %v407
    %v414 = vld [vmem:[%s12] sm:$0xf]
    %v415 = vld [vmem:[%s12 + $0x4] sm:$0xf]
    %v416 = vld [vmem:[%s12 + $0x8] sm:$0xf]
    %v417 = vld [vmem:[%s12 + $0xc] sm:$0xf]
    %v418 = vld [vmem:[%s13] sm:$0x1]
    %v419 = vld [vmem:[%s14] sm:$0xf]
    %v420 = vld [vmem:[%s14 + $0x4] sm:$0xf]
    %v421 = vld [vmem:[%s14 + $0x8] sm:$0xf]
    %v422 = vld [vmem:[%s14 + $0xc] sm:$0xf]
    %v423 = vld [vmem:[%s15] sm:$0x1]
    %v424 = vld [vmem:[%s16] sm:$0xf]
    %v425 = vld [vmem:[%s16 + $0x4] sm:$0xf]
    %v426 = vld [vmem:[%s16 + $0x8] sm:$0xf]
    %v427 = vld [vmem:[%s16 + $0xc] sm:$0xf]
    %v428 = vld [vmem:[%s17] sm:$0x1]
    %v430 = vlaneseq
    %v431 = vshrl.u32 %v430, 7
    %v432 = vsub.s32 0, %v431
    %v433 = vrot.slane %v418, %v432
    %v439 = vunpack.c.l.b16 %v414
    %v440 = vunpack.c.l.b16 %v415
    %v441 = vunpack.c.l.b16 %v416
    %v442 = vunpack.c.l.b16 %v417
    %v443 = vpack.c.b16 %v440, %v439
    %v444 = vpack.c.b16 %v442, %v441
    %v448 = vsel %vm150, %v413, 0
    %450 = vmatprep.subr.bf16.mxu0 0
    %451 = vmatpush1.bf16.msra.mxu0 %v443
    %452 = vmatprep.subr.bf16.mxu0 0
    %453 = vmatpush1.bf16.msra.mxu0 %v444
    %454 = vmatprep.subr.bf16.mxu0 0
    %455 = vmatpush1.bf16.msra.mxu0 0
    %456 = vmatprep.subr.bf16.mxu0 0
    %457 = vmatpush1.bf16.msra.mxu0 0
    %458 = vmatprep.subr.bf16.mxu0 0
    %459 = vmatpush1.bf16.msra.mxu0 0
    %460 = vmatprep.subr.bf16.mxu0 0
    %461 = vmatpush1.bf16.msra.mxu0 0
    %462 = vmatprep.subr.bf16.mxu0 0
    %463 = vmatpush1.bf16.msra.mxu0 0
    %464 = vmatprep.subr.bf16.mxu0 0
    %465 = vmatpush1.bf16.msra.mxu0 0
    %466 = vmatprep.subr.bf16.mxu0 0
    %467 = vmatpush1.bf16.msra.mxu0 0
    %468 = vmatprep.subr.bf16.mxu0 0
    %469 = vmatpush1.bf16.msra.mxu0 0
    %470 = vmatprep.subr.bf16.mxu0 0
    %471 = vmatpush1.bf16.msra.mxu0 0
    %472 = vmatprep.subr.bf16.mxu0 0
    %473 = vmatpush1.bf16.msra.mxu0 0
    %474 = vmatprep.subr.bf16.mxu0 0
    %475 = vmatpush1.bf16.msra.mxu0 0
    %476 = vmatprep.subr.bf16.mxu0 0
    %477 = vmatpush1.bf16.msra.mxu0 0
    %478 = vmatprep.subr.bf16.mxu0 0
    %479 = vmatpush1.bf16.msra.mxu0 0
    %480 = vmatprep.subr.bf16.mxu0 0
    %481 = vmatpush1.bf16.msra.mxu0 0
    %482 = vmatprep.mubr.bf16.mxu0 0
    %483 = vmatmul.mubr.bf16.gmra.mrb[0].mxu0 %v448
    %v484 = vpop.f32.mrb[0].mxu0
    %v485 = vadd.f32 %v433, %v484
    %v486 = vpop.f32.mrb[0].mxu0
    %v487 = vpop.f32.mrb[0].mxu0
    %v488 = vadd.f32 %v433, %v487
    %v489 = vpop.f32.mrb[0].mxu0
    %490 = vdwg.mxu0
    %v491 = vmax.f32 %v485, 0.0
    %v492 = vmax.f32 %v488, 0.0
    %v493 = vpack.c.bf16 %v492, %v491
    %v495 = vlaneseq
    %v496 = vshrl.u32 %v495, 7
    %v497 = vsub.s32 0, %v496
    %v498 = vrot.slane %v423, %v497
    %v504 = vunpack.c.l.b16 %v419
    %v505 = vunpack.c.l.b16 %v420
    %v506 = vunpack.c.l.b16 %v421
    %v507 = vunpack.c.l.b16 %v422
    %v508 = vpack.c.b16 %v505, %v504
    %v509 = vpack.c.b16 %v507, %v506
    %v513 = vsel %vm150, %v493, 0
    %515 = vmatprep.subr.bf16.mxu0 0
    %516 = vmatpush1.bf16.msra.mxu0 %v508
    %517 = vmatprep.subr.bf16.mxu0 0
    %518 = vmatpush1.bf16.msra.mxu0 %v509
    %519 = vmatprep.subr.bf16.mxu0 0
    %520 = vmatpush1.bf16.msra.mxu0 0
    %521 = vmatprep.subr.bf16.mxu0 0
    %522 = vmatpush1.bf16.msra.mxu0 0
    %523 = vmatprep.subr.bf16.mxu0 0
    %524 = vmatpush1.bf16.msra.mxu0 0
    %525 = vmatprep.subr.bf16.mxu0 0
    %526 = vmatpush1.bf16.msra.mxu0 0
    %527 = vmatprep.subr.bf16.mxu0 0
    %528 = vmatpush1.bf16.msra.mxu0 0
    %529 = vmatprep.subr.bf16.mxu0 0
    %530 = vmatpush1.bf16.msra.mxu0 0
    %531 = vmatprep.subr.bf16.mxu0 0
    %532 = vmatpush1.bf16.msra.mxu0 0
    %533 = vmatprep.subr.bf16.mxu0 0
    %534 = vmatpush1.bf16.msra.mxu0 0
    %535 = vmatprep.subr.bf16.mxu0 0
    %536 = vmatpush1.bf16.msra.mxu0 0
    %537 = vmatprep.subr.bf16.mxu0 0
    %538 = vmatpush1.bf16.msra.mxu0 0
    %539 = vmatprep.subr.bf16.mxu0 0
    %540 = vmatpush1.bf16.msra.mxu0 0
    %541 = vmatprep.subr.bf16.mxu0 0
    %542 = vmatpush1.bf16.msra.mxu0 0
    %543 = vmatprep.subr.bf16.mxu0 0
    %544 = vmatpush1.bf16.msra.mxu0 0
    %545 = vmatprep.subr.bf16.mxu0 0
    %546 = vmatpush1.bf16.msra.mxu0 0
    %547 = vmatprep.mubr.bf16.mxu0 0
    %548 = vmatmul.mubr.bf16.gmra.mrb[0].mxu0 %v513
    %v549 = vpop.f32.mrb[0].mxu0
    %v550 = vadd.f32 %v498, %v549
    %v551 = vpop.f32.mrb[0].mxu0
    %v552 = vpop.f32.mrb[0].mxu0
    %v553 = vadd.f32 %v498, %v552
    %v554 = vpop.f32.mrb[0].mxu0
    %555 = vdwg.mxu0
    %v556 = vmax.f32 %v550, 0.0
    %v557 = vmax.f32 %v553, 0.0
    %v558 = vpack.c.bf16 %v557, %v556
    %v560 = vlaneseq
    %v561 = vshrl.u32 %v560, 7
    %v562 = vsub.s32 0, %v561
    %v563 = vrot.slane %v428, %v562
    %v569 = vunpack.c.l.b16 %v424
    %v570 = vunpack.c.l.b16 %v425
    %v571 = vunpack.c.l.b16 %v426
    %v572 = vunpack.c.l.b16 %v427
    %v573 = vpack.c.b16 %v570, %v569
    %v574 = vpack.c.b16 %v572, %v571
    %v578 = vsel %vm150, %v558, 0
    %580 = vmatprep.subr.bf16.mxu0 0
    %581 = vmatpush1.bf16.msra.mxu0 %v573
    %582 = vmatprep.subr.bf16.mxu0 0
    %583 = vmatpush1.bf16.msra.mxu0 %v574
    %584 = vmatprep.subr.bf16.mxu0 0
    %585 = vmatpush1.bf16.msra.mxu0 0
    %586 = vmatprep.subr.bf16.mxu0 0
    %587 = vmatpush1.bf16.msra.mxu0 0
    %588 = vmatprep.subr.bf16.mxu0 0
    %589 = vmatpush1.bf16.msra.mxu0 0
    %590 = vmatprep.subr.bf16.mxu0 0
    %591 = vmatpush1.bf16.msra.mxu0 0
    %592 = vmatprep.subr.bf16.mxu0 0
    %593 = vmatpush1.bf16.msra.mxu0 0
    %594 = vmatprep.subr.bf16.mxu0 0
    %595 = vmatpush1.bf16.msra.mxu0 0
    %596 = vmatprep.subr.bf16.mxu0 0
    %597 = vmatpush1.bf16.msra.mxu0 0
    %598 = vmatprep.subr.bf16.mxu0 0
    %599 = vmatpush1.bf16.msra.mxu0 0
    %600 = vmatprep.subr.bf16.mxu0 0
    %601 = vmatpush1.bf16.msra.mxu0 0
    %602 = vmatprep.subr.bf16.mxu0 0
    %603 = vmatpush1.bf16.msra.mxu0 0
    %604 = vmatprep.subr.bf16.mxu0 0
    %605 = vmatpush1.bf16.msra.mxu0 0
    %606 = vmatprep.subr.bf16.mxu0 0
    %607 = vmatpush1.bf16.msra.mxu0 0
    %608 = vmatprep.subr.bf16.mxu0 0
    %609 = vmatpush1.bf16.msra.mxu0 0
    %610 = vmatprep.subr.bf16.mxu0 0
    %611 = vmatpush1.bf16.msra.mxu0 0
    %612 = vmatprep.mubr.bf16.mxu0 0
    %613 = vmatmul.mubr.bf16.gmra.mrb[0].mxu0 %v578
    %v614 = vpop.f32.mrb[0].mxu0
    %v615 = vadd.f32 %v563, %v614
    %v616 = vpop.f32.mrb[0].mxu0
    %v617 = vpop.f32.mrb[0].mxu0
    %v618 = vadd.f32 %v563, %v617
    %v619 = vpop.f32.mrb[0].mxu0
    %620 = vdwg.mxu0
    %v621 = vld [vmem:[%s3] sm:$0xff]
    %v622 = vld [vmem:[%s3 + $0x8] sm:$0xff]
    %v623 = vsub.f32 %v615, %v621
    %v624 = vsub.f32 %v618, %v622
    %s625 = sld [smem:[#allocation2]]
    %v626 = vmul.f32 %v623, %v623
    %v627 = vmul.f32 %v624, %v624
    %v628 = vsel %vm88, %v626, 0.0
    %v629 = vsel %vm88, %v627, 0.0
    %v630 = vadd.f32 %v628, %v629
    %631 = vadd.xlane.f32.xlu0 %v630
    %v632 = vpop.xlane.xlu0 %631
    %v633 = vrot.slane %v632, 4
    %v634 = vadd.f32 %v632, %v633
    %v635 = vrot.slane %v634, 2
    %v636 = vadd.f32 %v634, %v635
    %v637 = vrot.slane %v636, 1
    %v638 = vadd.f32 %v636, %v637
    %s639 = vtos %v638
    %s640 = smul.f32 %s639, 0.00390625
    %s641 = sadd.f32 %s625, %s640
    %s642 = scalar_lea.smem [#allocation2], 0
    %643 = sst [smem:[%s642]] %s641
    // Predicated region
    $region78: #{dgi_forward.23} parent=1 // pred_check
      _
    $region79: #{dgi_forward.23} parent=1 // pred_check_branch
      %645 = sbr.rel (0) target = $region81
    $region80: #{dgi_forward.23} parent=1 // pred_region
      %s647 = ssub.s32 16, 16
      %648 = vsyncadd [#allocation3], %s647
      %651 = dma.smem_to_hbm [#allocation2], 16, %s18, [#allocation3]
    $region81: #{dgi_forward.23} parent=1 // pred_fallthru
      _
    // Predicated region
    $region82: #{dgi_forward.23} parent=1 // pred_check
      _
    $region83: #{dgi_forward.23} parent=1 // pred_check_branch
      %653 = sbr.rel (0) target = $region85
    $region84: #{dgi_forward.23} parent=1 // pred_region
      %654 = dma.done [#allocation3], 16
    $region85: #{dgi_forward.23} parent=1 // pred_fallthru
      _
    %655 = sfence
    %656 = vsyncpa [#allocation3], 1

</llo_original>
